<compile_context>
chip_gen: v7x
topology: tpu7x:2x2x1
jax: 0.10.0
libtpu: 0.0.40
codegen_flags: <defaults>
</compile_context>

<pallas_src>
import jax
import jax.numpy as jnp
from jax import lax
from jax.experimental import pallas as pl
from jax.experimental.pallas import tpu as pltpu

LANE = 128  # halo-band width == interior lane alignment


def resnet_layer_forward(x_nchw, p):
    """Fused Pallas implementation of ResNetLayer.forward (n=1, downsampling=1)."""
    N, C0, H, W = x_nchw.shape
    Cin = p["w_first"].shape[-1]
    Cout = p["w_b1"].shape[-1]
    Cf = p["w_l2"].shape[-1]
    Cmax = max(C0, Cin, Cout)
    HW = H * W
    LPAD = RPAD = LANE
    assert W + 1 <= LPAD, "halo reads must land inside the zeroed bands"
    Wflat = LPAD + HW + RPAD

    bf16, f32 = jnp.bfloat16, jnp.float32

    def taps_oi(w):  # HWIO (3,3,I,O) -> (9, O, I): per-tap, MXU-ready layout
        kh, kw, ci, co = w.shape
        return jnp.transpose(w, (0, 1, 3, 2)).reshape(kh * kw, co, ci)

    # Weights: bf16 operands, per-tap (Cout, Cin).  The 1x1 shortcut is folded
    # into block-conv1: rows [Cout:2Cout) of the CENTER tap carry w_sc.T,
    # zeros elsewhere, so one accumulated matmul yields conv1 + residual.
    wf = taps_oi(p["w_first"]).astype(bf16)                        # (9, Cin,    C0)
    wb1sc = jnp.concatenate(
        [taps_oi(p["w_b1"]),
         jnp.zeros((9, Cout, Cin), f32).at[4].set(p["w_sc"][0, 0].T)],
        axis=1).astype(bf16)                                       # (9, 2*Cout, Cin)
    wb2 = taps_oi(p["w_b2"]).astype(bf16)                          # (9, Cout,  Cout)
    wl1 = taps_oi(p["w_l1"]).astype(bf16)                          # (9, Cout,  Cout)
    wl2 = taps_oi(p["w_l2"]).astype(bf16)                          # (9, Cf,    Cout)
    bf_ = p["b_first"].reshape(Cin, 1).astype(f32)
    bl1 = p["b_l1"].reshape(Cout, 1).astype(f32)
    bl2 = p["b_l2"].reshape(Cf, 1).astype(f32)
    alphas = jnp.stack([p["a_first"], p["a_block"]]).reshape(1, 2).astype(f32)

    # NCHW consumed directly: (N, C, H, W) -> (N, C, H*W) is a free reshape
    # (no HBM transpose pass for the input).
    x_flat = x_nchw.reshape(N, C0, HW).astype(f32)

    def kernel(x_ref, wf_ref, bf_ref, wb1sc_ref, wb2_ref, wl1_ref, bl1_ref,
               wl2_ref, bl2_ref, alpha_ref, o_ref, pad_ref):
        a_first = alpha_ref[0, 0]
        a_block = alpha_ref[0, 1]

        # Zero only the two 128-lane halo bands (top/bottom padding rows land
        # there); interior lanes are fully rewritten by every stage.  Done
        # every grid step so it is megacore-safe.
        pad_ref[:, 0:LPAD] = jnp.zeros((Cmax, LPAD), bf16)
        pad_ref[:, LPAD + HW:Wflat] = jnp.zeros((Cmax, RPAD), bf16)

        # Lane masks killing the horizontal wrap-around of the flat layout
        # (a tap reading x-1 is invalid at x==0; x+1 invalid at x==W-1).
        col = lax.broadcasted_iota(jnp.int32, (1, HW), 1) % W
        mask_l = (col != 0).astype(bf16)          # hoisted, reused by all convs
        mask_r = (col != (W - 1)).astype(bf16)

        def put(act, c):
            # Store a (c, HW) f32 activation into the lane-aligned interior
            # (single bf16 cast per stage, no (HW, 9C) casts anywhere).
            pad_ref[:c, LPAD:LPAD + HW] = act.astype(bf16)

        def conv3x3(w_ref, cin, cout):
            # 9 shifted (cout, cin) @ (cin, HW) bf16 dots, f32 accumulation.
            # No im2col concat, no full-scratch load: each tap is a ref slice.
            acc = jnp.zeros((cout, HW), f32)
            for ky in range(3):
                for kx in range(3):
                    start = LPAD + (ky - 1) * W + (kx - 1)
                    tap = pad_ref[:cin, start:start + HW]
                    if kx == 0:
                        tap = tap * mask_l
                    elif kx == 2:
                        tap = tap * mask_r
                    acc = acc + jnp.dot(w_ref[3 * ky + kx], tap,
                                        preferred_element_type=f32)
            return acc

        # ---- conv_first: 3x3 conv + bias, PReLU ----------------------------
        put(x_ref[0], C0)
        y = conv3x3(wf_ref, C0, Cin) + bf_ref[...]
        y = jnp.where(y > 0, y, a_first * y)
        put(y, Cin)

        # ---- ResNetBasicBlock: conv1 (+fused 1x1 shortcut), PReLU, conv2 ---
        r = conv3x3(wb1sc_ref, Cin, 2 * Cout)     # one matmul: conv1 & residual
        res = r[Cout:]
        z = r[:Cout]
        z = jnp.where(z > 0, z, a_block * z)
        put(z, Cout)
        z = conv3x3(wb2_ref, Cout, Cout) + res    # conv2 + residual add
        put(z, Cout)

        # ---- conv_last ------------------------------------------------------
        z = conv3x3(wl1_ref, Cout, Cout) + bl1_ref[...]
        put(z, Cout)
        z = conv3x3(wl2_ref, Cout, Cf) + bl2_ref[...]
        o_ref[0] = z                              # (Cf, HW): lane-dense store

    def full_spec(shape):
        return pl.BlockSpec(shape, lambda n, _s=shape: tuple(0 for _ in _s))

    out = pl.pallas_call(
        kernel,
        out_shape=jax.ShapeDtypeStruct((N, Cf, HW), f32),
        grid=(N,),
        in_specs=[
            pl.BlockSpec((1, C0, HW), lambda n: (n, 0, 0)),
            full_spec(wf.shape), full_spec(bf_.shape), full_spec(wb1sc.shape),
            full_spec(wb2.shape), full_spec(wl1.shape), full_spec(bl1.shape),
            full_spec(wl2.shape), full_spec(bl2.shape),
            pl.BlockSpec(memory_space=pltpu.MemorySpace.SMEM),
        ],
        out_specs=pl.BlockSpec((1, Cf, HW), lambda n: (n, 0, 0)),
        scratch_shapes=[pltpu.VMEM((Cmax, Wflat), bf16)],   # padded activation
        compiler_params=pltpu.CompilerParams(
            dimension_semantics=("parallel",),     # shard batch over v7x's 2 TCs
            vmem_limit_bytes=32 * 1024 * 1024),
        # TODO(synk): for large H*W, add a row-band grid axis (1-row halo) so the
        # scratch fits v7x's 64 MiB VMEM and each core gets >=2 pipelined steps.
    )(x_flat, wf, bf_, wb1sc, wb2, wl1, bl1, wl2, bl2, alphas)

    return out.reshape(N, Cf, H, W)


def init_params(key, C0, Cin, Cout, Cf):
    """Deterministic synthetic parameters matching the PyTorch module shapes."""
    ks = jax.random.split(key, 10)

    def uw(k, shape, fan_in):
        bound = 1.0 / (fan_in ** 0.5)
        return jax.random.uniform(k, shape, jnp.float32, -bound, bound)

    p = {}
    # conv_first: Conv2d(C0 -> Cin, 3x3, bias=True) + PReLU (init 0.25)
    p["w_first"] = uw(ks[0], (3, 3, C0, Cin), 9 * C0)
    p["b_first"] = uw(ks[1], (Cin,), 9 * C0)
    p["a_first"] = jnp.float32(0.25)
    # ResNetBasicBlock: 1x1 shortcut (bias=False), conv3x3 -> PReLU -> conv3x3 (bias=False)
    p["w_sc"] = uw(ks[2], (1, 1, Cin, Cout), Cin)
    p["w_b1"] = uw(ks[3], (3, 3, Cin, Cout), 9 * Cin)
    p["a_block"] = jnp.float32(0.25)
    p["w_b2"] = uw(ks[4], (3, 3, Cout, Cout), 9 * Cout)
    # conv_last: Conv2d(Cout->Cout, 3x3, bias=True) -> Conv2d(Cout->Cf, 3x3, bias=True)
    p["w_l1"] = uw(ks[5], (3, 3, Cout, Cout), 9 * Cout)
    p["b_l1"] = uw(ks[6], (Cout,), 9 * Cout)
    p["w_l2"] = uw(ks[7], (3, 3, Cout, Cf), 9 * Cout)
    p["b_l2"] = uw(ks[8], (Cf,), 9 * Cout)
    return p


def resnet_layer_reference(x_nchw, p):
    """Pure-JAX f32 reference (lax.conv) for correctness checking."""
    dn = ("NHWC", "HWIO", "NHWC")

    def conv(x, w, b=None):
        y = lax.conv_general_dilated(x, w, (1, 1), "SAME", dimension_numbers=dn)
        return y if b is None else y + b

    def prelu(x, a):
        return jnp.where(x > 0, x, a * x)

    x = jnp.transpose(x_nchw, (0, 2, 3, 1)).astype(jnp.float32)
    x = prelu(conv(x, p["w_first"], p["b_first"]), p["a_first"])
    res = conv(x, p["w_sc"])
    y = prelu(conv(x, p["w_b1"]), p["a_block"])
    y = conv(y, p["w_b2"]) + res
    z = conv(y, p["w_l1"], p["b_l1"])
    z = conv(z, p["w_l2"], p["b_l2"])
    return jnp.transpose(z, (0, 3, 1, 2))


if __name__ == "__main__":
    # ResNetLayer(Initial_channels=4, in_channels=8, out_channels=16, final_channels=4, n=1)
    N, C0, H, W = 2, 4, 16, 16
    Cin, Cout, Cf = 8, 16, 4

    key = jax.random.PRNGKey(0)
    kx, kp = jax.random.split(key)
    x = jax.random.normal(kx, (N, C0, H, W), jnp.float32)  # NCHW, like PyTorch
    params = init_params(kp, C0, Cin, Cout, Cf)

    out = jax.block_until_ready(resnet_layer_forward(x, params))
    ref = jax.block_until_ready(resnet_layer_reference(x, params))

    assert out.shape == (N, Cf, H, W), out.shape
    max_err = float(jnp.max(jnp.abs(out - ref)))
    # bf16 matmul operands (f32 accumulation) => loosened tolerance vs f32 reference.
    assert jnp.allclose(out, ref, atol=2e-2, rtol=2e-2), max_err

    print("KERNEL_OK")
</pallas_src>

<mosaic_0001>
module attributes {stable_mosaic.version = 11 : i64} {
  func.func @kernel(%arg0: i32, %arg1: memref<1x4x256xf32, #tpu.memory_space<vmem>>, %arg2: memref<9x8x4xbf16, #tpu.memory_space<vmem>>, %arg3: memref<8x1xf32, #tpu.memory_space<vmem>>, %arg4: memref<9x32x8xbf16, #tpu.memory_space<vmem>>, %arg5: memref<9x16x16xbf16, #tpu.memory_space<vmem>>, %arg6: memref<9x16x16xbf16, #tpu.memory_space<vmem>>, %arg7: memref<16x1xf32, #tpu.memory_space<vmem>>, %arg8: memref<9x4x16xbf16, #tpu.memory_space<vmem>>, %arg9: memref<4x1xf32, #tpu.memory_space<vmem>>, %arg10: memref<1x2xf32, #tpu.memory_space<smem>>, %arg11: memref<1x4x256xf32, #tpu.memory_space<vmem>>, %arg12: memref<16x512xbf16, #tpu.memory_space<vmem>>) attributes {dimension_semantics = [#tpu.dimension_semantics<parallel>], iteration_bounds = array<i64: 2>, scalar_prefetch = 0 : i64, scratch_operands = 1 : i64, tpu.core_type = #tpu.core_type<tc>, window_params = [{transform_indices = @transform_0, window_bounds = array<i64: 1, 4, 256>}, {pipeline_mode = #tpu.pipeline_mode<synchronous>, transform_indices = @transform_1, window_bounds = array<i64: 9, 8, 4>}, {pipeline_mode = #tpu.pipeline_mode<synchronous>, transform_indices = @transform_2, window_bounds = array<i64: 8, 1>}, {pipeline_mode = #tpu.pipeline_mode<synchronous>, transform_indices = @transform_3, window_bounds = array<i64: 9, 32, 8>}, {pipeline_mode = #tpu.pipeline_mode<synchronous>, transform_indices = @transform_4, window_bounds = array<i64: 9, 16, 16>}, {pipeline_mode = #tpu.pipeline_mode<synchronous>, transform_indices = @transform_5, window_bounds = array<i64: 9, 16, 16>}, {pipeline_mode = #tpu.pipeline_mode<synchronous>, transform_indices = @transform_6, window_bounds = array<i64: 16, 1>}, {pipeline_mode = #tpu.pipeline_mode<synchronous>, transform_indices = @transform_7, window_bounds = array<i64: 9, 4, 16>}, {pipeline_mode = #tpu.pipeline_mode<synchronous>, transform_indices = @transform_8, window_bounds = array<i64: 4, 1>}, {transform_indices = @transform_9, window_bounds = array<i64: 1, 2>}, {transform_indices = @transform_10, window_bounds = array<i64: 1, 4, 256>}]} {
    %c0 = arith.constant 0 : index
    %c0_0 = arith.constant 0 : index
    %0 = memref.load %arg10[%c0, %c0_0] : memref<1x2xf32, #tpu.memory_space<smem>>
    %c0_1 = arith.constant 0 : index
    %c1 = arith.constant 1 : index
    %1 = memref.load %arg10[%c0_1, %c1] : memref<1x2xf32, #tpu.memory_space<smem>>
    %cst = arith.constant 0.000000e+00 : bf16
    %2 = vector.broadcast %cst : bf16 to vector<16x128xbf16>
    %c0_2 = arith.constant 0 : index
    %c0_3 = arith.constant 0 : index
    %3 = vector.load %arg12[%c0_2, %c0_3] : memref<16x512xbf16, #tpu.memory_space<vmem>>, vector<16x128xbf16>
    tpu.vector_store %arg12[%c0_2, %c0_3], %2 {strides = array<i32>} : memref<16x512xbf16, #tpu.memory_space<vmem>>, vector<16x128xbf16>,
    %cst_4 = arith.constant 0.000000e+00 : bf16
    %4 = vector.broadcast %cst_4 : bf16 to vector<16x128xbf16>
    %c0_5 = arith.constant 0 : index
    %c384 = arith.constant 384 : index
    %5 = vector.load %arg12[%c0_5, %c384] : memref<16x512xbf16, #tpu.memory_space<vmem>>, vector<16x128xbf16>
    tpu.vector_store %arg12[%c0_5, %c384], %4 {strides = array<i32>} : memref<16x512xbf16, #tpu.memory_space<vmem>>, vector<16x128xbf16>,
    %6 = tpu.iota {dimensions = array<i32: 1>} : vector<1x256xi32>
    %c16_i32 = arith.constant 16 : i32
    %c0_i32 = arith.constant 0 : i32
    %7 = arith.cmpi eq, %c16_i32, %c0_i32 : i32
    %c1_i32 = arith.constant 1 : i32
    %8 = arith.select %7, %c1_i32, %c16_i32 : i32
    %9 = vector.broadcast %8 : i32 to vector<1x256xi32>
    %10 = arith.remsi %6, %9 : vector<1x256xi32>
    %c0_i32_6 = arith.constant 0 : i32
    %11 = vector.broadcast %c0_i32_6 : i32 to vector<1x256xi32>
    %12 = arith.cmpi ne, %10, %11 : vector<1x256xi32>
    %c0_i32_7 = arith.constant 0 : i32
    %13 = vector.broadcast %c0_i32_7 : i32 to vector<1x256xi32>
    %14 = arith.cmpi slt, %10, %13 : vector<1x256xi32>
    %c0_i32_8 = arith.constant 0 : i32
    %15 = arith.cmpi slt, %8, %c0_i32_8 : i32
    %16 = vector.broadcast %15 : i1 to vector<1x256xi1>
    %17 = vector.broadcast %16 : vector<1x256xi1> to vector<1x256xi1>
    %18 = arith.xori %14, %17 : vector<1x256xi1>
    %19 = arith.andi %18, %12 : vector<1x256xi1>
    %20 = vector.broadcast %8 : i32 to vector<1x256xi32>
    %21 = arith.addi %10, %20 : vector<1x256xi32>
    %22 = arith.select %19, %21, %10 : vector<1x256xi1>, vector<1x256xi32>
    %c0_i32_9 = arith.constant 0 : i32
    %23 = vector.broadcast %c0_i32_9 : i32 to vector<1x256xi32>
    %24 = arith.cmpi ne, %22, %23 : vector<1x256xi32>
    %25 = arith.extui %24 : vector<1x256xi1> to vector<1x256xi32>
    %26 = arith.sitofp %25 : vector<1x256xi32> to vector<1x256xf32>
    %27 = arith.truncf %26 : vector<1x256xf32> to vector<1x256xbf16>
    %c15_i32 = arith.constant 15 : i32
    %28 = vector.broadcast %c15_i32 : i32 to vector<1x256xi32>
    %29 = arith.cmpi ne, %22, %28 : vector<1x256xi32>
    %30 = arith.extui %29 : vector<1x256xi1> to vector<1x256xi32>
    %31 = arith.sitofp %30 : vector<1x256xi32> to vector<1x256xf32>
    %32 = arith.truncf %31 : vector<1x256xf32> to vector<1x256xbf16>
    %c0_10 = arith.constant 0 : index
    %c0_11 = arith.constant 0 : index
    %c0_12 = arith.constant 0 : index
    %33 = vector.load %arg1[%c0_10, %c0_11, %c0_12] : memref<1x4x256xf32, #tpu.memory_space<vmem>>, vector<1x4x256xf32>
    %34 = vector.shape_cast %33 : vector<1x4x256xf32> to vector<4x256xf32>
    %35 = arith.truncf %34 : vector<4x256xf32> to vector<4x256xbf16>
    %c0_13 = arith.constant 0 : index
    %c128 = arith.constant 128 : index
    %36 = vector.load %arg12[%c0_13, %c128] : memref<16x512xbf16, #tpu.memory_space<vmem>>, vector<4x256xbf16>
    tpu.vector_store %arg12[%c0_13, %c128], %35 {strides = array<i32>} : memref<16x512xbf16, #tpu.memory_space<vmem>>, vector<4x256xbf16>,
    %cst_14 = arith.constant 0.000000e+00 : f32
    %37 = vector.broadcast %cst_14 : f32 to vector<8x256xf32>
    %c0_15 = arith.constant 0 : index
    %c111 = arith.constant 111 : index
    %38 = vector.load %arg12[%c0_15, %c111] : memref<16x512xbf16, #tpu.memory_space<vmem>>, vector<4x256xbf16>
    %39 = vector.broadcast %27 : vector<1x256xbf16> to vector<4x256xbf16>
    %40 = arith.mulf %38, %39 : vector<4x256xbf16>
    %c0_16 = arith.constant 0 : index
    %c0_17 = arith.constant 0 : index
    %c0_18 = arith.constant 0 : index
    %41 = vector.load %arg2[%c0_16, %c0_17, %c0_18] : memref<9x8x4xbf16, #tpu.memory_space<vmem>>, vector<1x8x4xbf16>
    %42 = vector.shape_cast %41 : vector<1x8x4xbf16> to vector<8x4xbf16>
    %cst_19 = arith.constant dense<0.000000e+00> : vector<8x256xf32>
    %43 = tpu.matmul %42, %40, %cst_19 {dimension_numbers = #tpu.dot_dimension_numbers<[1], [0], [0], [1], [0, 0, 1, 1], [], []>} : vector<8x4xbf16>, vector<4x256xbf16>, vector<8x256xf32> -> vector<8x256xf32>
    %44 = arith.addf %37, %43 : vector<8x256xf32>
    %c0_20 = arith.constant 0 : index
    %c112 = arith.constant 112 : index
    %45 = vector.load %arg12[%c0_20, %c112] : memref<16x512xbf16, #tpu.memory_space<vmem>>, vector<4x256xbf16>
    %c1_21 = arith.constant 1 : index
    %c0_22 = arith.constant 0 : index
    %c0_23 = arith.constant 0 : index
    %46 = vector.load %arg2[%c1_21, %c0_22, %c0_23] : memref<9x8x4xbf16, #tpu.memory_space<vmem>>, vector<1x8x4xbf16>
    %47 = vector.shape_cast %46 : vector<1x8x4xbf16> to vector<8x4xbf16>
    %cst_24 = arith.constant dense<0.000000e+00> : vector<8x256xf32>
    %48 = tpu.matmul %47, %45, %cst_24 {dimension_numbers = #tpu.dot_dimension_numbers<[1], [0], [0], [1], [0, 0, 1, 1], [], []>} : vector<8x4xbf16>, vector<4x256xbf16>, vector<8x256xf32> -> vector<8x256xf32>
    %49 = arith.addf %44, %48 : vector<8x256xf32>
    %c0_25 = arith.constant 0 : index
    %c113 = arith.constant 113 : index
    %50 = vector.load %arg12[%c0_25, %c113] : memref<16x512xbf16, #tpu.memory_space<vmem>>, vector<4x256xbf16>
    %51 = vector.broadcast %32 : vector<1x256xbf16> to vector<4x256xbf16>
    %52 = arith.mulf %50, %51 : vector<4x256xbf16>
    %c2 = arith.constant 2 : index
    %c0_26 = arith.constant 0 : index
    %c0_27 = arith.constant 0 : index
    %53 = vector.load %arg2[%c2, %c0_26, %c0_27] : memref<9x8x4xbf16, #tpu.memory_space<vmem>>, vector<1x8x4xbf16>
    %54 = vector.shape_cast %53 : vector<1x8x4xbf16> to vector<8x4xbf16>
    %cst_28 = arith.constant dense<0.000000e+00> : vector<8x256xf32>
    %55 = tpu.matmul %54, %52, %cst_28 {dimension_numbers = #tpu.dot_dimension_numbers<[1], [0], [0], [1], [0, 0, 1, 1], [], []>} : vector<8x4xbf16>, vector<4x256xbf16>, vector<8x256xf32> -> vector<8x256xf32>
    %56 = arith.addf %49, %55 : vector<8x256xf32>
    %c0_29 = arith.constant 0 : index
    %c127 = arith.constant 127 : index
    %57 = vector.load %arg12[%c0_29, %c127] : memref<16x512xbf16, #tpu.memory_space<vmem>>, vector<4x256xbf16>
    %58 = vector.broadcast %27 : vector<1x256xbf16> to vector<4x256xbf16>
    %59 = arith.mulf %57, %58 : vector<4x256xbf16>
    %c3 = arith.constant 3 : index
    %c0_30 = arith.constant 0 : index
    %c0_31 = arith.constant 0 : index
    %60 = vector.load %arg2[%c3, %c0_30, %c0_31] : memref<9x8x4xbf16, #tpu.memory_space<vmem>>, vector<1x8x4xbf16>
    %61 = vector.shape_cast %60 : vector<1x8x4xbf16> to vector<8x4xbf16>
    %cst_32 = arith.constant dense<0.000000e+00> : vector<8x256xf32>
    %62 = tpu.matmul %61, %59, %cst_32 {dimension_numbers = #tpu.dot_dimension_numbers<[1], [0], [0], [1], [0, 0, 1, 1], [], []>} : vector<8x4xbf16>, vector<4x256xbf16>, vector<8x256xf32> -> vector<8x256xf32>
    %63 = arith.addf %56, %62 : vector<8x256xf32>
    %c0_33 = arith.constant 0 : index
    %c128_34 = arith.constant 128 : index
    %64 = vector.load %arg12[%c0_33, %c128_34] : memref<16x512xbf16, #tpu.memory_space<vmem>>, vector<4x256xbf16>
    %c4 = arith.constant 4 : index
    %c0_35 = arith.constant 0 : index
    %c0_36 = arith.constant 0 : index
    %65 = vector.load %arg2[%c4, %c0_35, %c0_36] : memref<9x8x4xbf16, #tpu.memory_space<vmem>>, vector<1x8x4xbf16>
    %66 = vector.shape_cast %65 : vector<1x8x4xbf16> to vector<8x4xbf16>
    %cst_37 = arith.constant dense<0.000000e+00> : vector<8x256xf32>
    %67 = tpu.matmul %66, %64, %cst_37 {dimension_numbers = #tpu.dot_dimension_numbers<[1], [0], [0], [1], [0, 0, 1, 1], [], []>} : vector<8x4xbf16>, vector<4x256xbf16>, vector<8x256xf32> -> vector<8x256xf32>
    %68 = arith.addf %63, %67 : vector<8x256xf32>
    %c0_38 = arith.constant 0 : index
    %c129 = arith.constant 129 : index
    %69 = vector.load %arg12[%c0_38, %c129] : memref<16x512xbf16, #tpu.memory_space<vmem>>, vector<4x256xbf16>
    %70 = vector.broadcast %32 : vector<1x256xbf16> to vector<4x256xbf16>
    %71 = arith.mulf %69, %70 : vector<4x256xbf16>
    %c5 = arith.constant 5 : index
    %c0_39 = arith.constant 0 : index
    %c0_40 = arith.constant 0 : index
    %72 = vector.load %arg2[%c5, %c0_39, %c0_40] : memref<9x8x4xbf16, #tpu.memory_space<vmem>>, vector<1x8x4xbf16>
    %73 = vector.shape_cast %72 : vector<1x8x4xbf16> to vector<8x4xbf16>
    %cst_41 = arith.constant dense<0.000000e+00> : vector<8x256xf32>
    %74 = tpu.matmul %73, %71, %cst_41 {dimension_numbers = #tpu.dot_dimension_numbers<[1], [0], [0], [1], [0, 0, 1, 1], [], []>} : vector<8x4xbf16>, vector<4x256xbf16>, vector<8x256xf32> -> vector<8x256xf32>
    %75 = arith.addf %68, %74 : vector<8x256xf32>
    %c0_42 = arith.constant 0 : index
    %c143 = arith.constant 143 : index
    %76 = vector.load %arg12[%c0_42, %c143] : memref<16x512xbf16, #tpu.memory_space<vmem>>, vector<4x256xbf16>
    %77 = vector.broadcast %27 : vector<1x256xbf16> to vector<4x256xbf16>
    %78 = arith.mulf %76, %77 : vector<4x256xbf16>
    %c6 = arith.constant 6 : index
    %c0_43 = arith.constant 0 : index
    %c0_44 = arith.constant 0 : index
    %79 = vector.load %arg2[%c6, %c0_43, %c0_44] : memref<9x8x4xbf16, #tpu.memory_space<vmem>>, vector<1x8x4xbf16>
    %80 = vector.shape_cast %79 : vector<1x8x4xbf16> to vector<8x4xbf16>
    %cst_45 = arith.constant dense<0.000000e+00> : vector<8x256xf32>
    %81 = tpu.matmul %80, %78, %cst_45 {dimension_numbers = #tpu.dot_dimension_numbers<[1], [0], [0], [1], [0, 0, 1, 1], [], []>} : vector<8x4xbf16>, vector<4x256xbf16>, vector<8x256xf32> -> vector<8x256xf32>
    %82 = arith.addf %75, %81 : vector<8x256xf32>
    %c0_46 = arith.constant 0 : index
    %c144 = arith.constant 144 : index
    %83 = vector.load %arg12[%c0_46, %c144] : memref<16x512xbf16, #tpu.memory_space<vmem>>, vector<4x256xbf16>
    %c7 = arith.constant 7 : index
    %c0_47 = arith.constant 0 : index
    %c0_48 = arith.constant 0 : index
    %84 = vector.load %arg2[%c7, %c0_47, %c0_48] : memref<9x8x4xbf16, #tpu.memory_space<vmem>>, vector<1x8x4xbf16>
    %85 = vector.shape_cast %84 : vector<1x8x4xbf16> to vector<8x4xbf16>
    %cst_49 = arith.constant dense<0.000000e+00> : vector<8x256xf32>
    %86 = tpu.matmul %85, %83, %cst_49 {dimension_numbers = #tpu.dot_dimension_numbers<[1], [0], [0], [1], [0, 0, 1, 1], [], []>} : vector<8x4xbf16>, vector<4x256xbf16>, vector<8x256xf32> -> vector<8x256xf32>
    %87 = arith.addf %82, %86 : vector<8x256xf32>
    %c0_50 = arith.constant 0 : index
    %c145 = arith.constant 145 : index
    %88 = vector.load %arg12[%c0_50, %c145] : memref<16x512xbf16, #tpu.memory_space<vmem>>, vector<4x256xbf16>
    %89 = vector.broadcast %32 : vector<1x256xbf16> to vector<4x256xbf16>
    %90 = arith.mulf %88, %89 : vector<4x256xbf16>
    %c8 = arith.constant 8 : index
    %c0_51 = arith.constant 0 : index
    %c0_52 = arith.constant 0 : index
    %91 = vector.load %arg2[%c8, %c0_51, %c0_52] : memref<9x8x4xbf16, #tpu.memory_space<vmem>>, vector<1x8x4xbf16>
    %92 = vector.shape_cast %91 : vector<1x8x4xbf16> to vector<8x4xbf16>
    %cst_53 = arith.constant dense<0.000000e+00> : vector<8x256xf32>
    %93 = tpu.matmul %92, %90, %cst_53 {dimension_numbers = #tpu.dot_dimension_numbers<[1], [0], [0], [1], [0, 0, 1, 1], [], []>} : vector<8x4xbf16>, vector<4x256xbf16>, vector<8x256xf32> -> vector<8x256xf32>
    %94 = arith.addf %87, %93 : vector<8x256xf32>
    %c0_54 = arith.constant 0 : index
    %c0_55 = arith.constant 0 : index
    %95 = vector.load %arg3[%c0_54, %c0_55] : memref<8x1xf32, #tpu.memory_space<vmem>>, vector<8x1xf32>
    %96 = vector.broadcast %95 : vector<8x1xf32> to vector<8x256xf32>
    %97 = arith.addf %94, %96 : vector<8x256xf32>
    %cst_56 = arith.constant 0.000000e+00 : f32
    %98 = vector.broadcast %cst_56 : f32 to vector<8x256xf32>
    %99 = arith.cmpf ogt, %97, %98 : vector<8x256xf32>
    %100 = vector.broadcast %0 : f32 to vector<8x256xf32>
    %101 = arith.mulf %100, %97 : vector<8x256xf32>
    %102 = arith.select %99, %97, %101 : vector<8x256xi1>, vector<8x256xf32>
    %103 = arith.truncf %102 : vector<8x256xf32> to vector<8x256xbf16>
    %c0_57 = arith.constant 0 : index
    %c128_58 = arith.constant 128 : index
    %104 = vector.load %arg12[%c0_57, %c128_58] : memref<16x512xbf16, #tpu.memory_space<vmem>>, vector<8x256xbf16>
    tpu.vector_store %arg12[%c0_57, %c128_58], %103 {strides = array<i32>} : memref<16x512xbf16, #tpu.memory_space<vmem>>, vector<8x256xbf16>,
    %cst_59 = arith.constant 0.000000e+00 : f32
    %105 = vector.broadcast %cst_59 : f32 to vector<32x256xf32>
    %c0_60 = arith.constant 0 : index
    %c111_61 = arith.constant 111 : index
    %106 = vector.load %arg12[%c0_60, %c111_61] : memref<16x512xbf16, #tpu.memory_space<vmem>>, vector<8x256xbf16>
    %107 = vector.broadcast %27 : vector<1x256xbf16> to vector<8x256xbf16>
    %108 = arith.mulf %106, %107 : vector<8x256xbf16>
    %c0_62 = arith.constant 0 : index
    %c0_63 = arith.constant 0 : index
    %c0_64 = arith.constant 0 : index
    %109 = vector.load %arg4[%c0_62, %c0_63, %c0_64] : memref<9x32x8xbf16, #tpu.memory_space<vmem>>, vector<1x32x8xbf16>
    %110 = vector.shape_cast %109 : vector<1x32x8xbf16> to vector<32x8xbf16>
    %cst_65 = arith.constant dense<0.000000e+00> : vector<32x256xf32>
    %111 = tpu.matmul %110, %108, %cst_65 {dimension_numbers = #tpu.dot_dimension_numbers<[1], [0], [0], [1], [0, 0, 1, 1], [], []>} : vector<32x8xbf16>, vector<8x256xbf16>, vector<32x256xf32> -> vector<32x256xf32>
    %112 = arith.addf %105, %111 : vector<32x256xf32>
    %c0_66 = arith.constant 0 : index
    %c112_67 = arith.constant 112 : index
    %113 = vector.load %arg12[%c0_66, %c112_67] : memref<16x512xbf16, #tpu.memory_space<vmem>>, vector<8x256xbf16>
    %c1_68 = arith.constant 1 : index
    %c0_69 = arith.constant 0 : index
    %c0_70 = arith.constant 0 : index
    %114 = vector.load %arg4[%c1_68, %c0_69, %c0_70] : memref<9x32x8xbf16, #tpu.memory_space<vmem>>, vector<1x32x8xbf16>
    %115 = vector.shape_cast %114 : vector<1x32x8xbf16> to vector<32x8xbf16>
    %cst_71 = arith.constant dense<0.000000e+00> : vector<32x256xf32>
    %116 = tpu.matmul %115, %113, %cst_71 {dimension_numbers = #tpu.dot_dimension_numbers<[1], [0], [0], [1], [0, 0, 1, 1], [], []>} : vector<32x8xbf16>, vector<8x256xbf16>, vector<32x256xf32> -> vector<32x256xf32>
    %117 = arith.addf %112, %116 : vector<32x256xf32>
    %c0_72 = arith.constant 0 : index
    %c113_73 = arith.constant 113 : index
    %118 = vector.load %arg12[%c0_72, %c113_73] : memref<16x512xbf16, #tpu.memory_space<vmem>>, vector<8x256xbf16>
    %119 = vector.broadcast %32 : vector<1x256xbf16> to vector<8x256xbf16>
    %120 = arith.mulf %118, %119 : vector<8x256xbf16>
    %c2_74 = arith.constant 2 : index
    %c0_75 = arith.constant 0 : index
    %c0_76 = arith.constant 0 : index
    %121 = vector.load %arg4[%c2_74, %c0_75, %c0_76] : memref<9x32x8xbf16, #tpu.memory_space<vmem>>, vector<1x32x8xbf16>
    %122 = vector.shape_cast %121 : vector<1x32x8xbf16> to vector<32x8xbf16>
    %cst_77 = arith.constant dense<0.000000e+00> : vector<32x256xf32>
    %123 = tpu.matmul %122, %120, %cst_77 {dimension_numbers = #tpu.dot_dimension_numbers<[1], [0], [0], [1], [0, 0, 1, 1], [], []>} : vector<32x8xbf16>, vector<8x256xbf16>, vector<32x256xf32> -> vector<32x256xf32>
    %124 = arith.addf %117, %123 : vector<32x256xf32>
    %c0_78 = arith.constant 0 : index
    %c127_79 = arith.constant 127 : index
    %125 = vector.load %arg12[%c0_78, %c127_79] : memref<16x512xbf16, #tpu.memory_space<vmem>>, vector<8x256xbf16>
    %126 = vector.broadcast %27 : vector<1x256xbf16> to vector<8x256xbf16>
    %127 = arith.mulf %125, %126 : vector<8x256xbf16>
    %c3_80 = arith.constant 3 : index
    %c0_81 = arith.constant 0 : index
    %c0_82 = arith.constant 0 : index
    %128 = vector.load %arg4[%c3_80, %c0_81, %c0_82] : memref<9x32x8xbf16, #tpu.memory_space<vmem>>, vector<1x32x8xbf16>
    %129 = vector.shape_cast %128 : vector<1x32x8xbf16> to vector<32x8xbf16>
    %cst_83 = arith.constant dense<0.000000e+00> : vector<32x256xf32>
    %130 = tpu.matmul %129, %127, %cst_83 {dimension_numbers = #tpu.dot_dimension_numbers<[1], [0], [0], [1], [0, 0, 1, 1], [], []>} : vector<32x8xbf16>, vector<8x256xbf16>, vector<32x256xf32> -> vector<32x256xf32>
    %131 = arith.addf %124, %130 : vector<32x256xf32>
    %c0_84 = arith.constant 0 : index
    %c128_85 = arith.constant 128 : index
    %132 = vector.load %arg12[%c0_84, %c128_85] : memref<16x512xbf16, #tpu.memory_space<vmem>>, vector<8x256xbf16>
    %c4_86 = arith.constant 4 : index
    %c0_87 = arith.constant 0 : index
    %c0_88 = arith.constant 0 : index
    %133 = vector.load %arg4[%c4_86, %c0_87, %c0_88] : memref<9x32x8xbf16, #tpu.memory_space<vmem>>, vector<1x32x8xbf16>
    %134 = vector.shape_cast %133 : vector<1x32x8xbf16> to vector<32x8xbf16>
    %cst_89 = arith.constant dense<0.000000e+00> : vector<32x256xf32>
    %135 = tpu.matmul %134, %132, %cst_89 {dimension_numbers = #tpu.dot_dimension_numbers<[1], [0], [0], [1], [0, 0, 1, 1], [], []>} : vector<32x8xbf16>, vector<8x256xbf16>, vector<32x256xf32> -> vector<32x256xf32>
    %136 = arith.addf %131, %135 : vector<32x256xf32>
    %c0_90 = arith.constant 0 : index
    %c129_91 = arith.constant 129 : index
    %137 = vector.load %arg12[%c0_90, %c129_91] : memref<16x512xbf16, #tpu.memory_space<vmem>>, vector<8x256xbf16>
    %138 = vector.broadcast %32 : vector<1x256xbf16> to vector<8x256xbf16>
    %139 = arith.mulf %137, %138 : vector<8x256xbf16>
    %c5_92 = arith.constant 5 : index
    %c0_93 = arith.constant 0 : index
    %c0_94 = arith.constant 0 : index
    %140 = vector.load %arg4[%c5_92, %c0_93, %c0_94] : memref<9x32x8xbf16, #tpu.memory_space<vmem>>, vector<1x32x8xbf16>
    %141 = vector.shape_cast %140 : vector<1x32x8xbf16> to vector<32x8xbf16>
    %cst_95 = arith.constant dense<0.000000e+00> : vector<32x256xf32>
    %142 = tpu.matmul %141, %139, %cst_95 {dimension_numbers = #tpu.dot_dimension_numbers<[1], [0], [0], [1], [0, 0, 1, 1], [], []>} : vector<32x8xbf16>, vector<8x256xbf16>, vector<32x256xf32> -> vector<32x256xf32>
    %143 = arith.addf %136, %142 : vector<32x256xf32>
    %c0_96 = arith.constant 0 : index
    %c143_97 = arith.constant 143 : index
    %144 = vector.load %arg12[%c0_96, %c143_97] : memref<16x512xbf16, #tpu.memory_space<vmem>>, vector<8x256xbf16>
    %145 = vector.broadcast %27 : vector<1x256xbf16> to vector<8x256xbf16>
    %146 = arith.mulf %144, %145 : vector<8x256xbf16>
    %c6_98 = arith.constant 6 : index
    %c0_99 = arith.constant 0 : index
    %c0_100 = arith.constant 0 : index
    %147 = vector.load %arg4[%c6_98, %c0_99, %c0_100] : memref<9x32x8xbf16, #tpu.memory_space<vmem>>, vector<1x32x8xbf16>
    %148 = vector.shape_cast %147 : vector<1x32x8xbf16> to vector<32x8xbf16>
    %cst_101 = arith.constant dense<0.000000e+00> : vector<32x256xf32>
    %149 = tpu.matmul %148, %146, %cst_101 {dimension_numbers = #tpu.dot_dimension_numbers<[1], [0], [0], [1], [0, 0, 1, 1], [], []>} : vector<32x8xbf16>, vector<8x256xbf16>, vector<32x256xf32> -> vector<32x256xf32>
    %150 = arith.addf %143, %149 : vector<32x256xf32>
    %c0_102 = arith.constant 0 : index
    %c144_103 = arith.constant 144 : index
    %151 = vector.load %arg12[%c0_102, %c144_103] : memref<16x512xbf16, #tpu.memory_space<vmem>>, vector<8x256xbf16>
    %c7_104 = arith.constant 7 : index
    %c0_105 = arith.constant 0 : index
    %c0_106 = arith.constant 0 : index
    %152 = vector.load %arg4[%c7_104, %c0_105, %c0_106] : memref<9x32x8xbf16, #tpu.memory_space<vmem>>, vector<1x32x8xbf16>
    %153 = vector.shape_cast %152 : vector<1x32x8xbf16> to vector<32x8xbf16>
    %cst_107 = arith.constant dense<0.000000e+00> : vector<32x256xf32>
    %154 = tpu.matmul %153, %151, %cst_107 {dimension_numbers = #tpu.dot_dimension_numbers<[1], [0], [0], [1], [0, 0, 1, 1], [], []>} : vector<32x8xbf16>, vector<8x256xbf16>, vector<32x256xf32> -> vector<32x256xf32>
    %155 = arith.addf %150, %154 : vector<32x256xf32>
    %c0_108 = arith.constant 0 : index
    %c145_109 = arith.constant 145 : index
    %156 = vector.load %arg12[%c0_108, %c145_109] : memref<16x512xbf16, #tpu.memory_space<vmem>>, vector<8x256xbf16>
    %157 = vector.broadcast %32 : vector<1x256xbf16> to vector<8x256xbf16>
    %158 = arith.mulf %156, %157 : vector<8x256xbf16>
    %c8_110 = arith.constant 8 : index
    %c0_111 = arith.constant 0 : index
    %c0_112 = arith.constant 0 : index
    %159 = vector.load %arg4[%c8_110, %c0_111, %c0_112] : memref<9x32x8xbf16, #tpu.memory_space<vmem>>, vector<1x32x8xbf16>
    %160 = vector.shape_cast %159 : vector<1x32x8xbf16> to vector<32x8xbf16>
    %cst_113 = arith.constant dense<0.000000e+00> : vector<32x256xf32>
    %161 = tpu.matmul %160, %158, %cst_113 {dimension_numbers = #tpu.dot_dimension_numbers<[1], [0], [0], [1], [0, 0, 1, 1], [], []>} : vector<32x8xbf16>, vector<8x256xbf16>, vector<32x256xf32> -> vector<32x256xf32>
    %162 = arith.addf %155, %161 : vector<32x256xf32>
    %163 = vector.extract_strided_slice %162 {offsets = [16, 0], sizes = [16, 256], strides = [1, 1]} : vector<32x256xf32> to vector<16x256xf32>
    %164 = vector.extract_strided_slice %162 {offsets = [0, 0], sizes = [16, 256], strides = [1, 1]} : vector<32x256xf32> to vector<16x256xf32>
    %cst_114 = arith.constant 0.000000e+00 : f32
    %165 = vector.broadcast %cst_114 : f32 to vector<16x256xf32>
    %166 = arith.cmpf ogt, %164, %165 : vector<16x256xf32>
    %167 = vector.broadcast %1 : f32 to vector<16x256xf32>
    %168 = arith.mulf %167, %164 : vector<16x256xf32>
    %169 = arith.select %166, %164, %168 : vector<16x256xi1>, vector<16x256xf32>
    %170 = arith.truncf %169 : vector<16x256xf32> to vector<16x256xbf16>
    %c0_115 = arith.constant 0 : index
    %c128_116 = arith.constant 128 : index
    %171 = vector.load %arg12[%c0_115, %c128_116] : memref<16x512xbf16, #tpu.memory_space<vmem>>, vector<16x256xbf16>
    tpu.vector_store %arg12[%c0_115, %c128_116], %170 {strides = array<i32>} : memref<16x512xbf16, #tpu.memory_space<vmem>>, vector<16x256xbf16>,
    %cst_117 = arith.constant 0.000000e+00 : f32
    %172 = vector.broadcast %cst_117 : f32 to vector<16x256xf32>
    %c0_118 = arith.constant 0 : index
    %c111_119 = arith.constant 111 : index
    %173 = vector.load %arg12[%c0_118, %c111_119] : memref<16x512xbf16, #tpu.memory_space<vmem>>, vector<16x256xbf16>
    %174 = vector.broadcast %27 : vector<1x256xbf16> to vector<16x256xbf16>
    %175 = arith.mulf %173, %174 : vector<16x256xbf16>
    %c0_120 = arith.constant 0 : index
    %c0_121 = arith.constant 0 : index
    %c0_122 = arith.constant 0 : index
    %176 = vector.load %arg5[%c0_120, %c0_121, %c0_122] : memref<9x16x16xbf16, #tpu.memory_space<vmem>>, vector<1x16x16xbf16>
    %177 = vector.shape_cast %176 : vector<1x16x16xbf16> to vector<16x16xbf16>
    %cst_123 = arith.constant dense<0.000000e+00> : vector<16x256xf32>
    %178 = tpu.matmul %177, %175, %cst_123 {dimension_numbers = #tpu.dot_dimension_numbers<[1], [0], [0], [1], [0, 0, 1, 1], [], []>} : vector<16x16xbf16>, vector<16x256xbf16>, vector<16x256xf32> -> vector<16x256xf32>
    %179 = arith.addf %172, %178 : vector<16x256xf32>
    %c0_124 = arith.constant 0 : index
    %c112_125 = arith.constant 112 : index
    %180 = vector.load %arg12[%c0_124, %c112_125] : memref<16x512xbf16, #tpu.memory_space<vmem>>, vector<16x256xbf16>
    %c1_126 = arith.constant 1 : index
    %c0_127 = arith.constant 0 : index
    %c0_128 = arith.constant 0 : index
    %181 = vector.load %arg5[%c1_126, %c0_127, %c0_128] : memref<9x16x16xbf16, #tpu.memory_space<vmem>>, vector<1x16x16xbf16>
    %182 = vector.shape_cast %181 : vector<1x16x16xbf16> to vector<16x16xbf16>
    %cst_129 = arith.constant dense<0.000000e+00> : vector<16x256xf32>
    %183 = tpu.matmul %182, %180, %cst_129 {dimension_numbers = #tpu.dot_dimension_numbers<[1], [0], [0], [1], [0, 0, 1, 1], [], []>} : vector<16x16xbf16>, vector<16x256xbf16>, vector<16x256xf32> -> vector<16x256xf32>
    %184 = arith.addf %179, %183 : vector<16x256xf32>
    %c0_130 = arith.constant 0 : index
    %c113_131 = arith.constant 113 : index
    %185 = vector.load %arg12[%c0_130, %c113_131] : memref<16x512xbf16, #tpu.memory_space<vmem>>, vector<16x256xbf16>
    %186 = vector.broadcast %32 : vector<1x256xbf16> to vector<16x256xbf16>
    %187 = arith.mulf %185, %186 : vector<16x256xbf16>
    %c2_132 = arith.constant 2 : index
    %c0_133 = arith.constant 0 : index
    %c0_134 = arith.constant 0 : index
    %188 = vector.load %arg5[%c2_132, %c0_133, %c0_134] : memref<9x16x16xbf16, #tpu.memory_space<vmem>>, vector<1x16x16xbf16>
    %189 = vector.shape_cast %188 : vector<1x16x16xbf16> to vector<16x16xbf16>
    %cst_135 = arith.constant dense<0.000000e+00> : vector<16x256xf32>
    %190 = tpu.matmul %189, %187, %cst_135 {dimension_numbers = #tpu.dot_dimension_numbers<[1], [0], [0], [1], [0, 0, 1, 1], [], []>} : vector<16x16xbf16>, vector<16x256xbf16>, vector<16x256xf32> -> vector<16x256xf32>
    %191 = arith.addf %184, %190 : vector<16x256xf32>
    %c0_136 = arith.constant 0 : index
    %c127_137 = arith.constant 127 : index
    %192 = vector.load %arg12[%c0_136, %c127_137] : memref<16x512xbf16, #tpu.memory_space<vmem>>, vector<16x256xbf16>
    %193 = vector.broadcast %27 : vector<1x256xbf16> to vector<16x256xbf16>
    %194 = arith.mulf %192, %193 : vector<16x256xbf16>
    %c3_138 = arith.constant 3 : index
    %c0_139 = arith.constant 0 : index
    %c0_140 = arith.constant 0 : index
    %195 = vector.load %arg5[%c3_138, %c0_139, %c0_140] : memref<9x16x16xbf16, #tpu.memory_space<vmem>>, vector<1x16x16xbf16>
    %196 = vector.shape_cast %195 : vector<1x16x16xbf16> to vector<16x16xbf16>
    %cst_141 = arith.constant dense<0.000000e+00> : vector<16x256xf32>
    %197 = tpu.matmul %196, %194, %cst_141 {dimension_numbers = #tpu.dot_dimension_numbers<[1], [0], [0], [1], [0, 0, 1, 1], [], []>} : vector<16x16xbf16>, vector<16x256xbf16>, vector<16x256xf32> -> vector<16x256xf32>
    %198 = arith.addf %191, %197 : vector<16x256xf32>
    %c0_142 = arith.constant 0 : index
    %c128_143 = arith.constant 128 : index
    %199 = vector.load %arg12[%c0_142, %c128_143] : memref<16x512xbf16, #tpu.memory_space<vmem>>, vector<16x256xbf16>
    %c4_144 = arith.constant 4 : index
    %c0_145 = arith.constant 0 : index
    %c0_146 = arith.constant 0 : index
    %200 = vector.load %arg5[%c4_144, %c0_145, %c0_146] : memref<9x16x16xbf16, #tpu.memory_space<vmem>>, vector<1x16x16xbf16>
    %201 = vector.shape_cast %200 : vector<1x16x16xbf16> to vector<16x16xbf16>
    %cst_147 = arith.constant dense<0.000000e+00> : vector<16x256xf32>
    %202 = tpu.matmul %201, %199, %cst_147 {dimension_numbers = #tpu.dot_dimension_numbers<[1], [0], [0], [1], [0, 0, 1, 1], [], []>} : vector<16x16xbf16>, vector<16x256xbf16>, vector<16x256xf32> -> vector<16x256xf32>
    %203 = arith.addf %198, %202 : vector<16x256xf32>
    %c0_148 = arith.constant 0 : index
    %c129_149 = arith.constant 129 : index
    %204 = vector.load %arg12[%c0_148, %c129_149] : memref<16x512xbf16, #tpu.memory_space<vmem>>, vector<16x256xbf16>
    %205 = vector.broadcast %32 : vector<1x256xbf16> to vector<16x256xbf16>
    %206 = arith.mulf %204, %205 : vector<16x256xbf16>
    %c5_150 = arith.constant 5 : index
    %c0_151 = arith.constant 0 : index
    %c0_152 = arith.constant 0 : index
    %207 = vector.load %arg5[%c5_150, %c0_151, %c0_152] : memref<9x16x16xbf16, #tpu.memory_space<vmem>>, vector<1x16x16xbf16>
    %208 = vector.shape_cast %207 : vector<1x16x16xbf16> to vector<16x16xbf16>
    %cst_153 = arith.constant dense<0.000000e+00> : vector<16x256xf32>
    %209 = tpu.matmul %208, %206, %cst_153 {dimension_numbers = #tpu.dot_dimension_numbers<[1], [0], [0], [1], [0, 0, 1, 1], [], []>} : vector<16x16xbf16>, vector<16x256xbf16>, vector<16x256xf32> -> vector<16x256xf32>
    %210 = arith.addf %203, %209 : vector<16x256xf32>
    %c0_154 = arith.constant 0 : index
    %c143_155 = arith.constant 143 : index
    %211 = vector.load %arg12[%c0_154, %c143_155] : memref<16x512xbf16, #tpu.memory_space<vmem>>, vector<16x256xbf16>
    %212 = vector.broadcast %27 : vector<1x256xbf16> to vector<16x256xbf16>
    %213 = arith.mulf %211, %212 : vector<16x256xbf16>
    %c6_156 = arith.constant 6 : index
    %c0_157 = arith.constant 0 : index
    %c0_158 = arith.constant 0 : index
    %214 = vector.load %arg5[%c6_156, %c0_157, %c0_158] : memref<9x16x16xbf16, #tpu.memory_space<vmem>>, vector<1x16x16xbf16>
    %215 = vector.shape_cast %214 : vector<1x16x16xbf16> to vector<16x16xbf16>
    %cst_159 = arith.constant dense<0.000000e+00> : vector<16x256xf32>
    %216 = tpu.matmul %215, %213, %cst_159 {dimension_numbers = #tpu.dot_dimension_numbers<[1], [0], [0], [1], [0, 0, 1, 1], [], []>} : vector<16x16xbf16>, vector<16x256xbf16>, vector<16x256xf32> -> vector<16x256xf32>
    %217 = arith.addf %210, %216 : vector<16x256xf32>
    %c0_160 = arith.constant 0 : index
    %c144_161 = arith.constant 144 : index
    %218 = vector.load %arg12[%c0_160, %c144_161] : memref<16x512xbf16, #tpu.memory_space<vmem>>, vector<16x256xbf16>
    %c7_162 = arith.constant 7 : index
    %c0_163 = arith.constant 0 : index
    %c0_164 = arith.constant 0 : index
    %219 = vector.load %arg5[%c7_162, %c0_163, %c0_164] : memref<9x16x16xbf16, #tpu.memory_space<vmem>>, vector<1x16x16xbf16>
    %220 = vector.shape_cast %219 : vector<1x16x16xbf16> to vector<16x16xbf16>
    %cst_165 = arith.constant dense<0.000000e+00> : vector<16x256xf32>
    %221 = tpu.matmul %220, %218, %cst_165 {dimension_numbers = #tpu.dot_dimension_numbers<[1], [0], [0], [1], [0, 0, 1, 1], [], []>} : vector<16x16xbf16>, vector<16x256xbf16>, vector<16x256xf32> -> vector<16x256xf32>
    %222 = arith.addf %217, %221 : vector<16x256xf32>
    %c0_166 = arith.constant 0 : index
    %c145_167 = arith.constant 145 : index
    %223 = vector.load %arg12[%c0_166, %c145_167] : memref<16x512xbf16, #tpu.memory_space<vmem>>, vector<16x256xbf16>
    %224 = vector.broadcast %32 : vector<1x256xbf16> to vector<16x256xbf16>
    %225 = arith.mulf %223, %224 : vector<16x256xbf16>
    %c8_168 = arith.constant 8 : index
    %c0_169 = arith.constant 0 : index
    %c0_170 = arith.constant 0 : index
    %226 = vector.load %arg5[%c8_168, %c0_169, %c0_170] : memref<9x16x16xbf16, #tpu.memory_space<vmem>>, vector<1x16x16xbf16>
    %227 = vector.shape_cast %226 : vector<1x16x16xbf16> to vector<16x16xbf16>
    %cst_171 = arith.constant dense<0.000000e+00> : vector<16x256xf32>
    %228 = tpu.matmul %227, %225, %cst_171 {dimension_numbers = #tpu.dot_dimension_numbers<[1], [0], [0], [1], [0, 0, 1, 1], [], []>} : vector<16x16xbf16>, vector<16x256xbf16>, vector<16x256xf32> -> vector<16x256xf32>
    %229 = arith.addf %222, %228 : vector<16x256xf32>
    %230 = arith.addf %229, %163 : vector<16x256xf32>
    %231 = arith.truncf %230 : vector<16x256xf32> to vector<16x256xbf16>
    %c0_172 = arith.constant 0 : index
    %c128_173 = arith.constant 128 : index
    %232 = vector.load %arg12[%c0_172, %c128_173] : memref<16x512xbf16, #tpu.memory_space<vmem>>, vector<16x256xbf16>
    tpu.vector_store %arg12[%c0_172, %c128_173], %231 {strides = array<i32>} : memref<16x512xbf16, #tpu.memory_space<vmem>>, vector<16x256xbf16>,
    %cst_174 = arith.constant 0.000000e+00 : f32
    %233 = vector.broadcast %cst_174 : f32 to vector<16x256xf32>
    %c0_175 = arith.constant 0 : index
    %c111_176 = arith.constant 111 : index
    %234 = vector.load %arg12[%c0_175, %c111_176] : memref<16x512xbf16, #tpu.memory_space<vmem>>, vector<16x256xbf16>
    %235 = vector.broadcast %27 : vector<1x256xbf16> to vector<16x256xbf16>
    %236 = arith.mulf %234, %235 : vector<16x256xbf16>
    %c0_177 = arith.constant 0 : index
    %c0_178 = arith.constant 0 : index
    %c0_179 = arith.constant 0 : index
    %237 = vector.load %arg6[%c0_177, %c0_178, %c0_179] : memref<9x16x16xbf16, #tpu.memory_space<vmem>>, vector<1x16x16xbf16>
    %238 = vector.shape_cast %237 : vector<1x16x16xbf16> to vector<16x16xbf16>
    %cst_180 = arith.constant dense<0.000000e+00> : vector<16x256xf32>
    %239 = tpu.matmul %238, %236, %cst_180 {dimension_numbers = #tpu.dot_dimension_numbers<[1], [0], [0], [1], [0, 0, 1, 1], [], []>} : vector<16x16xbf16>, vector<16x256xbf16>, vector<16x256xf32> -> vector<16x256xf32>
    %240 = arith.addf %233, %239 : vector<16x256xf32>
    %c0_181 = arith.constant 0 : index
    %c112_182 = arith.constant 112 : index
    %241 = vector.load %arg12[%c0_181, %c112_182] : memref<16x512xbf16, #tpu.memory_space<vmem>>, vector<16x256xbf16>
    %c1_183 = arith.constant 1 : index
    %c0_184 = arith.constant 0 : index
    %c0_185 = arith.constant 0 : index
    %242 = vector.load %arg6[%c1_183, %c0_184, %c0_185] : memref<9x16x16xbf16, #tpu.memory_space<vmem>>, vector<1x16x16xbf16>
    %243 = vector.shape_cast %242 : vector<1x16x16xbf16> to vector<16x16xbf16>
    %cst_186 = arith.constant dense<0.000000e+00> : vector<16x256xf32>
    %244 = tpu.matmul %243, %241, %cst_186 {dimension_numbers = #tpu.dot_dimension_numbers<[1], [0], [0], [1], [0, 0, 1, 1], [], []>} : vector<16x16xbf16>, vector<16x256xbf16>, vector<16x256xf32> -> vector<16x256xf32>
    %245 = arith.addf %240, %244 : vector<16x256xf32>
    %c0_187 = arith.constant 0 : index
    %c113_188 = arith.constant 113 : index
    %246 = vector.load %arg12[%c0_187, %c113_188] : memref<16x512xbf16, #tpu.memory_space<vmem>>, vector<16x256xbf16>
    %247 = vector.broadcast %32 : vector<1x256xbf16> to vector<16x256xbf16>
    %248 = arith.mulf %246, %247 : vector<16x256xbf16>
    %c2_189 = arith.constant 2 : index
    %c0_190 = arith.constant 0 : index
    %c0_191 = arith.constant 0 : index
    %249 = vector.load %arg6[%c2_189, %c0_190, %c0_191] : memref<9x16x16xbf16, #tpu.memory_space<vmem>>, vector<1x16x16xbf16>
    %250 = vector.shape_cast %249 : vector<1x16x16xbf16> to vector<16x16xbf16>
    %cst_192 = arith.constant dense<0.000000e+00> : vector<16x256xf32>
    %251 = tpu.matmul %250, %248, %cst_192 {dimension_numbers = #tpu.dot_dimension_numbers<[1], [0], [0], [1], [0, 0, 1, 1], [], []>} : vector<16x16xbf16>, vector<16x256xbf16>, vector<16x256xf32> -> vector<16x256xf32>
    %252 = arith.addf %245, %251 : vector<16x256xf32>
    %c0_193 = arith.constant 0 : index
    %c127_194 = arith.constant 127 : index
    %253 = vector.load %arg12[%c0_193, %c127_194] : memref<16x512xbf16, #tpu.memory_space<vmem>>, vector<16x256xbf16>
    %254 = vector.broadcast %27 : vector<1x256xbf16> to vector<16x256xbf16>
    %255 = arith.mulf %253, %254 : vector<16x256xbf16>
    %c3_195 = arith.constant 3 : index
    %c0_196 = arith.constant 0 : index
    %c0_197 = arith.constant 0 : index
    %256 = vector.load %arg6[%c3_195, %c0_196, %c0_197] : memref<9x16x16xbf16, #tpu.memory_space<vmem>>, vector<1x16x16xbf16>
    %257 = vector.shape_cast %256 : vector<1x16x16xbf16> to vector<16x16xbf16>
    %cst_198 = arith.constant dense<0.000000e+00> : vector<16x256xf32>
    %258 = tpu.matmul %257, %255, %cst_198 {dimension_numbers = #tpu.dot_dimension_numbers<[1], [0], [0], [1], [0, 0, 1, 1], [], []>} : vector<16x16xbf16>, vector<16x256xbf16>, vector<16x256xf32> -> vector<16x256xf32>
    %259 = arith.addf %252, %258 : vector<16x256xf32>
    %c0_199 = arith.constant 0 : index
    %c128_200 = arith.constant 128 : index
    %260 = vector.load %arg12[%c0_199, %c128_200] : memref<16x512xbf16, #tpu.memory_space<vmem>>, vector<16x256xbf16>
    %c4_201 = arith.constant 4 : index
    %c0_202 = arith.constant 0 : index
    %c0_203 = arith.constant 0 : index
    %261 = vector.load %arg6[%c4_201, %c0_202, %c0_203] : memref<9x16x16xbf16, #tpu.memory_space<vmem>>, vector<1x16x16xbf16>
    %262 = vector.shape_cast %261 : vector<1x16x16xbf16> to vector<16x16xbf16>
    %cst_204 = arith.constant dense<0.000000e+00> : vector<16x256xf32>
    %263 = tpu.matmul %262, %260, %cst_204 {dimension_numbers = #tpu.dot_dimension_numbers<[1], [0], [0], [1], [0, 0, 1, 1], [], []>} : vector<16x16xbf16>, vector<16x256xbf16>, vector<16x256xf32> -> vector<16x256xf32>
    %264 = arith.addf %259, %263 : vector<16x256xf32>
    %c0_205 = arith.constant 0 : index
    %c129_206 = arith.constant 129 : index
    %265 = vector.load %arg12[%c0_205, %c129_206] : memref<16x512xbf16, #tpu.memory_space<vmem>>, vector<16x256xbf16>
    %266 = vector.broadcast %32 : vector<1x256xbf16> to vector<16x256xbf16>
    %267 = arith.mulf %265, %266 : vector<16x256xbf16>
    %c5_207 = arith.constant 5 : index
    %c0_208 = arith.constant 0 : index
    %c0_209 = arith.constant 0 : index
    %268 = vector.load %arg6[%c5_207, %c0_208, %c0_209] : memref<9x16x16xbf16, #tpu.memory_space<vmem>>, vector<1x16x16xbf16>
    %269 = vector.shape_cast %268 : vector<1x16x16xbf16> to vector<16x16xbf16>
    %cst_210 = arith.constant dense<0.000000e+00> : vector<16x256xf32>
    %270 = tpu.matmul %269, %267, %cst_210 {dimension_numbers = #tpu.dot_dimension_numbers<[1], [0], [0], [1], [0, 0, 1, 1], [], []>} : vector<16x16xbf16>, vector<16x256xbf16>, vector<16x256xf32> -> vector<16x256xf32>
    %271 = arith.addf %264, %270 : vector<16x256xf32>
    %c0_211 = arith.constant 0 : index
    %c143_212 = arith.constant 143 : index
    %272 = vector.load %arg12[%c0_211, %c143_212] : memref<16x512xbf16, #tpu.memory_space<vmem>>, vector<16x256xbf16>
    %273 = vector.broadcast %27 : vector<1x256xbf16> to vector<16x256xbf16>
    %274 = arith.mulf %272, %273 : vector<16x256xbf16>
    %c6_213 = arith.constant 6 : index
    %c0_214 = arith.constant 0 : index
    %c0_215 = arith.constant 0 : index
    %275 = vector.load %arg6[%c6_213, %c0_214, %c0_215] : memref<9x16x16xbf16, #tpu.memory_space<vmem>>, vector<1x16x16xbf16>
    %276 = vector.shape_cast %275 : vector<1x16x16xbf16> to vector<16x16xbf16>
    %cst_216 = arith.constant dense<0.000000e+00> : vector<16x256xf32>
    %277 = tpu.matmul %276, %274, %cst_216 {dimension_numbers = #tpu.dot_dimension_numbers<[1], [0], [0], [1], [0, 0, 1, 1], [], []>} : vector<16x16xbf16>, vector<16x256xbf16>, vector<16x256xf32> -> vector<16x256xf32>
    %278 = arith.addf %271, %277 : vector<16x256xf32>
    %c0_217 = arith.constant 0 : index
    %c144_218 = arith.constant 144 : index
    %279 = vector.load %arg12[%c0_217, %c144_218] : memref<16x512xbf16, #tpu.memory_space<vmem>>, vector<16x256xbf16>
    %c7_219 = arith.constant 7 : index
    %c0_220 = arith.constant 0 : index
    %c0_221 = arith.constant 0 : index
    %280 = vector.load %arg6[%c7_219, %c0_220, %c0_221] : memref<9x16x16xbf16, #tpu.memory_space<vmem>>, vector<1x16x16xbf16>
    %281 = vector.shape_cast %280 : vector<1x16x16xbf16> to vector<16x16xbf16>
    %cst_222 = arith.constant dense<0.000000e+00> : vector<16x256xf32>
    %282 = tpu.matmul %281, %279, %cst_222 {dimension_numbers = #tpu.dot_dimension_numbers<[1], [0], [0], [1], [0, 0, 1, 1], [], []>} : vector<16x16xbf16>, vector<16x256xbf16>, vector<16x256xf32> -> vector<16x256xf32>
    %283 = arith.addf %278, %282 : vector<16x256xf32>
    %c0_223 = arith.constant 0 : index
    %c145_224 = arith.constant 145 : index
    %284 = vector.load %arg12[%c0_223, %c145_224] : memref<16x512xbf16, #tpu.memory_space<vmem>>, vector<16x256xbf16>
    %285 = vector.broadcast %32 : vector<1x256xbf16> to vector<16x256xbf16>
    %286 = arith.mulf %284, %285 : vector<16x256xbf16>
    %c8_225 = arith.constant 8 : index
    %c0_226 = arith.constant 0 : index
    %c0_227 = arith.constant 0 : index
    %287 = vector.load %arg6[%c8_225, %c0_226, %c0_227] : memref<9x16x16xbf16, #tpu.memory_space<vmem>>, vector<1x16x16xbf16>
    %288 = vector.shape_cast %287 : vector<1x16x16xbf16> to vector<16x16xbf16>
    %cst_228 = arith.constant dense<0.000000e+00> : vector<16x256xf32>
    %289 = tpu.matmul %288, %286, %cst_228 {dimension_numbers = #tpu.dot_dimension_numbers<[1], [0], [0], [1], [0, 0, 1, 1], [], []>} : vector<16x16xbf16>, vector<16x256xbf16>, vector<16x256xf32> -> vector<16x256xf32>
    %290 = arith.addf %283, %289 : vector<16x256xf32>
    %c0_229 = arith.constant 0 : index
    %c0_230 = arith.constant 0 : index
    %291 = vector.load %arg7[%c0_229, %c0_230] : memref<16x1xf32, #tpu.memory_space<vmem>>, vector<16x1xf32>
    %292 = vector.broadcast %291 : vector<16x1xf32> to vector<16x256xf32>
    %293 = arith.addf %290, %292 : vector<16x256xf32>
    %294 = arith.truncf %293 : vector<16x256xf32> to vector<16x256xbf16>
    %c0_231 = arith.constant 0 : index
    %c128_232 = arith.constant 128 : index
    %295 = vector.load %arg12[%c0_231, %c128_232] : memref<16x512xbf16, #tpu.memory_space<vmem>>, vector<16x256xbf16>
    tpu.vector_store %arg12[%c0_231, %c128_232], %294 {strides = array<i32>} : memref<16x512xbf16, #tpu.memory_space<vmem>>, vector<16x256xbf16>,
    %cst_233 = arith.constant 0.000000e+00 : f32
    %296 = vector.broadcast %cst_233 : f32 to vector<4x256xf32>
    %c0_234 = arith.constant 0 : index
    %c111_235 = arith.constant 111 : index
    %297 = vector.load %arg12[%c0_234, %c111_235] : memref<16x512xbf16, #tpu.memory_space<vmem>>, vector<16x256xbf16>
    %298 = vector.broadcast %27 : vector<1x256xbf16> to vector<16x256xbf16>
    %299 = arith.mulf %297, %298 : vector<16x256xbf16>
    %c0_236 = arith.constant 0 : index
    %c0_237 = arith.constant 0 : index
    %c0_238 = arith.constant 0 : index
    %300 = vector.load %arg8[%c0_236, %c0_237, %c0_238] : memref<9x4x16xbf16, #tpu.memory_space<vmem>>, vector<1x4x16xbf16>
    %301 = vector.shape_cast %300 : vector<1x4x16xbf16> to vector<4x16xbf16>
    %cst_239 = arith.constant dense<0.000000e+00> : vector<4x256xf32>
    %302 = tpu.matmul %301, %299, %cst_239 {dimension_numbers = #tpu.dot_dimension_numbers<[1], [0], [0], [1], [0, 0, 1, 1], [], []>} : vector<4x16xbf16>, vector<16x256xbf16>, vector<4x256xf32> -> vector<4x256xf32>
    %303 = arith.addf %296, %302 : vector<4x256xf32>
    %c0_240 = arith.constant 0 : index
    %c112_241 = arith.constant 112 : index
    %304 = vector.load %arg12[%c0_240, %c112_241] : memref<16x512xbf16, #tpu.memory_space<vmem>>, vector<16x256xbf16>
    %c1_242 = arith.constant 1 : index
    %c0_243 = arith.constant 0 : index
    %c0_244 = arith.constant 0 : index
    %305 = vector.load %arg8[%c1_242, %c0_243, %c0_244] : memref<9x4x16xbf16, #tpu.memory_space<vmem>>, vector<1x4x16xbf16>
    %306 = vector.shape_cast %305 : vector<1x4x16xbf16> to vector<4x16xbf16>
    %cst_245 = arith.constant dense<0.000000e+00> : vector<4x256xf32>
    %307 = tpu.matmul %306, %304, %cst_245 {dimension_numbers = #tpu.dot_dimension_numbers<[1], [0], [0], [1], [0, 0, 1, 1], [], []>} : vector<4x16xbf16>, vector<16x256xbf16>, vector<4x256xf32> -> vector<4x256xf32>
    %308 = arith.addf %303, %307 : vector<4x256xf32>
    %c0_246 = arith.constant 0 : index
    %c113_247 = arith.constant 113 : index
    %309 = vector.load %arg12[%c0_246, %c113_247] : memref<16x512xbf16, #tpu.memory_space<vmem>>, vector<16x256xbf16>
    %310 = vector.broadcast %32 : vector<1x256xbf16> to vector<16x256xbf16>
    %311 = arith.mulf %309, %310 : vector<16x256xbf16>
    %c2_248 = arith.constant 2 : index
    %c0_249 = arith.constant 0 : index
    %c0_250 = arith.constant 0 : index
    %312 = vector.load %arg8[%c2_248, %c0_249, %c0_250] : memref<9x4x16xbf16, #tpu.memory_space<vmem>>, vector<1x4x16xbf16>
    %313 = vector.shape_cast %312 : vector<1x4x16xbf16> to vector<4x16xbf16>
    %cst_251 = arith.constant dense<0.000000e+00> : vector<4x256xf32>
    %314 = tpu.matmul %313, %311, %cst_251 {dimension_numbers = #tpu.dot_dimension_numbers<[1], [0], [0], [1], [0, 0, 1, 1], [], []>} : vector<4x16xbf16>, vector<16x256xbf16>, vector<4x256xf32> -> vector<4x256xf32>
    %315 = arith.addf %308, %314 : vector<4x256xf32>
    %c0_252 = arith.constant 0 : index
    %c127_253 = arith.constant 127 : index
    %316 = vector.load %arg12[%c0_252, %c127_253] : memref<16x512xbf16, #tpu.memory_space<vmem>>, vector<16x256xbf16>
    %317 = vector.broadcast %27 : vector<1x256xbf16> to vector<16x256xbf16>
    %318 = arith.mulf %316, %317 : vector<16x256xbf16>
    %c3_254 = arith.constant 3 : index
    %c0_255 = arith.constant 0 : index
    %c0_256 = arith.constant 0 : index
    %319 = vector.load %arg8[%c3_254, %c0_255, %c0_256] : memref<9x4x16xbf16, #tpu.memory_space<vmem>>, vector<1x4x16xbf16>
    %320 = vector.shape_cast %319 : vector<1x4x16xbf16> to vector<4x16xbf16>
    %cst_257 = arith.constant dense<0.000000e+00> : vector<4x256xf32>
    %321 = tpu.matmul %320, %318, %cst_257 {dimension_numbers = #tpu.dot_dimension_numbers<[1], [0], [0], [1], [0, 0, 1, 1], [], []>} : vector<4x16xbf16>, vector<16x256xbf16>, vector<4x256xf32> -> vector<4x256xf32>
    %322 = arith.addf %315, %321 : vector<4x256xf32>
    %c0_258 = arith.constant 0 : index
    %c128_259 = arith.constant 128 : index
    %323 = vector.load %arg12[%c0_258, %c128_259] : memref<16x512xbf16, #tpu.memory_space<vmem>>, vector<16x256xbf16>
    %c4_260 = arith.constant 4 : index
    %c0_261 = arith.constant 0 : index
    %c0_262 = arith.constant 0 : index
    %324 = vector.load %arg8[%c4_260, %c0_261, %c0_262] : memref<9x4x16xbf16, #tpu.memory_space<vmem>>, vector<1x4x16xbf16>
    %325 = vector.shape_cast %324 : vector<1x4x16xbf16> to vector<4x16xbf16>
    %cst_263 = arith.constant dense<0.000000e+00> : vector<4x256xf32>
    %326 = tpu.matmul %325, %323, %cst_263 {dimension_numbers = #tpu.dot_dimension_numbers<[1], [0], [0], [1], [0, 0, 1, 1], [], []>} : vector<4x16xbf16>, vector<16x256xbf16>, vector<4x256xf32> -> vector<4x256xf32>
    %327 = arith.addf %322, %326 : vector<4x256xf32>
    %c0_264 = arith.constant 0 : index
    %c129_265 = arith.constant 129 : index
    %328 = vector.load %arg12[%c0_264, %c129_265] : memref<16x512xbf16, #tpu.memory_space<vmem>>, vector<16x256xbf16>
    %329 = vector.broadcast %32 : vector<1x256xbf16> to vector<16x256xbf16>
    %330 = arith.mulf %328, %329 : vector<16x256xbf16>
    %c5_266 = arith.constant 5 : index
    %c0_267 = arith.constant 0 : index
    %c0_268 = arith.constant 0 : index
    %331 = vector.load %arg8[%c5_266, %c0_267, %c0_268] : memref<9x4x16xbf16, #tpu.memory_space<vmem>>, vector<1x4x16xbf16>
    %332 = vector.shape_cast %331 : vector<1x4x16xbf16> to vector<4x16xbf16>
    %cst_269 = arith.constant dense<0.000000e+00> : vector<4x256xf32>
    %333 = tpu.matmul %332, %330, %cst_269 {dimension_numbers = #tpu.dot_dimension_numbers<[1], [0], [0], [1], [0, 0, 1, 1], [], []>} : vector<4x16xbf16>, vector<16x256xbf16>, vector<4x256xf32> -> vector<4x256xf32>
    %334 = arith.addf %327, %333 : vector<4x256xf32>
    %c0_270 = arith.constant 0 : index
    %c143_271 = arith.constant 143 : index
    %335 = vector.load %arg12[%c0_270, %c143_271] : memref<16x512xbf16, #tpu.memory_space<vmem>>, vector<16x256xbf16>
    %336 = vector.broadcast %27 : vector<1x256xbf16> to vector<16x256xbf16>
    %337 = arith.mulf %335, %336 : vector<16x256xbf16>
    %c6_272 = arith.constant 6 : index
    %c0_273 = arith.constant 0 : index
    %c0_274 = arith.constant 0 : index
    %338 = vector.load %arg8[%c6_272, %c0_273, %c0_274] : memref<9x4x16xbf16, #tpu.memory_space<vmem>>, vector<1x4x16xbf16>
    %339 = vector.shape_cast %338 : vector<1x4x16xbf16> to vector<4x16xbf16>
    %cst_275 = arith.constant dense<0.000000e+00> : vector<4x256xf32>
    %340 = tpu.matmul %339, %337, %cst_275 {dimension_numbers = #tpu.dot_dimension_numbers<[1], [0], [0], [1], [0, 0, 1, 1], [], []>} : vector<4x16xbf16>, vector<16x256xbf16>, vector<4x256xf32> -> vector<4x256xf32>
    %341 = arith.addf %334, %340 : vector<4x256xf32>
    %c0_276 = arith.constant 0 : index
    %c144_277 = arith.constant 144 : index
    %342 = vector.load %arg12[%c0_276, %c144_277] : memref<16x512xbf16, #tpu.memory_space<vmem>>, vector<16x256xbf16>
    %c7_278 = arith.constant 7 : index
    %c0_279 = arith.constant 0 : index
    %c0_280 = arith.constant 0 : index
    %343 = vector.load %arg8[%c7_278, %c0_279, %c0_280] : memref<9x4x16xbf16, #tpu.memory_space<vmem>>, vector<1x4x16xbf16>
    %344 = vector.shape_cast %343 : vector<1x4x16xbf16> to vector<4x16xbf16>
    %cst_281 = arith.constant dense<0.000000e+00> : vector<4x256xf32>
    %345 = tpu.matmul %344, %342, %cst_281 {dimension_numbers = #tpu.dot_dimension_numbers<[1], [0], [0], [1], [0, 0, 1, 1], [], []>} : vector<4x16xbf16>, vector<16x256xbf16>, vector<4x256xf32> -> vector<4x256xf32>
    %346 = arith.addf %341, %345 : vector<4x256xf32>
    %c0_282 = arith.constant 0 : index
    %c145_283 = arith.constant 145 : index
    %347 = vector.load %arg12[%c0_282, %c145_283] : memref<16x512xbf16, #tpu.memory_space<vmem>>, vector<16x256xbf16>
    %348 = vector.broadcast %32 : vector<1x256xbf16> to vector<16x256xbf16>
    %349 = arith.mulf %347, %348 : vector<16x256xbf16>
    %c8_284 = arith.constant 8 : index
    %c0_285 = arith.constant 0 : index
    %c0_286 = arith.constant 0 : index
    %350 = vector.load %arg8[%c8_284, %c0_285, %c0_286] : memref<9x4x16xbf16, #tpu.memory_space<vmem>>, vector<1x4x16xbf16>
    %351 = vector.shape_cast %350 : vector<1x4x16xbf16> to vector<4x16xbf16>
    %cst_287 = arith.constant dense<0.000000e+00> : vector<4x256xf32>
    %352 = tpu.matmul %351, %349, %cst_287 {dimension_numbers = #tpu.dot_dimension_numbers<[1], [0], [0], [1], [0, 0, 1, 1], [], []>} : vector<4x16xbf16>, vector<16x256xbf16>, vector<4x256xf32> -> vector<4x256xf32>
    %353 = arith.addf %346, %352 : vector<4x256xf32>
    %c0_288 = arith.constant 0 : index
    %c0_289 = arith.constant 0 : index
    %354 = vector.load %arg9[%c0_288, %c0_289] : memref<4x1xf32, #tpu.memory_space<vmem>>, vector<4x1xf32>
    %355 = vector.broadcast %354 : vector<4x1xf32> to vector<4x256xf32>
    %356 = arith.addf %353, %355 : vector<4x256xf32>
    %c0_290 = arith.constant 0 : index
    %c0_291 = arith.constant 0 : index
    %c0_292 = arith.constant 0 : index
    %357 = vector.load %arg11[%c0_290, %c0_291, %c0_292] : memref<1x4x256xf32, #tpu.memory_space<vmem>>, vector<1x4x256xf32>
    %358 = vector.shape_cast %357 : vector<1x4x256xf32> to vector<4x256xf32>
    %359 = vector.shape_cast %356 : vector<4x256xf32> to vector<1x4x256xf32>
    tpu.vector_store %arg11[%c0_290, %c0_291, %c0_292], %359 {strides = array<i32>} : memref<1x4x256xf32, #tpu.memory_space<vmem>>, vector<1x4x256xf32>,
    return
  }
  func.func @transform_0(%arg0: i32) -> (i32, i32, i32) {
    %c0_i32 = arith.constant 0 : i32
    %c0_i32_0 = arith.constant 0 : i32
    %c0_i32_1 = arith.constant 0 : i32
    return %arg0, %c0_i32, %c0_i32_0 : i32, i32, i32
  }
  func.func @transform_1(%arg0: i32) -> (i32, i32, i32) {
    %c0_i32 = arith.constant 0 : i32
    %c0_i32_0 = arith.constant 0 : i32
    %c0_i32_1 = arith.constant 0 : i32
    %c0_i32_2 = arith.constant 0 : i32
    return %c0_i32, %c0_i32_0, %c0_i32_1 : i32, i32, i32
  }
  func.func @transform_2(%arg0: i32) -> (i32, i32) {
    %c0_i32 = arith.constant 0 : i32
    %c0_i32_0 = arith.constant 0 : i32
    %c0_i32_1 = arith.constant 0 : i32
    return %c0_i32, %c0_i32_0 : i32, i32
  }
  func.func @transform_3(%arg0: i32) -> (i32, i32, i32) {
    %c0_i32 = arith.constant 0 : i32
    %c0_i32_0 = arith.constant 0 : i32
    %c0_i32_1 = arith.constant 0 : i32
    %c0_i32_2 = arith.constant 0 : i32
    return %c0_i32, %c0_i32_0, %c0_i32_1 : i32, i32, i32
  }
  func.func @transform_4(%arg0: i32) -> (i32, i32, i32) {
    %c0_i32 = arith.constant 0 : i32
    %c0_i32_0 = arith.constant 0 : i32
    %c0_i32_1 = arith.constant 0 : i32
    %c0_i32_2 = arith.constant 0 : i32
    return %c0_i32, %c0_i32_0, %c0_i32_1 : i32, i32, i32
  }
  func.func @transform_5(%arg0: i32) -> (i32, i32, i32) {
    %c0_i32 = arith.constant 0 : i32
    %c0_i32_0 = arith.constant 0 : i32
    %c0_i32_1 = arith.constant 0 : i32
    %c0_i32_2 = arith.constant 0 : i32
    return %c0_i32, %c0_i32_0, %c0_i32_1 : i32, i32, i32
  }
  func.func @transform_6(%arg0: i32) -> (i32, i32) {
    %c0_i32 = arith.constant 0 : i32
    %c0_i32_0 = arith.constant 0 : i32
    %c0_i32_1 = arith.constant 0 : i32
    return %c0_i32, %c0_i32_0 : i32, i32
  }
  func.func @transform_7(%arg0: i32) -> (i32, i32, i32) {
    %c0_i32 = arith.constant 0 : i32
    %c0_i32_0 = arith.constant 0 : i32
    %c0_i32_1 = arith.constant 0 : i32
    %c0_i32_2 = arith.constant 0 : i32
    return %c0_i32, %c0_i32_0, %c0_i32_1 : i32, i32, i32
  }
  func.func @transform_8(%arg0: i32) -> (i32, i32) {
    %c0_i32 = arith.constant 0 : i32
    %c0_i32_0 = arith.constant 0 : i32
    %c0_i32_1 = arith.constant 0 : i32
    return %c0_i32, %c0_i32_0 : i32, i32
  }
  func.func @transform_9(%arg0: i32) -> (i32, i32) {
    %c0_i32 = arith.constant 0 : i32
    %c0_i32_0 = arith.constant 0 : i32
    %c0_i32_1 = arith.constant 0 : i32
    return %c0_i32, %c0_i32_0 : i32, i32
  }
  func.func @transform_10(%arg0: i32) -> (i32, i32, i32) {
    %c0_i32 = arith.constant 0 : i32
    %c0_i32_0 = arith.constant 0 : i32
    %c0_i32_1 = arith.constant 0 : i32
    return %arg0, %c0_i32, %c0_i32_0 : i32, i32, i32
  }
}

</mosaic_0001>

<llo_original>
// kernel: tpu_custom_call.1
$region0: #{tpu_custom_call.1}
  #allocation0 [shape = 'u32[]', space=smem, size = 0x4, offset = 0x4, fixed_abs, tag = 'smem constant byte address 0x4 - core index']
  #allocation1 [shape = 'u32[144,128]{1,0:T(1,128)}', space=vmem, size = 0x12000, scoped, tag = 'internal scratch']
  #allocation2 [shape = 'bf16[16,512]{1,0:T(16,128)(2,1)}', space=vmem, size = 0x4000, scoped, tag = 'scratch operand']
  %s0 = inlined_call_operand.vmem [shape: f32[2,4,256], index: 0, kind: input, shape index: {}]
  %s1 = inlined_call_operand.vmem [shape: bf16[9,8,4], index: 1, kind: input, shape index: {}]
  %s2 = inlined_call_operand.vmem [shape: f32[8,1], index: 2, kind: input, shape index: {}]
  %s3 = inlined_call_operand.vmem [shape: bf16[9,32,8], index: 3, kind: input, shape index: {}]
  %s4 = inlined_call_operand.vmem [shape: bf16[9,16,16], index: 4, kind: input, shape index: {}]
  %s5 = inlined_call_operand.vmem [shape: bf16[9,16,16], index: 5, kind: input, shape index: {}]
  %s6 = inlined_call_operand.vmem [shape: f32[16,1], index: 6, kind: input, shape index: {}]
  %s7 = inlined_call_operand.vmem [shape: bf16[9,4,16], index: 7, kind: input, shape index: {}]
  %s8 = inlined_call_operand.vmem [shape: f32[4,1], index: 8, kind: input, shape index: {}]
  %s9 = inlined_call_operand.vmem [shape: f32[1,2], index: 9, kind: input, shape index: {}]
  %s10 = inlined_call_operand.hbm [shape: f32[2,4,256], index: 10, kind: output, shape index: {}]
  %s11 = sld [smem:[#allocation0]]
  $region77: #{tpu_custom_call.1} parent=0
    _
  %s13 = ssub.s32 1, %s11
  %s14 = scalar_select 0, %s13, %s11
  $region1: #{tpu_custom_call.1} parent=0
    #allocation3 [shape = 'u8[512]{0}', space=smem, size = 0x200, scoped, tag = 'input window, operand 9, single buffered']
    #allocation4 [shape = 's32[2]{0}', space=sflag, size = 0x8, scoped, tag = 'scoped memory for tpu_custom_call.1']
    #allocation5 [shape = 's32[2]{0}', space=sflag, size = 0x8, scoped, tag = 'scoped memory for tpu_custom_call.1']
    #allocation6 [shape = 'u8[8192]{0}', space=vmem, size = 0x2000, scoped, tag = 'output window, operand 0']
    %15 = vsyncpa [#allocation5], 0
    %16 = vsyncpa [#allocation4], 0
    %s17 = scalar_lea.sflag [#allocation4], 1
    %18 = vsyncpa %s17, 0
    loop: start=0, step=1, limit=4
    $region2: #{tpu_custom_call.1} parent=1 // loop_pre_header
      _
    $region3: #{tpu_custom_call.1} parent=1 // loop_header
      %s20 = sphi 0, %s24
      %p21 = scmp.ge.s32.totalorder %s20, 4
      %s30 = sphi 0, %s32
      %s33 = sphi 0, %s30
      %s34 = sphi 0, %s33
      %s50 = sphi 0, %s34
      %s54 = sphi 0, %s54
      %s56 = sphi 0, %s54
      %s57 = sphi 0, %s56
      %s71 = sphi 0, %s57
      %s75 = sphi 0, %s75
      %s77 = sphi 0, %s75
      %s78 = sphi 0, %s77
      %s92 = sphi 0, %s78
      %s96 = sphi 0, %s96
      %s98 = sphi 0, %s96
      %s99 = sphi 0, %s98
      %s113 = sphi 0, %s99
      %s117 = sphi 0, %s117
      %s119 = sphi 0, %s117
      %s120 = sphi 0, %s119
      %s134 = sphi 0, %s120
      %s138 = sphi 0, %s138
      %s140 = sphi 0, %s138
      %s141 = sphi 0, %s140
      %s155 = sphi 0, %s141
      %s159 = sphi 0, %s159
      %s161 = sphi 0, %s159
      %s162 = sphi 0, %s161
      %s176 = sphi 0, %s162
      %s180 = sphi 0, %s180
      %s182 = sphi 0, %s180
      %s183 = sphi 0, %s182
      %s197 = sphi 0, %s183
      %s201 = sphi 0, %s201
      %s203 = sphi 0, %s201
      %s204 = sphi 0, %s203
      %s218 = sphi 0, %s204
      %s222 = sphi 0, %s222
      %s224 = sphi 0, %s222
      %s225 = sphi 0, %s224
      %s239 = sphi 0, %s225
      %s245 = sphi 0, %s247
      %s248 = sphi 0, %s245
      %s249 = sphi 0, %s248
      %s265 = sphi 0, %s249
    $region4: #{tpu_custom_call.1} parent=1 // loop_header_branch
      %23 = sbr.rel (%p21) target = $region8
    $region5: #{tpu_custom_call.1} parent=1 // loop_body
      %s25 = ssub.s32 %s20, 1
      %s26 = ssub.s32 %s20, 2
      %s27 = sadd.s32 %s20, 1
      %s28 = ssub.s32 %s20, %s27
      %p29 = scmp.eq.s32.totalorder %s28, 0
      %s31 = sadd.s32 %s30, 1
      %s32 = scalar_select %p29, %s30, %s31
      %p35 = pneg %p29
      %p36 = scmp.eq.s32.totalorder %s20, 1
      %p37 = por %p35, %p36
      %p38 = scmp.ne.s32.totalorder %s30, %s33
      %p39 = scmp.eq.s32.totalorder %s20, 0
      %p40 = por %p38, %p39
      %p41 = scmp.ne.s32.totalorder %s30, %s33
      %p42 = scmp.eq.s32.totalorder %s25, 1
      %p43 = por %p41, %p42
      %p44 = scmp.ne.s32.totalorder %s33, %s34
      %p45 = scmp.eq.s32.totalorder %s25, 0
      %p46 = por %p44, %p45
      %p47 = scmp.ne.s32.totalorder %s33, %s34
      %p48 = scmp.eq.s32.totalorder %s26, 1
      %p49 = por %p47, %p48
      %p51 = scmp.ne.s32.totalorder %s34, %s50
      %p52 = scmp.eq.s32.totalorder %s26, 0
      %p53 = por %p51, %p52
      %s55 = sadd.s32 %s54, 1
      %p58 = scmp.eq.s32.totalorder %s20, 1
      %p59 = scmp.ne.s32.totalorder %s54, %s56
      %p60 = scmp.eq.s32.totalorder %s20, 0
      %p61 = por %p59, %p60
      %p62 = scmp.ne.s32.totalorder %s54, %s56
      %p63 = scmp.eq.s32.totalorder %s25, 1
      %p64 = por %p62, %p63
      %p65 = scmp.ne.s32.totalorder %s56, %s57
      %p66 = scmp.eq.s32.totalorder %s25, 0
      %p67 = por %p65, %p66
      %p68 = scmp.ne.s32.totalorder %s56, %s57
      %p69 = scmp.eq.s32.totalorder %s26, 1
      %p70 = por %p68, %p69
      %p72 = scmp.ne.s32.totalorder %s57, %s71
      %p73 = scmp.eq.s32.totalorder %s26, 0
      %p74 = por %p72, %p73
      %s76 = sadd.s32 %s75, 1
      %p79 = scmp.eq.s32.totalorder %s20, 1
      %p80 = scmp.ne.s32.totalorder %s75, %s77
      %p81 = scmp.eq.s32.totalorder %s20, 0
      %p82 = por %p80, %p81
      %p83 = scmp.ne.s32.totalorder %s75, %s77
      %p84 = scmp.eq.s32.totalorder %s25, 1
      %p85 = por %p83, %p84
      %p86 = scmp.ne.s32.totalorder %s77, %s78
      %p87 = scmp.eq.s32.totalorder %s25, 0
      %p88 = por %p86, %p87
      %p89 = scmp.ne.s32.totalorder %s77, %s78
      %p90 = scmp.eq.s32.totalorder %s26, 1
      %p91 = por %p89, %p90
      %p93 = scmp.ne.s32.totalorder %s78, %s92
      %p94 = scmp.eq.s32.totalorder %s26, 0
      %p95 = por %p93, %p94
      %s97 = sadd.s32 %s96, 1
      %p100 = scmp.eq.s32.totalorder %s20, 1
      %p101 = scmp.ne.s32.totalorder %s96, %s98
      %p102 = scmp.eq.s32.totalorder %s20, 0
      %p103 = por %p101, %p102
      %p104 = scmp.ne.s32.totalorder %s96, %s98
      %p105 = scmp.eq.s32.totalorder %s25, 1
      %p106 = por %p104, %p105
      %p107 = scmp.ne.s32.totalorder %s98, %s99
      %p108 = scmp.eq.s32.totalorder %s25, 0
      %p109 = por %p107, %p108
      %p110 = scmp.ne.s32.totalorder %s98, %s99
      %p111 = scmp.eq.s32.totalorder %s26, 1
      %p112 = por %p110, %p111
      %p114 = scmp.ne.s32.totalorder %s99, %s113
      %p115 = scmp.eq.s32.totalorder %s26, 0
      %p116 = por %p114, %p115
      %s118 = sadd.s32 %s117, 1
      %p121 = scmp.eq.s32.totalorder %s20, 1
      %p122 = scmp.ne.s32.totalorder %s117, %s119
      %p123 = scmp.eq.s32.totalorder %s20, 0
      %p124 = por %p122, %p123
      %p125 = scmp.ne.s32.totalorder %s117, %s119
      %p126 = scmp.eq.s32.totalorder %s25, 1
      %p127 = por %p125, %p126
      %p128 = scmp.ne.s32.totalorder %s119, %s120
      %p129 = scmp.eq.s32.totalorder %s25, 0
      %p130 = por %p128, %p129
      %p131 = scmp.ne.s32.totalorder %s119, %s120
      %p132 = scmp.eq.s32.totalorder %s26, 1
      %p133 = por %p131, %p132
      %p135 = scmp.ne.s32.totalorder %s120, %s134
      %p136 = scmp.eq.s32.totalorder %s26, 0
      %p137 = por %p135, %p136
      %s139 = sadd.s32 %s138, 1
      %p142 = scmp.eq.s32.totalorder %s20, 1
      %p143 = scmp.ne.s32.totalorder %s138, %s140
      %p144 = scmp.eq.s32.totalorder %s20, 0
      %p145 = por %p143, %p144
      %p146 = scmp.ne.s32.totalorder %s138, %s140
      %p147 = scmp.eq.s32.totalorder %s25, 1
      %p148 = por %p146, %p147
      %p149 = scmp.ne.s32.totalorder %s140, %s141
      %p150 = scmp.eq.s32.totalorder %s25, 0
      %p151 = por %p149, %p150
      %p152 = scmp.ne.s32.totalorder %s140, %s141
      %p153 = scmp.eq.s32.totalorder %s26, 1
      %p154 = por %p152, %p153
      %p156 = scmp.ne.s32.totalorder %s141, %s155
      %p157 = scmp.eq.s32.totalorder %s26, 0
      %p158 = por %p156, %p157
      %s160 = sadd.s32 %s159, 1
      %p163 = scmp.eq.s32.totalorder %s20, 1
      %p164 = scmp.ne.s32.totalorder %s159, %s161
      %p165 = scmp.eq.s32.totalorder %s20, 0
      %p166 = por %p164, %p165
      %p167 = scmp.ne.s32.totalorder %s159, %s161
      %p168 = scmp.eq.s32.totalorder %s25, 1
      %p169 = por %p167, %p168
      %p170 = scmp.ne.s32.totalorder %s161, %s162
      %p171 = scmp.eq.s32.totalorder %s25, 0
      %p172 = por %p170, %p171
      %p173 = scmp.ne.s32.totalorder %s161, %s162
      %p174 = scmp.eq.s32.totalorder %s26, 1
      %p175 = por %p173, %p174
      %p177 = scmp.ne.s32.totalorder %s162, %s176
      %p178 = scmp.eq.s32.totalorder %s26, 0
      %p179 = por %p177, %p178
      %s181 = sadd.s32 %s180, 1
      %p184 = scmp.eq.s32.totalorder %s20, 1
      %p185 = scmp.ne.s32.totalorder %s180, %s182
      %p186 = scmp.eq.s32.totalorder %s20, 0
      %p187 = por %p185, %p186
      %p188 = scmp.ne.s32.totalorder %s180, %s182
      %p189 = scmp.eq.s32.totalorder %s25, 1
      %p190 = por %p188, %p189
      %p191 = scmp.ne.s32.totalorder %s182, %s183
      %p192 = scmp.eq.s32.totalorder %s25, 0
      %p193 = por %p191, %p192
      %p194 = scmp.ne.s32.totalorder %s182, %s183
      %p195 = scmp.eq.s32.totalorder %s26, 1
      %p196 = por %p194, %p195
      %p198 = scmp.ne.s32.totalorder %s183, %s197
      %p199 = scmp.eq.s32.totalorder %s26, 0
      %p200 = por %p198, %p199
      %s202 = sadd.s32 %s201, 1
      %p205 = scmp.eq.s32.totalorder %s20, 1
      %p206 = scmp.ne.s32.totalorder %s201, %s203
      %p207 = scmp.eq.s32.totalorder %s20, 0
      %p208 = por %p206, %p207
      %p209 = scmp.ne.s32.totalorder %s201, %s203
      %p210 = scmp.eq.s32.totalorder %s25, 1
      %p211 = por %p209, %p210
      %p212 = scmp.ne.s32.totalorder %s203, %s204
      %p213 = scmp.eq.s32.totalorder %s25, 0
      %p214 = por %p212, %p213
      %p215 = scmp.ne.s32.totalorder %s203, %s204
      %p216 = scmp.eq.s32.totalorder %s26, 1
      %p217 = por %p215, %p216
      %p219 = scmp.ne.s32.totalorder %s204, %s218
      %p220 = scmp.eq.s32.totalorder %s26, 0
      %p221 = por %p219, %p220
      %s223 = sadd.s32 %s222, 1
      %p226 = scmp.eq.s32.totalorder %s20, 1
      %p227 = scmp.ne.s32.totalorder %s222, %s224
      %p228 = scmp.eq.s32.totalorder %s20, 0
      %p229 = por %p227, %p228
      %p230 = scmp.ne.s32.totalorder %s222, %s224
      %p231 = scmp.eq.s32.totalorder %s25, 1
      %p232 = por %p230, %p231
      %p233 = scmp.ne.s32.totalorder %s224, %s225
      %p234 = scmp.eq.s32.totalorder %s25, 0
      %p235 = por %p233, %p234
      %p236 = scmp.ne.s32.totalorder %s224, %s225
      %p237 = scmp.eq.s32.totalorder %s26, 1
      %p238 = por %p236, %p237
      %p240 = scmp.ne.s32.totalorder %s225, %s239
      %p241 = scmp.eq.s32.totalorder %s26, 0
      %p242 = por %p240, %p241
      %s243 = ssub.s32 %s20, %s27
      %p244 = scmp.eq.s32.totalorder %s243, 0
      %s246 = sadd.s32 %s245, 1
      %s247 = scalar_select %p244, %s245, %s246
      %p250 = pneg %p244
      %p251 = scmp.eq.s32.totalorder %s20, 1
      %p252 = por %p250, %p251
      %p253 = scmp.ne.s32.totalorder %s245, %s248
      %p254 = scmp.eq.s32.totalorder %s20, 0
      %p255 = por %p253, %p254
      %p256 = scmp.ne.s32.totalorder %s245, %s248
      %p257 = scmp.eq.s32.totalorder %s25, 1
      %p258 = por %p256, %p257
      %p259 = scmp.ne.s32.totalorder %s248, %s249
      %p260 = scmp.eq.s32.totalorder %s25, 0
      %p261 = por %p259, %p260
      %p262 = scmp.ne.s32.totalorder %s248, %s249
      %p263 = scmp.eq.s32.totalorder %s26, 1
      %p264 = por %p262, %p263
      %p266 = scmp.ne.s32.totalorder %s249, %s265
      %p267 = scmp.eq.s32.totalorder %s26, 0
      %p268 = por %p266, %p267
      %p269 = scmp.le.s32.totalorder 1, %s20
      %p270 = scmp.lt.s32.totalorder %s20, 3
      %p271 = pnand %p269, %p270
      %p272 = pneg %p271
      // Predicated region
      $region9: #{tpu_custom_call.1} parent=5 // pred_check
        _
      $region10: #{tpu_custom_call.1} parent=5 // pred_check_branch
        %274 = sbr.rel (%p271) target = $region12
      $region11: #{tpu_custom_call.1} parent=5 // pred_region
        %s275 = ssub.s32 %s20, 1
        // Predicated region
        $region13: #{tpu_custom_call.1} parent=11 // pred_check
          %p276 = pneg %p67
        $region14: #{tpu_custom_call.1} parent=11 // pred_check_branch
          %278 = sbr.rel (%p276) target = $region16
        $region15: #{tpu_custom_call.1} parent=11 // pred_region
          _
        $region16: #{tpu_custom_call.1} parent=11 // pred_fallthru
          _
        // Predicated region
        $region17: #{tpu_custom_call.1} parent=11 // pred_check
          %p279 = pneg %p88
        $region18: #{tpu_custom_call.1} parent=11 // pred_check_branch
          %281 = sbr.rel (%p279) target = $region20
        $region19: #{tpu_custom_call.1} parent=11 // pred_region
          _
        $region20: #{tpu_custom_call.1} parent=11 // pred_fallthru
          _
        // Predicated region
        $region21: #{tpu_custom_call.1} parent=11 // pred_check
          %p282 = pneg %p109
        $region22: #{tpu_custom_call.1} parent=11 // pred_check_branch
          %284 = sbr.rel (%p282) target = $region24
        $region23: #{tpu_custom_call.1} parent=11 // pred_region
          _
        $region24: #{tpu_custom_call.1} parent=11 // pred_fallthru
          _
        // Predicated region
        $region25: #{tpu_custom_call.1} parent=11 // pred_check
          %p285 = pneg %p130
        $region26: #{tpu_custom_call.1} parent=11 // pred_check_branch
          %287 = sbr.rel (%p285) target = $region28
        $region27: #{tpu_custom_call.1} parent=11 // pred_region
          _
        $region28: #{tpu_custom_call.1} parent=11 // pred_fallthru
          _
        // Predicated region
        $region29: #{tpu_custom_call.1} parent=11 // pred_check
          %p288 = pneg %p151
        $region30: #{tpu_custom_call.1} parent=11 // pred_check_branch
          %290 = sbr.rel (%p288) target = $region32
        $region31: #{tpu_custom_call.1} parent=11 // pred_region
          _
        $region32: #{tpu_custom_call.1} parent=11 // pred_fallthru
          _
        // Predicated region
        $region33: #{tpu_custom_call.1} parent=11 // pred_check
          %p291 = pneg %p172
        $region34: #{tpu_custom_call.1} parent=11 // pred_check_branch
          %293 = sbr.rel (%p291) target = $region36
        $region35: #{tpu_custom_call.1} parent=11 // pred_region
          _
        $region36: #{tpu_custom_call.1} parent=11 // pred_fallthru
          _
        // Predicated region
        $region37: #{tpu_custom_call.1} parent=11 // pred_check
          %p294 = pneg %p193
        $region38: #{tpu_custom_call.1} parent=11 // pred_check_branch
          %296 = sbr.rel (%p294) target = $region40
        $region39: #{tpu_custom_call.1} parent=11 // pred_region
          _
        $region40: #{tpu_custom_call.1} parent=11 // pred_fallthru
          _
        // Predicated region
        $region41: #{tpu_custom_call.1} parent=11 // pred_check
          %p297 = pneg %p214
        $region42: #{tpu_custom_call.1} parent=11 // pred_check_branch
          %299 = sbr.rel (%p297) target = $region44
        $region43: #{tpu_custom_call.1} parent=11 // pred_region
          _
        $region44: #{tpu_custom_call.1} parent=11 // pred_fallthru
          _
        // Predicated region
        $region45: #{tpu_custom_call.1} parent=11 // pred_check
          %p300 = pneg %p235
        $region46: #{tpu_custom_call.1} parent=11 // pred_check_branch
          %302 = sbr.rel (%p300) target = $region48
        $region47: #{tpu_custom_call.1} parent=11 // pred_region
          %s304 = ssub.s32 16, 16
          %305 = vsyncadd [#allocation5], %s304
          %s307 = sshll.u32 %s9, 4
          %s308 = int_to_ptr.vmem [resolvable:$true] %s307
          %310 = dma.vmem_to_smem %s308, 16, [#allocation3], [#allocation5]
        $region48: #{tpu_custom_call.1} parent=11 // pred_fallthru
          _
      $region12: #{tpu_custom_call.1} parent=5 // pred_fallthru
        _
      %p311 = scmp.lt.s32.totalorder %s20, 2
      // Predicated region
      $region49: #{tpu_custom_call.1} parent=5 // pred_check
        %p312 = pneg %p311
      $region50: #{tpu_custom_call.1} parent=5 // pred_check_branch
        %314 = sbr.rel (%p312) target = $region52
      $region51: #{tpu_custom_call.1} parent=5 // pred_region
        // Predicated region
        $region53: #{tpu_custom_call.1} parent=51 // pred_check
          %p315 = pneg %p40
        $region54: #{tpu_custom_call.1} parent=51 // pred_check_branch
          %317 = sbr.rel (%p315) target = $region56
        $region55: #{tpu_custom_call.1} parent=51 // pred_region
          %p318 = scmp.lt.s32.totalorder %s20, 1
          %s319 = scalar_select %p318, %s20, 1
          %s320 = smul.addr %s319, 2
          %s321 = smul.addr %s320, 4
          %s322 = scalar_lea.vmem %s0, %s321
        $region56: #{tpu_custom_call.1} parent=51 // pred_fallthru
          _
      $region52: #{tpu_custom_call.1} parent=5 // pred_fallthru
        _
      %p323 = scmp.le.s32.totalorder 1, %s20
      %p324 = scmp.lt.s32.totalorder %s20, 3
      %p325 = pnand %p323, %p324
      %p326 = pneg %p325
      // Predicated region
      $region57: #{tpu_custom_call.1} parent=5 // pred_check
        _
      $region58: #{tpu_custom_call.1} parent=5 // pred_check_branch
        %328 = sbr.rel (%p325) target = $region60
      $region59: #{tpu_custom_call.1} parent=5 // pred_region
        %s329 = ssub.s32 %s20, 1
        // Predicated region
        $region61: #{tpu_custom_call.1} parent=59 // pred_check
          %p330 = pneg %p235
        $region62: #{tpu_custom_call.1} parent=59 // pred_check_branch
          %332 = sbr.rel (%p330) target = $region64
        $region63: #{tpu_custom_call.1} parent=59 // pred_region
          %333 = dma.done [#allocation5], 16
        $region64: #{tpu_custom_call.1} parent=59 // pred_fallthru
          _
        %334 = sfence
        %p335 = scmp.lt.s32.totalorder %s25, 1
        %s336 = scalar_select %p335, %s25, 1
        %s337 = smul.addr %s336, 2
        %s338 = smul.addr %s337, 4
        %s339 = scalar_lea.vmem %s0, %s338
        %p340 = pneg %p46
        %p341 = pneg %p43
        %p342 = pneg %p67
        %p343 = pneg %p64
        %p344 = pneg %p88
        %p345 = pneg %p85
        %p346 = pneg %p109
        %p347 = pneg %p106
        %p348 = pneg %p130
        %p349 = pneg %p127
        %p350 = pneg %p151
        %p351 = pneg %p148
        %p352 = pneg %p172
        %p353 = pneg %p169
        %p354 = pneg %p193
        %p355 = pneg %p190
        %p356 = pneg %p214
        %p357 = pneg %p211
        %p358 = pneg %p235
        %p359 = pneg %p232
        %p360 = pneg %p261
        %p361 = pneg %p258
        %s362 = sand.u32 %s248, 1
        %s363 = scalar_lea.sflag [#allocation4], %s362
        %s364 = sand.u32 %s248, 1
        %s365 = smul.addr %s364, 8
        %s366 = scalar_lea.vmem [#allocation6], %s365
        %p367 = scmp.lt.s32.totalorder %s25, 1
        %s368 = scalar_select %p367, %s25, 1
        %s369 = smul.addr %s368, 2
        %s370 = smul.addr %s369, 4
        %s371 = scalar_lea.vmem %s0, %s370
        %s373 = sld [smem:[#allocation3]]
        %s374 = sld [smem:[#allocation3 + $0x1]]
        %375 = vst [vmem:[#allocation2] sm:$0xff] 0
        %376 = vst [vmem:[#allocation2 + $0x18] sm:$0xff] 0
        %v377 = vlaneseq
        %v378 = vand.u32 %v377, 127
        %v379 = vadd.s32 %v378, 128
        %vm380 = vcmp.lt.s32.totalorder %v378, 0
        %v381 = vsub.s32 0, %v378
        %v382 = vsel %vm380, %v381, %v378
        %v383 = vshrl.u32 %v382, 4
        %v384 = vand.u32 %v382, 15
        %v385 = vsub.s32 0, %v384
        %v386 = vsel %vm380, %v385, %v384
        %vm387 = vcmp.lt.s32.totalorder %v379, 0
        %v388 = vsub.s32 0, %v379
        %v389 = vsel %vm387, %v388, %v379
        %v390 = vshrl.u32 %v389, 4
        %v391 = vand.u32 %v389, 15
        %v392 = vsub.s32 0, %v391
        %v393 = vsel %vm387, %v392, %v391
        %vm394 = vcmp.ne.s32.totalorder %v386, 0
        %vm395 = vcmp.ne.s32.totalorder %v393, 0
        %vm396 = vcmp.lt.s32.totalorder %v386, 0
        %vm397 = vcmp.lt.s32.totalorder %v393, 0
        %vm398 = vmand %vm396, %vm394
        %vm399 = vmand %vm397, %vm395
        %v400 = vadd.s32 %v386, 16
        %v401 = vadd.s32 %v393, 16
        %v402 = vsel %vm398, %v400, %v386
        %v403 = vsel %vm399, %v401, %v393
        %vm404 = vcmp.ne.s32.totalorder %v402, 0
        %vm405 = vcmp.ne.s32.totalorder %v403, 0
        %v406 = vsel %vm404, 1, 0
        %v407 = vsel %vm405, 1, 0
        %v408 = vcvt.s32.f32 %v406
        %v409 = vcvt.s32.f32 %v407
        %v410 = vpack.c.bf16 %v408, %v408
        %v411 = vpack.c.bf16 %v409, %v409
        %vm412 = vcmp.ne.s32.totalorder %v402, 15
        %vm413 = vcmp.ne.s32.totalorder %v403, 15
        %v414 = vsel %vm412, 1, 0
        %v415 = vsel %vm413, 1, 0
        %v416 = vcvt.s32.f32 %v414
        %v417 = vcvt.s32.f32 %v415
        %v418 = vpack.c.bf16 %v416, %v416
        %v419 = vpack.c.bf16 %v417, %v417
        %v420 = vld [vmem:[%s371] sm:$0xff]
        %v422 = vcombine.high %v420, %v420
        %v424 = vpack.c.bf16 %v420, %v420
        %v425 = vpack.c.bf16 %v422, %v422
        %426 = vst [vmem:[#allocation2 + $0x8] sm:$0x3] %v424
        %427 = vst [vmem:[#allocation2 + $0x10] sm:$0x3] %v425
        %v428 = vld [vmem:[#allocation2] sm:$0x3]
        %v429 = vld [vmem:[#allocation2 + $0x8] sm:$0x3]
        %v430 = vld [vmem:[#allocation2 + $0x10] sm:$0x3]
        %433 = vrot.lane.b32.xlu0 %v410, 111
        %v434 = vpop.permute.xlu0 %433
        %435 = vrot.lane.b32.xlu0 %v411, 111
        %v436 = vpop.permute.xlu0 %435
        %vm437 = vcmask 908288
        %v438 = vsel %vm437, %v434, %v436
        %v442 = vmul.bf16 %v428, %v434
        %v443 = vmul.bf16 %v429, %v438
        %v444 = vmul.bf16 %v430, %v436
        %v445 = vld [vmem:[%s1] sm:$0xf]
        %s446 = scalar_lea.vmem %s1, 4
        %v447 = vld [vmem:[%s446] sm:$0xf]
        %451 = vrot.lane.b32.xlu0 %v428, 16
        %v452 = vpop.permute.xlu0 %451
        %453 = vrot.lane.b32.xlu0 %v429, 16
        %v454 = vpop.permute.xlu0 %453
        %455 = vrot.lane.b32.xlu0 %v430, 16
        %v456 = vpop.permute.xlu0 %455
        %vm457 = vcmask 130048
        %v458 = vsel %vm457, %v452, %v454
        %v459 = vsel %vm457, %v454, %v456
        %vm460 = vcmask 31744
        %v462 = vsel %vm460, %v447, 0
        %vm464 = vcmask 1041408
        %v466 = vsel %vm464, %v458, 0
        %v469 = vsel %vm464, %v459, 0
        %471 = vmatprep.subr.bf16.mxu0 %v469
        %472 = vmatpush1.bf16.msra.mxu0 %v466
        %473 = vmatprep.subr.bf16.mxu0 0
        %474 = vmatpush1.bf16.msra.mxu0 0
        %475 = vmatprep.subr.bf16.mxu0 0
        %476 = vmatpush1.bf16.msra.mxu0 0
        %477 = vmatprep.subr.bf16.mxu0 0
        %478 = vmatpush1.bf16.msra.mxu0 0
        %479 = vmatprep.subr.bf16.mxu0 0
        %480 = vmatpush1.bf16.msra.mxu0 0
        %481 = vmatprep.subr.bf16.mxu0 0
        %482 = vmatpush1.bf16.msra.mxu0 0
        %483 = vmatprep.subr.bf16.mxu0 0
        %484 = vmatpush1.bf16.msra.mxu0 0
        %485 = vmatprep.subr.bf16.mxu0 0
        %486 = vmatpush1.bf16.msra.mxu0 0
        %487 = vmatprep.subr.bf16.mxu0 0
        %488 = vmatpush1.bf16.msra.mxu0 0
        %489 = vmatprep.subr.bf16.mxu0 0
        %490 = vmatpush1.bf16.msra.mxu0 0
        %491 = vmatprep.subr.bf16.mxu0 0
        %492 = vmatpush1.bf16.msra.mxu0 0
        %493 = vmatprep.subr.bf16.mxu0 0
        %494 = vmatpush1.bf16.msra.mxu0 0
        %495 = vmatprep.subr.bf16.mxu0 0
        %496 = vmatpush1.bf16.msra.mxu0 0
        %497 = vmatprep.subr.bf16.mxu0 0
        %498 = vmatpush1.bf16.msra.mxu0 0
        %499 = vmatprep.subr.bf16.mxu0 0
        %500 = vmatpush1.bf16.msra.mxu0 0
        %501 = vmatprep.subr.bf16.mxu0 0
        %502 = vmatpush1.bf16.msra.mxu0 0
        %503 = vmatprep.mubr.bf16.mxu0 0
        %504 = vmatmul.mubr.bf16.gmra.mrb[0].mxu0 %v462
        %v505 = vpop.f32.mrb[0].mxu0
        %v506 = vadd.f32 0.0, %v505
        %v507 = vpop.f32.mrb[0].mxu0
        %v508 = vadd.f32 0.0, %v507
        %v509 = vpop.f32.mrb[0].mxu0
        %v510 = vpop.f32.mrb[0].mxu0
        %511 = vdwg.mxu0
        %515 = vrot.lane.b32.xlu0 %v442, 17
        %v516 = vpop.permute.xlu0 %515
        %517 = vrot.lane.b32.xlu0 %v443, 17
        %v518 = vpop.permute.xlu0 %517
        %519 = vrot.lane.b32.xlu0 %v444, 17
        %v520 = vpop.permute.xlu0 %519
        %vm521 = vcmask 138240
        %v522 = vsel %vm521, %v516, %v518
        %v523 = vsel %vm521, %v518, %v520
        %v525 = vsel %vm460, %v445, 0
        %v528 = vsel %vm464, %v522, 0
        %v531 = vsel %vm464, %v523, 0
        %533 = vmatprep.subr.bf16.mxu0 %v531
        %534 = vmatpush1.bf16.msra.mxu0 %v528
        %535 = vmatprep.subr.bf16.mxu0 0
        %536 = vmatpush1.bf16.msra.mxu0 0
        %537 = vmatprep.subr.bf16.mxu0 0
        %538 = vmatpush1.bf16.msra.mxu0 0
        %539 = vmatprep.subr.bf16.mxu0 0
        %540 = vmatpush1.bf16.msra.mxu0 0
        %541 = vmatprep.subr.bf16.mxu0 0
        %542 = vmatpush1.bf16.msra.mxu0 0
        %543 = vmatprep.subr.bf16.mxu0 0
        %544 = vmatpush1.bf16.msra.mxu0 0
        %545 = vmatprep.subr.bf16.mxu0 0
        %546 = vmatpush1.bf16.msra.mxu0 0
        %547 = vmatprep.subr.bf16.mxu0 0
        %548 = vmatpush1.bf16.msra.mxu0 0
        %549 = vmatprep.subr.bf16.mxu0 0
        %550 = vmatpush1.bf16.msra.mxu0 0
        %551 = vmatprep.subr.bf16.mxu0 0
        %552 = vmatpush1.bf16.msra.mxu0 0
        %553 = vmatprep.subr.bf16.mxu0 0
        %554 = vmatpush1.bf16.msra.mxu0 0
        %555 = vmatprep.subr.bf16.mxu0 0
        %556 = vmatpush1.bf16.msra.mxu0 0
        %557 = vmatprep.subr.bf16.mxu0 0
        %558 = vmatpush1.bf16.msra.mxu0 0
        %559 = vmatprep.subr.bf16.mxu0 0
        %560 = vmatpush1.bf16.msra.mxu0 0
        %561 = vmatprep.subr.bf16.mxu0 0
        %562 = vmatpush1.bf16.msra.mxu0 0
        %563 = vmatprep.subr.bf16.mxu0 0
        %564 = vmatpush1.bf16.msra.mxu0 0
        %565 = vmatprep.mubr.bf16.mxu0 0
        %566 = vmatmul.mubr.bf16.gmra.mrb[0].mxu0 %v525
        %v567 = vpop.f32.mrb[0].mxu0
        %v568 = vadd.f32 %v506, %v567
        %v569 = vpop.f32.mrb[0].mxu0
        %v570 = vadd.f32 %v508, %v569
        %v571 = vpop.f32.mrb[0].mxu0
        %v572 = vpop.f32.mrb[0].mxu0
        %573 = vdwg.mxu0
        %576 = vrot.lane.b32.xlu0 %v418, 113
        %v577 = vpop.permute.xlu0 %576
        %578 = vrot.lane.b32.xlu0 %v419, 113
        %v579 = vpop.permute.xlu0 %578
        %vm580 = vcmask 924672
        %v581 = vsel %vm580, %v577, %v579
        %v585 = vmul.bf16 %v428, %v577
        %v586 = vmul.bf16 %v429, %v581
        %v587 = vmul.bf16 %v430, %v579
        %s588 = scalar_lea.vmem %s1, 8
        %v589 = vld [vmem:[%s588] sm:$0xf]
        %593 = vrot.lane.b32.xlu0 %v585, 15
        %v594 = vpop.permute.xlu0 %593
        %595 = vrot.lane.b32.xlu0 %v586, 15
        %v596 = vpop.permute.xlu0 %595
        %597 = vrot.lane.b32.xlu0 %v587, 15
        %v598 = vpop.permute.xlu0 %597
        %vm599 = vcmask 121856
        %v600 = vsel %vm599, %v594, %v596
        %v601 = vsel %vm599, %v596, %v598
        %v603 = vsel %vm460, %v589, 0
        %v606 = vsel %vm464, %v600, 0
        %v609 = vsel %vm464, %v601, 0
        %611 = vmatprep.subr.bf16.mxu0 %v609
        %612 = vmatpush1.bf16.msra.mxu0 %v606
        %613 = vmatprep.subr.bf16.mxu0 0
        %614 = vmatpush1.bf16.msra.mxu0 0
        %615 = vmatprep.subr.bf16.mxu0 0
        %616 = vmatpush1.bf16.msra.mxu0 0
        %617 = vmatprep.subr.bf16.mxu0 0
        %618 = vmatpush1.bf16.msra.mxu0 0
        %619 = vmatprep.subr.bf16.mxu0 0
        %620 = vmatpush1.bf16.msra.mxu0 0
        %621 = vmatprep.subr.bf16.mxu0 0
        %622 = vmatpush1.bf16.msra.mxu0 0
        %623 = vmatprep.subr.bf16.mxu0 0
        %624 = vmatpush1.bf16.msra.mxu0 0
        %625 = vmatprep.subr.bf16.mxu0 0
        %626 = vmatpush1.bf16.msra.mxu0 0
        %627 = vmatprep.subr.bf16.mxu0 0
        %628 = vmatpush1.bf16.msra.mxu0 0
        %629 = vmatprep.subr.bf16.mxu0 0
        %630 = vmatpush1.bf16.msra.mxu0 0
        %631 = vmatprep.subr.bf16.mxu0 0
        %632 = vmatpush1.bf16.msra.mxu0 0
        %633 = vmatprep.subr.bf16.mxu0 0
        %634 = vmatpush1.bf16.msra.mxu0 0
        %635 = vmatprep.subr.bf16.mxu0 0
        %636 = vmatpush1.bf16.msra.mxu0 0
        %637 = vmatprep.subr.bf16.mxu0 0
        %638 = vmatpush1.bf16.msra.mxu0 0
        %639 = vmatprep.subr.bf16.mxu0 0
        %640 = vmatpush1.bf16.msra.mxu0 0
        %641 = vmatprep.subr.bf16.mxu0 0
        %642 = vmatpush1.bf16.msra.mxu0 0
        %643 = vmatprep.mubr.bf16.mxu0 0
        %644 = vmatmul.mubr.bf16.gmra.mrb[0].mxu0 %v603
        %v645 = vpop.f32.mrb[0].mxu0
        %v646 = vadd.f32 0.0, %v645
        %v647 = vpop.f32.mrb[0].mxu0
        %v648 = vadd.f32 0.0, %v647
        %v649 = vpop.f32.mrb[0].mxu0
        %v650 = vpop.f32.mrb[0].mxu0
        %651 = vdwg.mxu0
        %v652 = vadd.f32 %v568, %v646
        %v653 = vadd.f32 %v570, %v648
        %654 = vrot.lane.b32.xlu0 %v410, 127
        %v655 = vpop.permute.xlu0 %654
        %656 = vrot.lane.b32.xlu0 %v411, 127
        %v657 = vpop.permute.xlu0 %656
        %vm658 = vcmask 1039360
        %v659 = vsel %vm658, %v655, %v657
        %v663 = vmul.bf16 %v428, %v655
        %v664 = vmul.bf16 %v429, %v659
        %v665 = vmul.bf16 %v430, %v657
        %s666 = scalar_lea.vmem %s1, 12
        %v667 = vld [vmem:[%s666] sm:$0xf]
        %671 = vrot.lane.b32.xlu0 %v663, 1
        %v672 = vpop.permute.xlu0 %671
        %673 = vrot.lane.b32.xlu0 %v664, 1
        %v674 = vpop.permute.xlu0 %673
        %675 = vrot.lane.b32.xlu0 %v665, 1
        %v676 = vpop.permute.xlu0 %675
        %vm677 = vcmask 7168
        %v678 = vsel %vm677, %v672, %v674
        %v679 = vsel %vm677, %v674, %v676
        %v681 = vsel %vm460, %v667, 0
        %v684 = vsel %vm464, %v678, 0
        %v687 = vsel %vm464, %v679, 0
        %689 = vmatprep.subr.bf16.mxu0 %v687
        %690 = vmatpush1.bf16.msra.mxu0 %v684
        %691 = vmatprep.subr.bf16.mxu0 0
        %692 = vmatpush1.bf16.msra.mxu0 0
        %693 = vmatprep.subr.bf16.mxu0 0
        %694 = vmatpush1.bf16.msra.mxu0 0
        %695 = vmatprep.subr.bf16.mxu0 0
        %696 = vmatpush1.bf16.msra.mxu0 0
        %697 = vmatprep.subr.bf16.mxu0 0
        %698 = vmatpush1.bf16.msra.mxu0 0
        %699 = vmatprep.subr.bf16.mxu0 0
        %700 = vmatpush1.bf16.msra.mxu0 0
        %701 = vmatprep.subr.bf16.mxu0 0
        %702 = vmatpush1.bf16.msra.mxu0 0
        %703 = vmatprep.subr.bf16.mxu0 0
        %704 = vmatpush1.bf16.msra.mxu0 0
        %705 = vmatprep.subr.bf16.mxu0 0
        %706 = vmatpush1.bf16.msra.mxu0 0
        %707 = vmatprep.subr.bf16.mxu0 0
        %708 = vmatpush1.bf16.msra.mxu0 0
        %709 = vmatprep.subr.bf16.mxu0 0
        %710 = vmatpush1.bf16.msra.mxu0 0
        %711 = vmatprep.subr.bf16.mxu0 0
        %712 = vmatpush1.bf16.msra.mxu0 0
        %713 = vmatprep.subr.bf16.mxu0 0
        %714 = vmatpush1.bf16.msra.mxu0 0
        %715 = vmatprep.subr.bf16.mxu0 0
        %716 = vmatpush1.bf16.msra.mxu0 0
        %717 = vmatprep.subr.bf16.mxu0 0
        %718 = vmatpush1.bf16.msra.mxu0 0
        %719 = vmatprep.subr.bf16.mxu0 0
        %720 = vmatpush1.bf16.msra.mxu0 0
        %721 = vmatprep.mubr.bf16.mxu0 0
        %722 = vmatmul.mubr.bf16.gmra.mrb[0].mxu0 %v681
        %v723 = vpop.f32.mrb[0].mxu0
        %v724 = vadd.f32 0.0, %v723
        %v725 = vpop.f32.mrb[0].mxu0
        %v726 = vadd.f32 0.0, %v725
        %v727 = vpop.f32.mrb[0].mxu0
        %v728 = vpop.f32.mrb[0].mxu0
        %729 = vdwg.mxu0
        %v730 = vadd.f32 %v652, %v724
        %v731 = vadd.f32 %v653, %v726
        %s732 = scalar_lea.vmem %s1, 16
        %v733 = vld [vmem:[%s732] sm:$0xf]
        %v735 = vsel %vm460, %v733, 0
        %v738 = vsel %vm464, %v429, 0
        %v741 = vsel %vm464, %v430, 0
        %743 = vmatprep.subr.bf16.mxu0 %v741
        %744 = vmatpush1.bf16.msra.mxu0 %v738
        %745 = vmatprep.subr.bf16.mxu0 0
        %746 = vmatpush1.bf16.msra.mxu0 0
        %747 = vmatprep.subr.bf16.mxu0 0
        %748 = vmatpush1.bf16.msra.mxu0 0
        %749 = vmatprep.subr.bf16.mxu0 0
        %750 = vmatpush1.bf16.msra.mxu0 0
        %751 = vmatprep.subr.bf16.mxu0 0
        %752 = vmatpush1.bf16.msra.mxu0 0
        %753 = vmatprep.subr.bf16.mxu0 0
        %754 = vmatpush1.bf16.msra.mxu0 0
        %755 = vmatprep.subr.bf16.mxu0 0
        %756 = vmatpush1.bf16.msra.mxu0 0
        %757 = vmatprep.subr.bf16.mxu0 0
        %758 = vmatpush1.bf16.msra.mxu0 0
        %759 = vmatprep.subr.bf16.mxu0 0
        %760 = vmatpush1.bf16.msra.mxu0 0
        %761 = vmatprep.subr.bf16.mxu0 0
        %762 = vmatpush1.bf16.msra.mxu0 0
        %763 = vmatprep.subr.bf16.mxu0 0
        %764 = vmatpush1.bf16.msra.mxu0 0
        %765 = vmatprep.subr.bf16.mxu0 0
        %766 = vmatpush1.bf16.msra.mxu0 0
        %767 = vmatprep.subr.bf16.mxu0 0
        %768 = vmatpush1.bf16.msra.mxu0 0
        %769 = vmatprep.subr.bf16.mxu0 0
        %770 = vmatpush1.bf16.msra.mxu0 0
        %771 = vmatprep.subr.bf16.mxu0 0
        %772 = vmatpush1.bf16.msra.mxu0 0
        %773 = vmatprep.subr.bf16.mxu0 0
        %774 = vmatpush1.bf16.msra.mxu0 0
        %775 = vmatprep.mubr.bf16.mxu0 0
        %776 = vmatmul.mubr.bf16.gmra.mrb[0].mxu0 %v735
        %v777 = vpop.f32.mrb[0].mxu0
        %v778 = vadd.f32 0.0, %v777
        %v779 = vpop.f32.mrb[0].mxu0
        %v780 = vadd.f32 0.0, %v779
        %v781 = vpop.f32.mrb[0].mxu0
        %v782 = vpop.f32.mrb[0].mxu0
        %783 = vdwg.mxu0
        %v784 = vadd.f32 %v730, %v778
        %v785 = vadd.f32 %v731, %v780
        %v786 = vld [vmem:[#allocation2 + $0x8] sm:$0x3]
        %v787 = vld [vmem:[#allocation2 + $0x10] sm:$0x3]
        %v788 = vld [vmem:[#allocation2 + $0x18] sm:$0x3]
        %789 = vrot.lane.b32.xlu0 %v418, 1
        %v790 = vpop.permute.xlu0 %789
        %791 = vrot.lane.b32.xlu0 %v419, 1
        %v792 = vpop.permute.xlu0 %791
        %v793 = vsel %vm677, %v790, %v792
        %v797 = vmul.bf16 %v786, %v790
        %v798 = vmul.bf16 %v787, %v793
        %v799 = vmul.bf16 %v788, %v792
        %s800 = scalar_lea.vmem %s1, 20
        %v801 = vld [vmem:[%s800] sm:$0xf]
        %805 = vrot.lane.b32.xlu0 %v797, 127
        %v806 = vpop.permute.xlu0 %805
        %807 = vrot.lane.b32.xlu0 %v798, 127
        %v808 = vpop.permute.xlu0 %807
        %809 = vrot.lane.b32.xlu0 %v799, 127
        %v810 = vpop.permute.xlu0 %809
        %v811 = vsel %vm658, %v806, %v808
        %v812 = vsel %vm658, %v808, %v810
        %v814 = vsel %vm460, %v801, 0
        %v817 = vsel %vm464, %v811, 0
        %v820 = vsel %vm464, %v812, 0
        %822 = vmatprep.subr.bf16.mxu0 %v820
        %823 = vmatpush1.bf16.msra.mxu0 %v817
        %824 = vmatprep.subr.bf16.mxu0 0
        %825 = vmatpush1.bf16.msra.mxu0 0
        %826 = vmatprep.subr.bf16.mxu0 0
        %827 = vmatpush1.bf16.msra.mxu0 0
        %828 = vmatprep.subr.bf16.mxu0 0
        %829 = vmatpush1.bf16.msra.mxu0 0
        %830 = vmatprep.subr.bf16.mxu0 0
        %831 = vmatpush1.bf16.msra.mxu0 0
        %832 = vmatprep.subr.bf16.mxu0 0
        %833 = vmatpush1.bf16.msra.mxu0 0
        %834 = vmatprep.subr.bf16.mxu0 0
        %835 = vmatpush1.bf16.msra.mxu0 0
        %836 = vmatprep.subr.bf16.mxu0 0
        %837 = vmatpush1.bf16.msra.mxu0 0
        %838 = vmatprep.subr.bf16.mxu0 0
        %839 = vmatpush1.bf16.msra.mxu0 0
        %840 = vmatprep.subr.bf16.mxu0 0
        %841 = vmatpush1.bf16.msra.mxu0 0
        %842 = vmatprep.subr.bf16.mxu0 0
        %843 = vmatpush1.bf16.msra.mxu0 0
        %844 = vmatprep.subr.bf16.mxu0 0
        %845 = vmatpush1.bf16.msra.mxu0 0
        %846 = vmatprep.subr.bf16.mxu0 0
        %847 = vmatpush1.bf16.msra.mxu0 0
        %848 = vmatprep.subr.bf16.mxu0 0
        %849 = vmatpush1.bf16.msra.mxu0 0
        %850 = vmatprep.subr.bf16.mxu0 0
        %851 = vmatpush1.bf16.msra.mxu0 0
        %852 = vmatprep.subr.bf16.mxu0 0
        %853 = vmatpush1.bf16.msra.mxu0 0
        %854 = vmatprep.mubr.bf16.mxu0 0
        %855 = vmatmul.mubr.bf16.gmra.mrb[0].mxu0 %v814
        %v856 = vpop.f32.mrb[0].mxu0
        %v857 = vadd.f32 0.0, %v856
        %v858 = vpop.f32.mrb[0].mxu0
        %v859 = vadd.f32 0.0, %v858
        %v860 = vpop.f32.mrb[0].mxu0
        %v861 = vpop.f32.mrb[0].mxu0
        %862 = vdwg.mxu0
        %v863 = vadd.f32 %v784, %v857
        %v864 = vadd.f32 %v785, %v859
        %865 = vrot.lane.b32.xlu0 %v410, 15
        %v866 = vpop.permute.xlu0 %865
        %867 = vrot.lane.b32.xlu0 %v411, 15
        %v868 = vpop.permute.xlu0 %867
        %v869 = vsel %vm599, %v866, %v868
        %v873 = vmul.bf16 %v786, %v866
        %v874 = vmul.bf16 %v787, %v869
        %v875 = vmul.bf16 %v788, %v868
        %s876 = scalar_lea.vmem %s1, 24
        %v877 = vld [vmem:[%s876] sm:$0xf]
        %881 = vrot.lane.b32.xlu0 %v873, 113
        %v882 = vpop.permute.xlu0 %881
        %883 = vrot.lane.b32.xlu0 %v874, 113
        %v884 = vpop.permute.xlu0 %883
        %885 = vrot.lane.b32.xlu0 %v875, 113
        %v886 = vpop.permute.xlu0 %885
        %v887 = vsel %vm580, %v882, %v884
        %v888 = vsel %vm580, %v884, %v886
        %v890 = vsel %vm460, %v877, 0
        %v893 = vsel %vm464, %v887, 0
        %v896 = vsel %vm464, %v888, 0
        %898 = vmatprep.subr.bf16.mxu0 %v896
        %899 = vmatpush1.bf16.msra.mxu0 %v893
        %900 = vmatprep.subr.bf16.mxu0 0
        %901 = vmatpush1.bf16.msra.mxu0 0
        %902 = vmatprep.subr.bf16.mxu0 0
        %903 = vmatpush1.bf16.msra.mxu0 0
        %904 = vmatprep.subr.bf16.mxu0 0
        %905 = vmatpush1.bf16.msra.mxu0 0
        %906 = vmatprep.subr.bf16.mxu0 0
        %907 = vmatpush1.bf16.msra.mxu0 0
        %908 = vmatprep.subr.bf16.mxu0 0
        %909 = vmatpush1.bf16.msra.mxu0 0
        %910 = vmatprep.subr.bf16.mxu0 0
        %911 = vmatpush1.bf16.msra.mxu0 0
        %912 = vmatprep.subr.bf16.mxu0 0
        %913 = vmatpush1.bf16.msra.mxu0 0
        %914 = vmatprep.subr.bf16.mxu0 0
        %915 = vmatpush1.bf16.msra.mxu0 0
        %916 = vmatprep.subr.bf16.mxu0 0
        %917 = vmatpush1.bf16.msra.mxu0 0
        %918 = vmatprep.subr.bf16.mxu0 0
        %919 = vmatpush1.bf16.msra.mxu0 0
        %920 = vmatprep.subr.bf16.mxu0 0
        %921 = vmatpush1.bf16.msra.mxu0 0
        %922 = vmatprep.subr.bf16.mxu0 0
        %923 = vmatpush1.bf16.msra.mxu0 0
        %924 = vmatprep.subr.bf16.mxu0 0
        %925 = vmatpush1.bf16.msra.mxu0 0
        %926 = vmatprep.subr.bf16.mxu0 0
        %927 = vmatpush1.bf16.msra.mxu0 0
        %928 = vmatprep.subr.bf16.mxu0 0
        %929 = vmatpush1.bf16.msra.mxu0 0
        %930 = vmatprep.mubr.bf16.mxu0 0
        %931 = vmatmul.mubr.bf16.gmra.mrb[0].mxu0 %v890
        %v932 = vpop.f32.mrb[0].mxu0
        %v933 = vadd.f32 0.0, %v932
        %v934 = vpop.f32.mrb[0].mxu0
        %v935 = vadd.f32 0.0, %v934
        %v936 = vpop.f32.mrb[0].mxu0
        %v937 = vpop.f32.mrb[0].mxu0
        %938 = vdwg.mxu0
        %v939 = vadd.f32 %v863, %v933
        %v940 = vadd.f32 %v864, %v935
        %s941 = scalar_lea.vmem %s1, 28
        %v942 = vld [vmem:[%s941] sm:$0xf]
        %946 = vrot.lane.b32.xlu0 %v786, 112
        %v947 = vpop.permute.xlu0 %946
        %948 = vrot.lane.b32.xlu0 %v787, 112
        %v949 = vpop.permute.xlu0 %948
        %950 = vrot.lane.b32.xlu0 %v788, 112
        %v951 = vpop.permute.xlu0 %950
        %vm952 = vcmask 916480
        %v953 = vsel %vm952, %v947, %v949
        %v954 = vsel %vm952, %v949, %v951
        %v956 = vsel %vm460, %v942, 0
        %v959 = vsel %vm464, %v953, 0
        %v962 = vsel %vm464, %v954, 0
        %964 = vmatprep.subr.bf16.mxu0 %v962
        %965 = vmatpush1.bf16.msra.mxu0 %v959
        %966 = vmatprep.subr.bf16.mxu0 0
        %967 = vmatpush1.bf16.msra.mxu0 0
        %968 = vmatprep.subr.bf16.mxu0 0
        %969 = vmatpush1.bf16.msra.mxu0 0
        %970 = vmatprep.subr.bf16.mxu0 0
        %971 = vmatpush1.bf16.msra.mxu0 0
        %972 = vmatprep.subr.bf16.mxu0 0
        %973 = vmatpush1.bf16.msra.mxu0 0
        %974 = vmatprep.subr.bf16.mxu0 0
        %975 = vmatpush1.bf16.msra.mxu0 0
        %976 = vmatprep.subr.bf16.mxu0 0
        %977 = vmatpush1.bf16.msra.mxu0 0
        %978 = vmatprep.subr.bf16.mxu0 0
        %979 = vmatpush1.bf16.msra.mxu0 0
        %980 = vmatprep.subr.bf16.mxu0 0
        %981 = vmatpush1.bf16.msra.mxu0 0
        %982 = vmatprep.subr.bf16.mxu0 0
        %983 = vmatpush1.bf16.msra.mxu0 0
        %984 = vmatprep.subr.bf16.mxu0 0
        %985 = vmatpush1.bf16.msra.mxu0 0
        %986 = vmatprep.subr.bf16.mxu0 0
        %987 = vmatpush1.bf16.msra.mxu0 0
        %988 = vmatprep.subr.bf16.mxu0 0
        %989 = vmatpush1.bf16.msra.mxu0 0
        %990 = vmatprep.subr.bf16.mxu0 0
        %991 = vmatpush1.bf16.msra.mxu0 0
        %992 = vmatprep.subr.bf16.mxu0 0
        %993 = vmatpush1.bf16.msra.mxu0 0
        %994 = vmatprep.subr.bf16.mxu0 0
        %995 = vmatpush1.bf16.msra.mxu0 0
        %996 = vmatprep.mubr.bf16.mxu0 0
        %997 = vmatmul.mubr.bf16.gmra.mrb[0].mxu0 %v956
        %v998 = vpop.f32.mrb[0].mxu0
        %v999 = vadd.f32 0.0, %v998
        %v1000 = vpop.f32.mrb[0].mxu0
        %v1001 = vadd.f32 0.0, %v1000
        %v1002 = vpop.f32.mrb[0].mxu0
        %v1003 = vpop.f32.mrb[0].mxu0
        %1004 = vdwg.mxu0
        %v1005 = vadd.f32 %v939, %v999
        %v1006 = vadd.f32 %v940, %v1001
        %1007 = vrot.lane.b32.xlu0 %v418, 17
        %v1008 = vpop.permute.xlu0 %1007
        %1009 = vrot.lane.b32.xlu0 %v419, 17
        %v1010 = vpop.permute.xlu0 %1009
        %v1011 = vsel %vm521, %v1008, %v1010
        %v1015 = vmul.bf16 %v786, %v1008
        %v1016 = vmul.bf16 %v787, %v1011
        %v1017 = vmul.bf16 %v788, %v1010
        %s1018 = scalar_lea.vmem %s1, 32
        %v1019 = vld [vmem:[%s1018] sm:$0xf]
        %1023 = vrot.lane.b32.xlu0 %v1015, 111
        %v1024 = vpop.permute.xlu0 %1023
        %1025 = vrot.lane.b32.xlu0 %v1016, 111
        %v1026 = vpop.permute.xlu0 %1025
        %1027 = vrot.lane.b32.xlu0 %v1017, 111
        %v1028 = vpop.permute.xlu0 %1027
        %v1029 = vsel %vm437, %v1024, %v1026
        %v1030 = vsel %vm437, %v1026, %v1028
        %v1032 = vsel %vm460, %v1019, 0
        %v1035 = vsel %vm464, %v1029, 0
        %v1038 = vsel %vm464, %v1030, 0
        %1040 = vmatprep.subr.bf16.mxu0 %v1038
        %1041 = vmatpush1.bf16.msra.mxu0 %v1035
        %1042 = vmatprep.subr.bf16.mxu0 0
        %1043 = vmatpush1.bf16.msra.mxu0 0
        %1044 = vmatprep.subr.bf16.mxu0 0
        %1045 = vmatpush1.bf16.msra.mxu0 0
        %1046 = vmatprep.subr.bf16.mxu0 0
        %1047 = vmatpush1.bf16.msra.mxu0 0
        %1048 = vmatprep.subr.bf16.mxu0 0
        %1049 = vmatpush1.bf16.msra.mxu0 0
        %1050 = vmatprep.subr.bf16.mxu0 0
        %1051 = vmatpush1.bf16.msra.mxu0 0
        %1052 = vmatprep.subr.bf16.mxu0 0
        %1053 = vmatpush1.bf16.msra.mxu0 0
        %1054 = vmatprep.subr.bf16.mxu0 0
        %1055 = vmatpush1.bf16.msra.mxu0 0
        %1056 = vmatprep.subr.bf16.mxu0 0
        %1057 = vmatpush1.bf16.msra.mxu0 0
        %1058 = vmatprep.subr.bf16.mxu0 0
        %1059 = vmatpush1.bf16.msra.mxu0 0
        %1060 = vmatprep.subr.bf16.mxu0 0
        %1061 = vmatpush1.bf16.msra.mxu0 0
        %1062 = vmatprep.subr.bf16.mxu0 0
        %1063 = vmatpush1.bf16.msra.mxu0 0
        %1064 = vmatprep.subr.bf16.mxu0 0
        %1065 = vmatpush1.bf16.msra.mxu0 0
        %1066 = vmatprep.subr.bf16.mxu0 0
        %1067 = vmatpush1.bf16.msra.mxu0 0
        %1068 = vmatprep.subr.bf16.mxu0 0
        %1069 = vmatpush1.bf16.msra.mxu0 0
        %1070 = vmatprep.subr.bf16.mxu0 0
        %1071 = vmatpush1.bf16.msra.mxu0 0
        %1072 = vmatprep.mubr.bf16.mxu0 0
        %1073 = vmatmul.mubr.bf16.gmra.mrb[0].mxu0 %v1032
        %v1074 = vpop.f32.mrb[0].mxu0
        %v1075 = vadd.f32 0.0, %v1074
        %v1076 = vpop.f32.mrb[0].mxu0
        %v1077 = vadd.f32 0.0, %v1076
        %v1078 = vpop.f32.mrb[0].mxu0
        %v1079 = vpop.f32.mrb[0].mxu0
        %1080 = vdwg.mxu0
        %v1081 = vadd.f32 %v1005, %v1075
        %v1082 = vadd.f32 %v1006, %v1077
        %v1083 = vld [vmem:[%s2] sm:$0xff]
        %1085 = vset.pattern.permute.xlu0 0
        %1086 = vperm.xlu0 %1085, %v1083
        %v1087 = vpop.permute.xlu0 %1086
        %v1089 = vadd.f32 %v1081, %v1087
        %v1090 = vadd.f32 %v1082, %v1087
        %vm1091 = vcmp.gt.f32.partialorder %v1089, 0.0
        %vm1092 = vcmp.gt.f32.partialorder %v1090, 0.0
        %v1093 = vstv %s373
        %v1094 = vmul.f32 %v1093, %v1089
        %v1095 = vmul.f32 %v1093, %v1090
        %v1096 = vsel %vm1091, %v1089, %v1094
        %v1097 = vsel %vm1092, %v1090, %v1095
        %v1098 = vpack.c.bf16 %v1096, %v1096
        %v1099 = vpack.c.bf16 %v1097, %v1097
        %1100 = vst [vmem:[#allocation2 + $0x8] sm:$0xf] %v1098
        %1101 = vst [vmem:[#allocation2 + $0x10] sm:$0xf] %v1099
        %v1102 = vld [vmem:[#allocation2] sm:$0xf]
        %v1103 = vld [vmem:[#allocation2 + $0x8] sm:$0xf]
        %v1104 = vld [vmem:[#allocation2 + $0x10] sm:$0xf]
        %v1105 = vmul.bf16 %v1102, %v434
        %v1106 = vmul.bf16 %v1103, %v438
        %v1107 = vmul.bf16 %v1104, %v436
        %v1108 = vld [vmem:[%s3] sm:$0xf]
        %v1109 = vld [vmem:[%s3 + $0x4] sm:$0xf]
        %v1110 = vld [vmem:[%s3 + $0x8] sm:$0xf]
        %v1111 = vld [vmem:[%s3 + $0xc] sm:$0xf]
        %s1112 = scalar_lea.vmem %s3, 16
        %v1113 = vld [vmem:[%s1112] sm:$0xf]
        %v1114 = vld [vmem:[%s1112 + $0x4] sm:$0xf]
        %v1115 = vld [vmem:[%s1112 + $0x8] sm:$0xf]
        %v1116 = vld [vmem:[%s1112 + $0xc] sm:$0xf]
        %v1121 = vunpack.c.l.b16 %v1113
        %v1122 = vunpack.c.l.b16 %v1114
        %v1123 = vunpack.c.l.b16 %v1115
        %v1124 = vunpack.c.l.b16 %v1116
        %v1125 = vpack.c.b16 %v1122, %v1121
        %v1126 = vpack.c.b16 %v1124, %v1123
        %1130 = vrot.lane.b32.xlu0 %v1102, 16
        %v1131 = vpop.permute.xlu0 %1130
        %1132 = vrot.lane.b32.xlu0 %v1103, 16
        %v1133 = vpop.permute.xlu0 %1132
        %1134 = vrot.lane.b32.xlu0 %v1104, 16
        %v1135 = vpop.permute.xlu0 %1134
        %v1136 = vsel %vm457, %v1131, %v1133
        %v1137 = vsel %vm457, %v1133, %v1135
        %vm1138 = vcmask 64512
        %v1140 = vsel %vm1138, %v1125, 0
        %v1143 = vsel %vm1138, %v1126, 0
        %vm1145 = vcmask 1043456
        %v1147 = vsel %vm1145, %v1136, 0
        %v1150 = vsel %vm1145, %v1137, 0
        %1152 = vmatprep.subr.bf16.mxu0 %v1150
        %1153 = vmatpush1.bf16.msra.mxu0 %v1147
        %1154 = vmatprep.subr.bf16.mxu0 0
        %1155 = vmatpush1.bf16.msra.mxu0 0
        %1156 = vmatprep.subr.bf16.mxu0 0
        %1157 = vmatpush1.bf16.msra.mxu0 0
        %1158 = vmatprep.subr.bf16.mxu0 0
        %1159 = vmatpush1.bf16.msra.mxu0 0
        %1160 = vmatprep.subr.bf16.mxu0 0
        %1161 = vmatpush1.bf16.msra.mxu0 0
        %1162 = vmatprep.subr.bf16.mxu0 0
        %1163 = vmatpush1.bf16.msra.mxu0 0
        %1164 = vmatprep.subr.bf16.mxu0 0
        %1165 = vmatpush1.bf16.msra.mxu0 0
        %1166 = vmatprep.subr.bf16.mxu0 0
        %1167 = vmatpush1.bf16.msra.mxu0 0
        %1168 = vmatprep.subr.bf16.mxu0 0
        %1169 = vmatpush1.bf16.msra.mxu0 0
        %1170 = vmatprep.subr.bf16.mxu0 0
        %1171 = vmatpush1.bf16.msra.mxu0 0
        %1172 = vmatprep.subr.bf16.mxu0 0
        %1173 = vmatpush1.bf16.msra.mxu0 0
        %1174 = vmatprep.subr.bf16.mxu0 0
        %1175 = vmatpush1.bf16.msra.mxu0 0
        %1176 = vmatprep.subr.bf16.mxu0 0
        %1177 = vmatpush1.bf16.msra.mxu0 0
        %1178 = vmatprep.subr.bf16.mxu0 0
        %1179 = vmatpush1.bf16.msra.mxu0 0
        %1180 = vmatprep.subr.bf16.mxu0 0
        %1181 = vmatpush1.bf16.msra.mxu0 0
        %1182 = vmatprep.subr.bf16.mxu0 0
        %1183 = vmatpush1.bf16.msra.mxu0 0
        %1184 = vmatprep.mubr.bf16.mxu0 0
        %1185 = vmatmul.mubr.bf16.gmra.mrb[0].mxu0 %v1140
        %v1186 = vpop.f32.mrb[0].mxu0
        %v1187 = vadd.f32 0.0, %v1186
        %v1188 = vpop.f32.mrb[0].mxu0
        %v1189 = vadd.f32 0.0, %v1188
        %v1190 = vpop.f32.mrb[0].mxu0
        %v1191 = vadd.f32 0.0, %v1190
        %v1192 = vpop.f32.mrb[0].mxu0
        %v1193 = vadd.f32 0.0, %v1192
        %1194 = vmatprep.mubr.bf16.mxu0 0
        %1195 = vmatmul.mubr.bf16.gmra.mrb[0].mxu0 %v1143
        %v1196 = vpop.f32.mrb[0].mxu0
        %v1197 = vadd.f32 0.0, %v1196
        %v1198 = vpop.f32.mrb[0].mxu0
        %v1199 = vadd.f32 0.0, %v1198
        %v1200 = vpop.f32.mrb[0].mxu0
        %v1201 = vadd.f32 0.0, %v1200
        %v1202 = vpop.f32.mrb[0].mxu0
        %v1203 = vadd.f32 0.0, %v1202
        %1204 = vdwg.mxu0
        %v1209 = vunpack.c.l.b16 %v1108
        %v1210 = vunpack.c.l.b16 %v1109
        %v1211 = vunpack.c.l.b16 %v1110
        %v1212 = vunpack.c.l.b16 %v1111
        %v1213 = vpack.c.b16 %v1210, %v1209
        %v1214 = vpack.c.b16 %v1212, %v1211
        %1218 = vrot.lane.b32.xlu0 %v1105, 17
        %v1219 = vpop.permute.xlu0 %1218
        %1220 = vrot.lane.b32.xlu0 %v1106, 17
        %v1221 = vpop.permute.xlu0 %1220
        %1222 = vrot.lane.b32.xlu0 %v1107, 17
        %v1223 = vpop.permute.xlu0 %1222
        %v1224 = vsel %vm521, %v1219, %v1221
        %v1225 = vsel %vm521, %v1221, %v1223
        %v1227 = vsel %vm1138, %v1213, 0
        %v1230 = vsel %vm1138, %v1214, 0
        %v1233 = vsel %vm1145, %v1224, 0
        %v1236 = vsel %vm1145, %v1225, 0
        %1238 = vmatprep.subr.bf16.mxu0 %v1236
        %1239 = vmatpush1.bf16.msra.mxu0 %v1233
        %1240 = vmatprep.subr.bf16.mxu0 0
        %1241 = vmatpush1.bf16.msra.mxu0 0
        %1242 = vmatprep.subr.bf16.mxu0 0
        %1243 = vmatpush1.bf16.msra.mxu0 0
        %1244 = vmatprep.subr.bf16.mxu0 0
        %1245 = vmatpush1.bf16.msra.mxu0 0
        %1246 = vmatprep.subr.bf16.mxu0 0
        %1247 = vmatpush1.bf16.msra.mxu0 0
        %1248 = vmatprep.subr.bf16.mxu0 0
        %1249 = vmatpush1.bf16.msra.mxu0 0
        %1250 = vmatprep.subr.bf16.mxu0 0
        %1251 = vmatpush1.bf16.msra.mxu0 0
        %1252 = vmatprep.subr.bf16.mxu0 0
        %1253 = vmatpush1.bf16.msra.mxu0 0
        %1254 = vmatprep.subr.bf16.mxu0 0
        %1255 = vmatpush1.bf16.msra.mxu0 0
        %1256 = vmatprep.subr.bf16.mxu0 0
        %1257 = vmatpush1.bf16.msra.mxu0 0
        %1258 = vmatprep.subr.bf16.mxu0 0
        %1259 = vmatpush1.bf16.msra.mxu0 0
        %1260 = vmatprep.subr.bf16.mxu0 0
        %1261 = vmatpush1.bf16.msra.mxu0 0
        %1262 = vmatprep.subr.bf16.mxu0 0
        %1263 = vmatpush1.bf16.msra.mxu0 0
        %1264 = vmatprep.subr.bf16.mxu0 0
        %1265 = vmatpush1.bf16.msra.mxu0 0
        %1266 = vmatprep.subr.bf16.mxu0 0
        %1267 = vmatpush1.bf16.msra.mxu0 0
        %1268 = vmatprep.subr.bf16.mxu0 0
        %1269 = vmatpush1.bf16.msra.mxu0 0
        %1270 = vmatprep.mubr.bf16.mxu0 0
        %1271 = vmatmul.mubr.bf16.gmra.mrb[0].mxu0 %v1227
        %v1272 = vpop.f32.mrb[0].mxu0
        %v1273 = vadd.f32 %v1187, %v1272
        %v1274 = vpop.f32.mrb[0].mxu0
        %v1275 = vadd.f32 %v1189, %v1274
        %v1276 = vpop.f32.mrb[0].mxu0
        %v1277 = vadd.f32 %v1191, %v1276
        %v1278 = vpop.f32.mrb[0].mxu0
        %v1279 = vadd.f32 %v1193, %v1278
        %1280 = vmatprep.mubr.bf16.mxu0 0
        %1281 = vmatmul.mubr.bf16.gmra.mrb[0].mxu0 %v1230
        %v1282 = vpop.f32.mrb[0].mxu0
        %v1283 = vadd.f32 %v1197, %v1282
        %v1284 = vpop.f32.mrb[0].mxu0
        %v1285 = vadd.f32 %v1199, %v1284
        %v1286 = vpop.f32.mrb[0].mxu0
        %v1287 = vadd.f32 %v1201, %v1286
        %v1288 = vpop.f32.mrb[0].mxu0
        %v1289 = vadd.f32 %v1203, %v1288
        %1290 = vdwg.mxu0
        %v1291 = vmul.bf16 %v1102, %v577
        %v1292 = vmul.bf16 %v1103, %v581
        %v1293 = vmul.bf16 %v1104, %v579
        %s1294 = scalar_lea.vmem %s3, 32
        %v1295 = vld [vmem:[%s1294] sm:$0xf]
        %v1296 = vld [vmem:[%s1294 + $0x4] sm:$0xf]
        %v1297 = vld [vmem:[%s1294 + $0x8] sm:$0xf]
        %v1298 = vld [vmem:[%s1294 + $0xc] sm:$0xf]
        %v1303 = vunpack.c.l.b16 %v1295
        %v1304 = vunpack.c.l.b16 %v1296
        %v1305 = vunpack.c.l.b16 %v1297
        %v1306 = vunpack.c.l.b16 %v1298
        %v1307 = vpack.c.b16 %v1304, %v1303
        %v1308 = vpack.c.b16 %v1306, %v1305
        %1312 = vrot.lane.b32.xlu0 %v1291, 15
        %v1313 = vpop.permute.xlu0 %1312
        %1314 = vrot.lane.b32.xlu0 %v1292, 15
        %v1315 = vpop.permute.xlu0 %1314
        %1316 = vrot.lane.b32.xlu0 %v1293, 15
        %v1317 = vpop.permute.xlu0 %1316
        %v1318 = vsel %vm599, %v1313, %v1315
        %v1319 = vsel %vm599, %v1315, %v1317
        %v1321 = vsel %vm1138, %v1307, 0
        %v1324 = vsel %vm1138, %v1308, 0
        %v1327 = vsel %vm1145, %v1318, 0
        %v1330 = vsel %vm1145, %v1319, 0
        %1332 = vmatprep.subr.bf16.mxu0 %v1330
        %1333 = vmatpush1.bf16.msra.mxu0 %v1327
        %1334 = vmatprep.subr.bf16.mxu0 0
        %1335 = vmatpush1.bf16.msra.mxu0 0
        %1336 = vmatprep.subr.bf16.mxu0 0
        %1337 = vmatpush1.bf16.msra.mxu0 0
        %1338 = vmatprep.subr.bf16.mxu0 0
        %1339 = vmatpush1.bf16.msra.mxu0 0
        %1340 = vmatprep.subr.bf16.mxu0 0
        %1341 = vmatpush1.bf16.msra.mxu0 0
        %1342 = vmatprep.subr.bf16.mxu0 0
        %1343 = vmatpush1.bf16.msra.mxu0 0
        %1344 = vmatprep.subr.bf16.mxu0 0
        %1345 = vmatpush1.bf16.msra.mxu0 0
        %1346 = vmatprep.subr.bf16.mxu0 0
        %1347 = vmatpush1.bf16.msra.mxu0 0
        %1348 = vmatprep.subr.bf16.mxu0 0
        %1349 = vmatpush1.bf16.msra.mxu0 0
        %1350 = vmatprep.subr.bf16.mxu0 0
        %1351 = vmatpush1.bf16.msra.mxu0 0
        %1352 = vmatprep.subr.bf16.mxu0 0
        %1353 = vmatpush1.bf16.msra.mxu0 0
        %1354 = vmatprep.subr.bf16.mxu0 0
        %1355 = vmatpush1.bf16.msra.mxu0 0
        %1356 = vmatprep.subr.bf16.mxu0 0
        %1357 = vmatpush1.bf16.msra.mxu0 0
        %1358 = vmatprep.subr.bf16.mxu0 0
        %1359 = vmatpush1.bf16.msra.mxu0 0
        %1360 = vmatprep.subr.bf16.mxu0 0
        %1361 = vmatpush1.bf16.msra.mxu0 0
        %1362 = vmatprep.subr.bf16.mxu0 0
        %1363 = vmatpush1.bf16.msra.mxu0 0
        %1364 = vmatprep.mubr.bf16.mxu0 0
        %1365 = vmatmul.mubr.bf16.gmra.mrb[0].mxu0 %v1321
        %v1366 = vpop.f32.mrb[0].mxu0
        %v1367 = vadd.f32 0.0, %v1366
        %v1368 = vpop.f32.mrb[0].mxu0
        %v1369 = vadd.f32 0.0, %v1368
        %v1370 = vpop.f32.mrb[0].mxu0
        %v1371 = vadd.f32 0.0, %v1370
        %v1372 = vpop.f32.mrb[0].mxu0
        %v1373 = vadd.f32 0.0, %v1372
        %1374 = vmatprep.mubr.bf16.mxu0 0
        %1375 = vmatmul.mubr.bf16.gmra.mrb[0].mxu0 %v1324
        %v1376 = vpop.f32.mrb[0].mxu0
        %v1377 = vadd.f32 0.0, %v1376
        %v1378 = vpop.f32.mrb[0].mxu0
        %v1379 = vadd.f32 0.0, %v1378
        %v1380 = vpop.f32.mrb[0].mxu0
        %v1381 = vadd.f32 0.0, %v1380
        %v1382 = vpop.f32.mrb[0].mxu0
        %v1383 = vadd.f32 0.0, %v1382
        %1384 = vdwg.mxu0
        %v1385 = vadd.f32 %v1273, %v1367
        %v1386 = vadd.f32 %v1275, %v1369
        %v1387 = vadd.f32 %v1277, %v1371
        %v1388 = vadd.f32 %v1279, %v1373
        %v1389 = vadd.f32 %v1283, %v1377
        %v1390 = vadd.f32 %v1285, %v1379
        %v1391 = vadd.f32 %v1287, %v1381
        %v1392 = vadd.f32 %v1289, %v1383
        %v1393 = vmul.bf16 %v1102, %v655
        %v1394 = vmul.bf16 %v1103, %v659
        %v1395 = vmul.bf16 %v1104, %v657
        %s1396 = scalar_lea.vmem %s3, 48
        %v1397 = vld [vmem:[%s1396] sm:$0xf]
        %v1398 = vld [vmem:[%s1396 + $0x4] sm:$0xf]
        %v1399 = vld [vmem:[%s1396 + $0x8] sm:$0xf]
        %v1400 = vld [vmem:[%s1396 + $0xc] sm:$0xf]
        %v1405 = vunpack.c.l.b16 %v1397
        %v1406 = vunpack.c.l.b16 %v1398
        %v1407 = vunpack.c.l.b16 %v1399
        %v1408 = vunpack.c.l.b16 %v1400
        %v1409 = vpack.c.b16 %v1406, %v1405
        %v1410 = vpack.c.b16 %v1408, %v1407
        %1414 = vrot.lane.b32.xlu0 %v1393, 1
        %v1415 = vpop.permute.xlu0 %1414
        %1416 = vrot.lane.b32.xlu0 %v1394, 1
        %v1417 = vpop.permute.xlu0 %1416
        %1418 = vrot.lane.b32.xlu0 %v1395, 1
        %v1419 = vpop.permute.xlu0 %1418
        %v1420 = vsel %vm677, %v1415, %v1417
        %v1421 = vsel %vm677, %v1417, %v1419
        %v1423 = vsel %vm1138, %v1409, 0
        %v1426 = vsel %vm1138, %v1410, 0
        %v1429 = vsel %vm1145, %v1420, 0
        %v1432 = vsel %vm1145, %v1421, 0
        %1434 = vmatprep.subr.bf16.mxu0 %v1432
        %1435 = vmatpush1.bf16.msra.mxu0 %v1429
        %1436 = vmatprep.subr.bf16.mxu0 0
        %1437 = vmatpush1.bf16.msra.mxu0 0
        %1438 = vmatprep.subr.bf16.mxu0 0
        %1439 = vmatpush1.bf16.msra.mxu0 0
        %1440 = vmatprep.subr.bf16.mxu0 0
        %1441 = vmatpush1.bf16.msra.mxu0 0
        %1442 = vmatprep.subr.bf16.mxu0 0
        %1443 = vmatpush1.bf16.msra.mxu0 0
        %1444 = vmatprep.subr.bf16.mxu0 0
        %1445 = vmatpush1.bf16.msra.mxu0 0
        %1446 = vmatprep.subr.bf16.mxu0 0
        %1447 = vmatpush1.bf16.msra.mxu0 0
        %1448 = vmatprep.subr.bf16.mxu0 0
        %1449 = vmatpush1.bf16.msra.mxu0 0
        %1450 = vmatprep.subr.bf16.mxu0 0
        %1451 = vmatpush1.bf16.msra.mxu0 0
        %1452 = vmatprep.subr.bf16.mxu0 0
        %1453 = vmatpush1.bf16.msra.mxu0 0
        %1454 = vmatprep.subr.bf16.mxu0 0
        %1455 = vmatpush1.bf16.msra.mxu0 0
        %1456 = vmatprep.subr.bf16.mxu0 0
        %1457 = vmatpush1.bf16.msra.mxu0 0
        %1458 = vmatprep.subr.bf16.mxu0 0
        %1459 = vmatpush1.bf16.msra.mxu0 0
        %1460 = vmatprep.subr.bf16.mxu0 0
        %1461 = vmatpush1.bf16.msra.mxu0 0
        %1462 = vmatprep.subr.bf16.mxu0 0
        %1463 = vmatpush1.bf16.msra.mxu0 0
        %1464 = vmatprep.subr.bf16.mxu0 0
        %1465 = vmatpush1.bf16.msra.mxu0 0
        %1466 = vmatprep.mubr.bf16.mxu0 0
        %1467 = vmatmul.mubr.bf16.gmra.mrb[0].mxu0 %v1423
        %v1468 = vpop.f32.mrb[0].mxu0
        %v1469 = vadd.f32 0.0, %v1468
        %v1470 = vpop.f32.mrb[0].mxu0
        %v1471 = vadd.f32 0.0, %v1470
        %v1472 = vpop.f32.mrb[0].mxu0
        %v1473 = vadd.f32 0.0, %v1472
        %v1474 = vpop.f32.mrb[0].mxu0
        %v1475 = vadd.f32 0.0, %v1474
        %1476 = vmatprep.mubr.bf16.mxu0 0
        %1477 = vmatmul.mubr.bf16.gmra.mrb[0].mxu0 %v1426
        %v1478 = vpop.f32.mrb[0].mxu0
        %v1479 = vadd.f32 0.0, %v1478
        %v1480 = vpop.f32.mrb[0].mxu0
        %v1481 = vadd.f32 0.0, %v1480
        %v1482 = vpop.f32.mrb[0].mxu0
        %v1483 = vadd.f32 0.0, %v1482
        %v1484 = vpop.f32.mrb[0].mxu0
        %v1485 = vadd.f32 0.0, %v1484
        %1486 = vdwg.mxu0
        %v1487 = vadd.f32 %v1385, %v1469
        %v1488 = vadd.f32 %v1386, %v1471
        %v1489 = vadd.f32 %v1387, %v1473
        %v1490 = vadd.f32 %v1388, %v1475
        %v1491 = vadd.f32 %v1389, %v1479
        %v1492 = vadd.f32 %v1390, %v1481
        %v1493 = vadd.f32 %v1391, %v1483
        %v1494 = vadd.f32 %v1392, %v1485
        %s1495 = scalar_lea.vmem %s3, 64
        %v1496 = vld [vmem:[%s1495] sm:$0xf]
        %v1497 = vld [vmem:[%s1495 + $0x4] sm:$0xf]
        %v1498 = vld [vmem:[%s1495 + $0x8] sm:$0xf]
        %v1499 = vld [vmem:[%s1495 + $0xc] sm:$0xf]
        %v1504 = vunpack.c.l.b16 %v1496
        %v1505 = vunpack.c.l.b16 %v1497
        %v1506 = vunpack.c.l.b16 %v1498
        %v1507 = vunpack.c.l.b16 %v1499
        %v1508 = vpack.c.b16 %v1505, %v1504
        %v1509 = vpack.c.b16 %v1507, %v1506
        %v1511 = vsel %vm1138, %v1508, 0
        %v1514 = vsel %vm1138, %v1509, 0
        %v1517 = vsel %vm1145, %v1103, 0
        %v1520 = vsel %vm1145, %v1104, 0
        %1522 = vmatprep.subr.bf16.mxu0 %v1520
        %1523 = vmatpush1.bf16.msra.mxu0 %v1517
        %1524 = vmatprep.subr.bf16.mxu0 0
        %1525 = vmatpush1.bf16.msra.mxu0 0
        %1526 = vmatprep.subr.bf16.mxu0 0
        %1527 = vmatpush1.bf16.msra.mxu0 0
        %1528 = vmatprep.subr.bf16.mxu0 0
        %1529 = vmatpush1.bf16.msra.mxu0 0
        %1530 = vmatprep.subr.bf16.mxu0 0
        %1531 = vmatpush1.bf16.msra.mxu0 0
        %1532 = vmatprep.subr.bf16.mxu0 0
        %1533 = vmatpush1.bf16.msra.mxu0 0
        %1534 = vmatprep.subr.bf16.mxu0 0
        %1535 = vmatpush1.bf16.msra.mxu0 0
        %1536 = vmatprep.subr.bf16.mxu0 0
        %1537 = vmatpush1.bf16.msra.mxu0 0
        %1538 = vmatprep.subr.bf16.mxu0 0
        %1539 = vmatpush1.bf16.msra.mxu0 0
        %1540 = vmatprep.subr.bf16.mxu0 0
        %1541 = vmatpush1.bf16.msra.mxu0 0
        %1542 = vmatprep.subr.bf16.mxu0 0
        %1543 = vmatpush1.bf16.msra.mxu0 0
        %1544 = vmatprep.subr.bf16.mxu0 0
        %1545 = vmatpush1.bf16.msra.mxu0 0
        %1546 = vmatprep.subr.bf16.mxu0 0
        %1547 = vmatpush1.bf16.msra.mxu0 0
        %1548 = vmatprep.subr.bf16.mxu0 0
        %1549 = vmatpush1.bf16.msra.mxu0 0
        %1550 = vmatprep.subr.bf16.mxu0 0
        %1551 = vmatpush1.bf16.msra.mxu0 0
        %1552 = vmatprep.subr.bf16.mxu0 0
        %1553 = vmatpush1.bf16.msra.mxu0 0
        %1554 = vmatprep.mubr.bf16.mxu0 0
        %1555 = vmatmul.mubr.bf16.gmra.mrb[0].mxu0 %v1511
        %v1556 = vpop.f32.mrb[0].mxu0
        %v1557 = vadd.f32 0.0, %v1556
        %v1558 = vpop.f32.mrb[0].mxu0
        %v1559 = vadd.f32 0.0, %v1558
        %v1560 = vpop.f32.mrb[0].mxu0
        %v1561 = vadd.f32 0.0, %v1560
        %v1562 = vpop.f32.mrb[0].mxu0
        %v1563 = vadd.f32 0.0, %v1562
        %1564 = vmatprep.mubr.bf16.mxu0 0
        %1565 = vmatmul.mubr.bf16.gmra.mrb[0].mxu0 %v1514
        %v1566 = vpop.f32.mrb[0].mxu0
        %v1567 = vadd.f32 0.0, %v1566
        %v1568 = vpop.f32.mrb[0].mxu0
        %v1569 = vadd.f32 0.0, %v1568
        %v1570 = vpop.f32.mrb[0].mxu0
        %v1571 = vadd.f32 0.0, %v1570
        %v1572 = vpop.f32.mrb[0].mxu0
        %v1573 = vadd.f32 0.0, %v1572
        %1574 = vdwg.mxu0
        %v1575 = vadd.f32 %v1487, %v1557
        %v1576 = vadd.f32 %v1488, %v1559
        %v1577 = vadd.f32 %v1489, %v1561
        %v1578 = vadd.f32 %v1490, %v1563
        %v1579 = vadd.f32 %v1491, %v1567
        %v1580 = vadd.f32 %v1492, %v1569
        %v1581 = vadd.f32 %v1493, %v1571
        %v1582 = vadd.f32 %v1494, %v1573
        %v1583 = vld [vmem:[#allocation2 + $0x8] sm:$0xf]
        %v1584 = vld [vmem:[#allocation2 + $0x10] sm:$0xf]
        %v1585 = vld [vmem:[#allocation2 + $0x18] sm:$0xf]
        %v1586 = vmul.bf16 %v1583, %v790
        %v1587 = vmul.bf16 %v1584, %v793
        %v1588 = vmul.bf16 %v1585, %v792
        %s1589 = scalar_lea.vmem %s3, 80
        %v1590 = vld [vmem:[%s1589] sm:$0xf]
        %v1591 = vld [vmem:[%s1589 + $0x4] sm:$0xf]
        %v1592 = vld [vmem:[%s1589 + $0x8] sm:$0xf]
        %v1593 = vld [vmem:[%s1589 + $0xc] sm:$0xf]
        %v1598 = vunpack.c.l.b16 %v1590
        %v1599 = vunpack.c.l.b16 %v1591
        %v1600 = vunpack.c.l.b16 %v1592
        %v1601 = vunpack.c.l.b16 %v1593
        %v1602 = vpack.c.b16 %v1599, %v1598
        %v1603 = vpack.c.b16 %v1601, %v1600
        %1607 = vrot.lane.b32.xlu0 %v1586, 127
        %v1608 = vpop.permute.xlu0 %1607
        %1609 = vrot.lane.b32.xlu0 %v1587, 127
        %v1610 = vpop.permute.xlu0 %1609
        %1611 = vrot.lane.b32.xlu0 %v1588, 127
        %v1612 = vpop.permute.xlu0 %1611
        %v1613 = vsel %vm658, %v1608, %v1610
        %v1614 = vsel %vm658, %v1610, %v1612
        %v1616 = vsel %vm1138, %v1602, 0
        %v1619 = vsel %vm1138, %v1603, 0
        %v1622 = vsel %vm1145, %v1613, 0
        %v1625 = vsel %vm1145, %v1614, 0
        %1627 = vmatprep.subr.bf16.mxu0 %v1625
        %1628 = vmatpush1.bf16.msra.mxu0 %v1622
        %1629 = vmatprep.subr.bf16.mxu0 0
        %1630 = vmatpush1.bf16.msra.mxu0 0
        %1631 = vmatprep.subr.bf16.mxu0 0
        %1632 = vmatpush1.bf16.msra.mxu0 0
        %1633 = vmatprep.subr.bf16.mxu0 0
        %1634 = vmatpush1.bf16.msra.mxu0 0
        %1635 = vmatprep.subr.bf16.mxu0 0
        %1636 = vmatpush1.bf16.msra.mxu0 0
        %1637 = vmatprep.subr.bf16.mxu0 0
        %1638 = vmatpush1.bf16.msra.mxu0 0
        %1639 = vmatprep.subr.bf16.mxu0 0
        %1640 = vmatpush1.bf16.msra.mxu0 0
        %1641 = vmatprep.subr.bf16.mxu0 0
        %1642 = vmatpush1.bf16.msra.mxu0 0
        %1643 = vmatprep.subr.bf16.mxu0 0
        %1644 = vmatpush1.bf16.msra.mxu0 0
        %1645 = vmatprep.subr.bf16.mxu0 0
        %1646 = vmatpush1.bf16.msra.mxu0 0
        %1647 = vmatprep.subr.bf16.mxu0 0
        %1648 = vmatpush1.bf16.msra.mxu0 0
        %1649 = vmatprep.subr.bf16.mxu0 0
        %1650 = vmatpush1.bf16.msra.mxu0 0
        %1651 = vmatprep.subr.bf16.mxu0 0
        %1652 = vmatpush1.bf16.msra.mxu0 0
        %1653 = vmatprep.subr.bf16.mxu0 0
        %1654 = vmatpush1.bf16.msra.mxu0 0
        %1655 = vmatprep.subr.bf16.mxu0 0
        %1656 = vmatpush1.bf16.msra.mxu0 0
        %1657 = vmatprep.subr.bf16.mxu0 0
        %1658 = vmatpush1.bf16.msra.mxu0 0
        %1659 = vmatprep.mubr.bf16.mxu0 0
        %1660 = vmatmul.mubr.bf16.gmra.mrb[0].mxu0 %v1616
        %v1661 = vpop.f32.mrb[0].mxu0
        %v1662 = vadd.f32 0.0, %v1661
        %v1663 = vpop.f32.mrb[0].mxu0
        %v1664 = vadd.f32 0.0, %v1663
        %v1665 = vpop.f32.mrb[0].mxu0
        %v1666 = vadd.f32 0.0, %v1665
        %v1667 = vpop.f32.mrb[0].mxu0
        %v1668 = vadd.f32 0.0, %v1667
        %1669 = vmatprep.mubr.bf16.mxu0 0
        %1670 = vmatmul.mubr.bf16.gmra.mrb[0].mxu0 %v1619
        %v1671 = vpop.f32.mrb[0].mxu0
        %v1672 = vadd.f32 0.0, %v1671
        %v1673 = vpop.f32.mrb[0].mxu0
        %v1674 = vadd.f32 0.0, %v1673
        %v1675 = vpop.f32.mrb[0].mxu0
        %v1676 = vadd.f32 0.0, %v1675
        %v1677 = vpop.f32.mrb[0].mxu0
        %v1678 = vadd.f32 0.0, %v1677
        %1679 = vdwg.mxu0
        %v1680 = vadd.f32 %v1575, %v1662
        %v1681 = vadd.f32 %v1576, %v1664
        %v1682 = vadd.f32 %v1577, %v1666
        %v1683 = vadd.f32 %v1578, %v1668
        %v1684 = vadd.f32 %v1579, %v1672
        %v1685 = vadd.f32 %v1580, %v1674
        %v1686 = vadd.f32 %v1581, %v1676
        %v1687 = vadd.f32 %v1582, %v1678
        %v1688 = vmul.bf16 %v1583, %v866
        %v1689 = vmul.bf16 %v1584, %v869
        %v1690 = vmul.bf16 %v1585, %v868
        %s1691 = scalar_lea.vmem %s3, 96
        %v1692 = vld [vmem:[%s1691] sm:$0xf]
        %v1693 = vld [vmem:[%s1691 + $0x4] sm:$0xf]
        %v1694 = vld [vmem:[%s1691 + $0x8] sm:$0xf]
        %v1695 = vld [vmem:[%s1691 + $0xc] sm:$0xf]
        %v1700 = vunpack.c.l.b16 %v1692
        %v1701 = vunpack.c.l.b16 %v1693
        %v1702 = vunpack.c.l.b16 %v1694
        %v1703 = vunpack.c.l.b16 %v1695
        %v1704 = vpack.c.b16 %v1701, %v1700
        %v1705 = vpack.c.b16 %v1703, %v1702
        %1709 = vrot.lane.b32.xlu0 %v1688, 113
        %v1710 = vpop.permute.xlu0 %1709
        %1711 = vrot.lane.b32.xlu0 %v1689, 113
        %v1712 = vpop.permute.xlu0 %1711
        %1713 = vrot.lane.b32.xlu0 %v1690, 113
        %v1714 = vpop.permute.xlu0 %1713
        %v1715 = vsel %vm580, %v1710, %v1712
        %v1716 = vsel %vm580, %v1712, %v1714
        %v1718 = vsel %vm1138, %v1704, 0
        %v1721 = vsel %vm1138, %v1705, 0
        %v1724 = vsel %vm1145, %v1715, 0
        %v1727 = vsel %vm1145, %v1716, 0
        %1729 = vmatprep.subr.bf16.mxu0 %v1727
        %1730 = vmatpush1.bf16.msra.mxu0 %v1724
        %1731 = vmatprep.subr.bf16.mxu0 0
        %1732 = vmatpush1.bf16.msra.mxu0 0
        %1733 = vmatprep.subr.bf16.mxu0 0
        %1734 = vmatpush1.bf16.msra.mxu0 0
        %1735 = vmatprep.subr.bf16.mxu0 0
        %1736 = vmatpush1.bf16.msra.mxu0 0
        %1737 = vmatprep.subr.bf16.mxu0 0
        %1738 = vmatpush1.bf16.msra.mxu0 0
        %1739 = vmatprep.subr.bf16.mxu0 0
        %1740 = vmatpush1.bf16.msra.mxu0 0
        %1741 = vmatprep.subr.bf16.mxu0 0
        %1742 = vmatpush1.bf16.msra.mxu0 0
        %1743 = vmatprep.subr.bf16.mxu0 0
        %1744 = vmatpush1.bf16.msra.mxu0 0
        %1745 = vmatprep.subr.bf16.mxu0 0
        %1746 = vmatpush1.bf16.msra.mxu0 0
        %1747 = vmatprep.subr.bf16.mxu0 0
        %1748 = vmatpush1.bf16.msra.mxu0 0
        %1749 = vmatprep.subr.bf16.mxu0 0
        %1750 = vmatpush1.bf16.msra.mxu0 0
        %1751 = vmatprep.subr.bf16.mxu0 0
        %1752 = vmatpush1.bf16.msra.mxu0 0
        %1753 = vmatprep.subr.bf16.mxu0 0
        %1754 = vmatpush1.bf16.msra.mxu0 0
        %1755 = vmatprep.subr.bf16.mxu0 0
        %1756 = vmatpush1.bf16.msra.mxu0 0
        %1757 = vmatprep.subr.bf16.mxu0 0
        %1758 = vmatpush1.bf16.msra.mxu0 0
        %1759 = vmatprep.subr.bf16.mxu0 0
        %1760 = vmatpush1.bf16.msra.mxu0 0
        %1761 = vmatprep.mubr.bf16.mxu0 0
        %1762 = vmatmul.mubr.bf16.gmra.mrb[0].mxu0 %v1718
        %v1763 = vpop.f32.mrb[0].mxu0
        %v1764 = vadd.f32 0.0, %v1763
        %v1765 = vpop.f32.mrb[0].mxu0
        %v1766 = vadd.f32 0.0, %v1765
        %v1767 = vpop.f32.mrb[0].mxu0
        %v1768 = vadd.f32 0.0, %v1767
        %v1769 = vpop.f32.mrb[0].mxu0
        %v1770 = vadd.f32 0.0, %v1769
        %1771 = vmatprep.mubr.bf16.mxu0 0
        %1772 = vmatmul.mubr.bf16.gmra.mrb[0].mxu0 %v1721
        %v1773 = vpop.f32.mrb[0].mxu0
        %v1774 = vadd.f32 0.0, %v1773
        %v1775 = vpop.f32.mrb[0].mxu0
        %v1776 = vadd.f32 0.0, %v1775
        %v1777 = vpop.f32.mrb[0].mxu0
        %v1778 = vadd.f32 0.0, %v1777
        %v1779 = vpop.f32.mrb[0].mxu0
        %v1780 = vadd.f32 0.0, %v1779
        %1781 = vdwg.mxu0
        %v1782 = vadd.f32 %v1680, %v1764
        %v1783 = vadd.f32 %v1681, %v1766
        %v1784 = vadd.f32 %v1682, %v1768
        %v1785 = vadd.f32 %v1683, %v1770
        %v1786 = vadd.f32 %v1684, %v1774
        %v1787 = vadd.f32 %v1685, %v1776
        %v1788 = vadd.f32 %v1686, %v1778
        %v1789 = vadd.f32 %v1687, %v1780
        %s1790 = scalar_lea.vmem %s3, 112
        %v1791 = vld [vmem:[%s1790] sm:$0xf]
        %v1792 = vld [vmem:[%s1790 + $0x4] sm:$0xf]
        %v1793 = vld [vmem:[%s1790 + $0x8] sm:$0xf]
        %v1794 = vld [vmem:[%s1790 + $0xc] sm:$0xf]
        %v1799 = vunpack.c.l.b16 %v1791
        %v1800 = vunpack.c.l.b16 %v1792
        %v1801 = vunpack.c.l.b16 %v1793
        %v1802 = vunpack.c.l.b16 %v1794
        %v1803 = vpack.c.b16 %v1800, %v1799
        %v1804 = vpack.c.b16 %v1802, %v1801
        %1808 = vrot.lane.b32.xlu0 %v1583, 112
        %v1809 = vpop.permute.xlu0 %1808
        %1810 = vrot.lane.b32.xlu0 %v1584, 112
        %v1811 = vpop.permute.xlu0 %1810
        %1812 = vrot.lane.b32.xlu0 %v1585, 112
        %v1813 = vpop.permute.xlu0 %1812
        %v1814 = vsel %vm952, %v1809, %v1811
        %v1815 = vsel %vm952, %v1811, %v1813
        %v1817 = vsel %vm1138, %v1803, 0
        %v1820 = vsel %vm1138, %v1804, 0
        %v1823 = vsel %vm1145, %v1814, 0
        %v1826 = vsel %vm1145, %v1815, 0
        %1828 = vmatprep.subr.bf16.mxu0 %v1826
        %1829 = vmatpush1.bf16.msra.mxu0 %v1823
        %1830 = vmatprep.subr.bf16.mxu0 0
        %1831 = vmatpush1.bf16.msra.mxu0 0
        %1832 = vmatprep.subr.bf16.mxu0 0
        %1833 = vmatpush1.bf16.msra.mxu0 0
        %1834 = vmatprep.subr.bf16.mxu0 0
        %1835 = vmatpush1.bf16.msra.mxu0 0
        %1836 = vmatprep.subr.bf16.mxu0 0
        %1837 = vmatpush1.bf16.msra.mxu0 0
        %1838 = vmatprep.subr.bf16.mxu0 0
        %1839 = vmatpush1.bf16.msra.mxu0 0
        %1840 = vmatprep.subr.bf16.mxu0 0
        %1841 = vmatpush1.bf16.msra.mxu0 0
        %1842 = vmatprep.subr.bf16.mxu0 0
        %1843 = vmatpush1.bf16.msra.mxu0 0
        %1844 = vmatprep.subr.bf16.mxu0 0
        %1845 = vmatpush1.bf16.msra.mxu0 0
        %1846 = vmatprep.subr.bf16.mxu0 0
        %1847 = vmatpush1.bf16.msra.mxu0 0
        %1848 = vmatprep.subr.bf16.mxu0 0
        %1849 = vmatpush1.bf16.msra.mxu0 0
        %1850 = vmatprep.subr.bf16.mxu0 0
        %1851 = vmatpush1.bf16.msra.mxu0 0
        %1852 = vmatprep.subr.bf16.mxu0 0
        %1853 = vmatpush1.bf16.msra.mxu0 0
        %1854 = vmatprep.subr.bf16.mxu0 0
        %1855 = vmatpush1.bf16.msra.mxu0 0
        %1856 = vmatprep.subr.bf16.mxu0 0
        %1857 = vmatpush1.bf16.msra.mxu0 0
        %1858 = vmatprep.subr.bf16.mxu0 0
        %1859 = vmatpush1.bf16.msra.mxu0 0
        %1860 = vmatprep.mubr.bf16.mxu0 0
        %1861 = vmatmul.mubr.bf16.gmra.mrb[0].mxu0 %v1817
        %v1862 = vpop.f32.mrb[0].mxu0
        %v1863 = vadd.f32 0.0, %v1862
        %v1864 = vpop.f32.mrb[0].mxu0
        %v1865 = vadd.f32 0.0, %v1864
        %v1866 = vpop.f32.mrb[0].mxu0
        %v1867 = vadd.f32 0.0, %v1866
        %v1868 = vpop.f32.mrb[0].mxu0
        %v1869 = vadd.f32 0.0, %v1868
        %1870 = vmatprep.mubr.bf16.mxu0 0
        %1871 = vmatmul.mubr.bf16.gmra.mrb[0].mxu0 %v1820
        %v1872 = vpop.f32.mrb[0].mxu0
        %v1873 = vadd.f32 0.0, %v1872
        %v1874 = vpop.f32.mrb[0].mxu0
        %v1875 = vadd.f32 0.0, %v1874
        %v1876 = vpop.f32.mrb[0].mxu0
        %v1877 = vadd.f32 0.0, %v1876
        %v1878 = vpop.f32.mrb[0].mxu0
        %v1879 = vadd.f32 0.0, %v1878
        %1880 = vdwg.mxu0
        %v1881 = vadd.f32 %v1782, %v1863
        %v1882 = vadd.f32 %v1783, %v1865
        %v1883 = vadd.f32 %v1784, %v1867
        %v1884 = vadd.f32 %v1785, %v1869
        %v1885 = vadd.f32 %v1786, %v1873
        %v1886 = vadd.f32 %v1787, %v1875
        %v1887 = vadd.f32 %v1788, %v1877
        %v1888 = vadd.f32 %v1789, %v1879
        %v1889 = vmul.bf16 %v1583, %v1008
        %v1890 = vmul.bf16 %v1584, %v1011
        %v1891 = vmul.bf16 %v1585, %v1010
        %s1892 = scalar_lea.vmem %s3, 128
        %v1893 = vld [vmem:[%s1892] sm:$0xf]
        %v1894 = vld [vmem:[%s1892 + $0x4] sm:$0xf]
        %v1895 = vld [vmem:[%s1892 + $0x8] sm:$0xf]
        %v1896 = vld [vmem:[%s1892 + $0xc] sm:$0xf]
        %v1901 = vunpack.c.l.b16 %v1893
        %v1902 = vunpack.c.l.b16 %v1894
        %v1903 = vunpack.c.l.b16 %v1895
        %v1904 = vunpack.c.l.b16 %v1896
        %v1905 = vpack.c.b16 %v1902, %v1901
        %v1906 = vpack.c.b16 %v1904, %v1903
        %1910 = vrot.lane.b32.xlu0 %v1889, 111
        %v1911 = vpop.permute.xlu0 %1910
        %1912 = vrot.lane.b32.xlu0 %v1890, 111
        %v1913 = vpop.permute.xlu0 %1912
        %1914 = vrot.lane.b32.xlu0 %v1891, 111
        %v1915 = vpop.permute.xlu0 %1914
        %v1916 = vsel %vm437, %v1911, %v1913
        %v1917 = vsel %vm437, %v1913, %v1915
        %v1919 = vsel %vm1138, %v1905, 0
        %v1922 = vsel %vm1138, %v1906, 0
        %v1925 = vsel %vm1145, %v1916, 0
        %v1928 = vsel %vm1145, %v1917, 0
        %1930 = vmatprep.subr.bf16.mxu0 %v1928
        %1931 = vmatpush1.bf16.msra.mxu0 %v1925
        %1932 = vmatprep.subr.bf16.mxu0 0
        %1933 = vmatpush1.bf16.msra.mxu0 0
        %1934 = vmatprep.subr.bf16.mxu0 0
        %1935 = vmatpush1.bf16.msra.mxu0 0
        %1936 = vmatprep.subr.bf16.mxu0 0
        %1937 = vmatpush1.bf16.msra.mxu0 0
        %1938 = vmatprep.subr.bf16.mxu0 0
        %1939 = vmatpush1.bf16.msra.mxu0 0
        %1940 = vmatprep.subr.bf16.mxu0 0
        %1941 = vmatpush1.bf16.msra.mxu0 0
        %1942 = vmatprep.subr.bf16.mxu0 0
        %1943 = vmatpush1.bf16.msra.mxu0 0
        %1944 = vmatprep.subr.bf16.mxu0 0
        %1945 = vmatpush1.bf16.msra.mxu0 0
        %1946 = vmatprep.subr.bf16.mxu0 0
        %1947 = vmatpush1.bf16.msra.mxu0 0
        %1948 = vmatprep.subr.bf16.mxu0 0
        %1949 = vmatpush1.bf16.msra.mxu0 0
        %1950 = vmatprep.subr.bf16.mxu0 0
        %1951 = vmatpush1.bf16.msra.mxu0 0
        %1952 = vmatprep.subr.bf16.mxu0 0
        %1953 = vmatpush1.bf16.msra.mxu0 0
        %1954 = vmatprep.subr.bf16.mxu0 0
        %1955 = vmatpush1.bf16.msra.mxu0 0
        %1956 = vmatprep.subr.bf16.mxu0 0
        %1957 = vmatpush1.bf16.msra.mxu0 0
        %1958 = vmatprep.subr.bf16.mxu0 0
        %1959 = vmatpush1.bf16.msra.mxu0 0
        %1960 = vmatprep.subr.bf16.mxu0 0
        %1961 = vmatpush1.bf16.msra.mxu0 0
        %1962 = vmatprep.mubr.bf16.mxu0 0
        %1963 = vmatmul.mubr.bf16.gmra.mrb[0].mxu0 %v1919
        %v1964 = vpop.f32.mrb[0].mxu0
        %v1965 = vadd.f32 0.0, %v1964
        %v1966 = vpop.f32.mrb[0].mxu0
        %v1967 = vadd.f32 0.0, %v1966
        %v1968 = vpop.f32.mrb[0].mxu0
        %v1969 = vadd.f32 0.0, %v1968
        %v1970 = vpop.f32.mrb[0].mxu0
        %v1971 = vadd.f32 0.0, %v1970
        %1972 = vmatprep.mubr.bf16.mxu0 0
        %1973 = vmatmul.mubr.bf16.gmra.mrb[0].mxu0 %v1922
        %v1974 = vpop.f32.mrb[0].mxu0
        %v1975 = vadd.f32 0.0, %v1974
        %v1976 = vpop.f32.mrb[0].mxu0
        %v1977 = vadd.f32 0.0, %v1976
        %v1978 = vpop.f32.mrb[0].mxu0
        %v1979 = vadd.f32 0.0, %v1978
        %v1980 = vpop.f32.mrb[0].mxu0
        %v1981 = vadd.f32 0.0, %v1980
        %1982 = vdwg.mxu0
        %v1983 = vadd.f32 %v1881, %v1965
        %v1984 = vadd.f32 %v1882, %v1967
        %v1985 = vadd.f32 %v1883, %v1969
        %v1986 = vadd.f32 %v1884, %v1971
        %v1987 = vadd.f32 %v1885, %v1975
        %v1988 = vadd.f32 %v1886, %v1977
        %v1989 = vadd.f32 %v1887, %v1979
        %v1990 = vadd.f32 %v1888, %v1981
        %vm1991 = vcmp.gt.f32.partialorder %v1983, 0.0
        %vm1992 = vcmp.gt.f32.partialorder %v1984, 0.0
        %vm1993 = vcmp.gt.f32.partialorder %v1985, 0.0
        %vm1994 = vcmp.gt.f32.partialorder %v1986, 0.0
        %v1995 = vstv %s374
        %v1996 = vmul.f32 %v1995, %v1983
        %v1997 = vmul.f32 %v1995, %v1984
        %v1998 = vmul.f32 %v1995, %v1985
        %v1999 = vmul.f32 %v1995, %v1986
        %v2000 = vsel %vm1991, %v1983, %v1996
        %v2001 = vsel %vm1992, %v1984, %v1997
        %v2002 = vsel %vm1993, %v1985, %v1998
        %v2003 = vsel %vm1994, %v1986, %v1999
        %v2004 = vpack.c.bf16 %v2002, %v2000
        %v2005 = vpack.c.bf16 %v2003, %v2001
        %2006 = vst [vmem:[#allocation2 + $0x8] sm:$0xff] %v2004
        %2007 = vst [vmem:[#allocation2 + $0x10] sm:$0xff] %v2005
        %v2008 = vld [vmem:[#allocation2] sm:$0xff]
        %v2009 = vld [vmem:[#allocation2 + $0x8] sm:$0xff]
        %v2010 = vld [vmem:[#allocation2 + $0x10] sm:$0xff]
        %v2011 = vmul.bf16 %v2008, %v434
        %v2012 = vmul.bf16 %v2009, %v438
        %v2013 = vmul.bf16 %v2010, %v436
        %v2014 = vld [vmem:[%s4] sm:$0xf]
        %v2015 = vld [vmem:[%s4 + $0x4] sm:$0xf]
        %s2016 = scalar_lea.vmem %s4, 8
        %v2017 = vld [vmem:[%s2016] sm:$0xf]
        %v2018 = vld [vmem:[%s2016 + $0x4] sm:$0xf]
        %v2021 = vunpack.c.l.b16 %v2017
        %v2022 = vunpack.c.l.b16 %v2018
        %v2023 = vpack.c.b16 %v2022, %v2021
        %2027 = vrot.lane.b32.xlu0 %v2008, 16
        %v2028 = vpop.permute.xlu0 %2027
        %2029 = vrot.lane.b32.xlu0 %v2009, 16
        %v2030 = vpop.permute.xlu0 %2029
        %2031 = vrot.lane.b32.xlu0 %v2010, 16
        %v2032 = vpop.permute.xlu0 %2031
        %v2033 = vsel %vm457, %v2028, %v2030
        %v2034 = vsel %vm457, %v2030, %v2032
        %vm2037 = vcmask 130048
        %v2039 = vsel %vm2037, %v2023, 0
        %2041 = vmatprep.subr.bf16.mxu0 %v2034
        %2042 = vmatpush1.bf16.msra.mxu0 %v2033
        %2043 = vmatprep.subr.bf16.mxu0 0
        %2044 = vmatpush1.bf16.msra.mxu0 0
        %2045 = vmatprep.subr.bf16.mxu0 0
        %2046 = vmatpush1.bf16.msra.mxu0 0
        %2047 = vmatprep.subr.bf16.mxu0 0
        %2048 = vmatpush1.bf16.msra.mxu0 0
        %2049 = vmatprep.subr.bf16.mxu0 0
        %2050 = vmatpush1.bf16.msra.mxu0 0
        %2051 = vmatprep.subr.bf16.mxu0 0
        %2052 = vmatpush1.bf16.msra.mxu0 0
        %2053 = vmatprep.subr.bf16.mxu0 0
        %2054 = vmatpush1.bf16.msra.mxu0 0
        %2055 = vmatprep.subr.bf16.mxu0 0
        %2056 = vmatpush1.bf16.msra.mxu0 0
        %2057 = vmatprep.subr.bf16.mxu0 0
        %2058 = vmatpush1.bf16.msra.mxu0 0
        %2059 = vmatprep.subr.bf16.mxu0 0
        %2060 = vmatpush1.bf16.msra.mxu0 0
        %2061 = vmatprep.subr.bf16.mxu0 0
        %2062 = vmatpush1.bf16.msra.mxu0 0
        %2063 = vmatprep.subr.bf16.mxu0 0
        %2064 = vmatpush1.bf16.msra.mxu0 0
        %2065 = vmatprep.subr.bf16.mxu0 0
        %2066 = vmatpush1.bf16.msra.mxu0 0
        %2067 = vmatprep.subr.bf16.mxu0 0
        %2068 = vmatpush1.bf16.msra.mxu0 0
        %2069 = vmatprep.subr.bf16.mxu0 0
        %2070 = vmatpush1.bf16.msra.mxu0 0
        %2071 = vmatprep.subr.bf16.mxu0 0
        %2072 = vmatpush1.bf16.msra.mxu0 0
        %2073 = vmatprep.mubr.bf16.mxu0 0
        %2074 = vmatmul.mubr.bf16.gmra.mrb[0].mxu0 %v2039
        %v2075 = vpop.f32.mrb[0].mxu0
        %v2076 = vadd.f32 0.0, %v2075
        %v2077 = vpop.f32.mrb[0].mxu0
        %v2078 = vadd.f32 0.0, %v2077
        %v2079 = vpop.f32.mrb[0].mxu0
        %v2080 = vadd.f32 0.0, %v2079
        %v2081 = vpop.f32.mrb[0].mxu0
        %v2082 = vadd.f32 0.0, %v2081
        %2083 = vdwg.mxu0
        %v2086 = vunpack.c.l.b16 %v2014
        %v2087 = vunpack.c.l.b16 %v2015
        %v2088 = vpack.c.b16 %v2087, %v2086
        %2092 = vrot.lane.b32.xlu0 %v2011, 17
        %v2093 = vpop.permute.xlu0 %2092
        %2094 = vrot.lane.b32.xlu0 %v2012, 17
        %v2095 = vpop.permute.xlu0 %2094
        %2096 = vrot.lane.b32.xlu0 %v2013, 17
        %v2097 = vpop.permute.xlu0 %2096
        %v2098 = vsel %vm521, %v2093, %v2095
        %v2099 = vsel %vm521, %v2095, %v2097
        %v2103 = vsel %vm2037, %v2088, 0
        %2105 = vmatprep.subr.bf16.mxu0 %v2099
        %2106 = vmatpush1.bf16.msra.mxu0 %v2098
        %2107 = vmatprep.subr.bf16.mxu0 0
        %2108 = vmatpush1.bf16.msra.mxu0 0
        %2109 = vmatprep.subr.bf16.mxu0 0
        %2110 = vmatpush1.bf16.msra.mxu0 0
        %2111 = vmatprep.subr.bf16.mxu0 0
        %2112 = vmatpush1.bf16.msra.mxu0 0
        %2113 = vmatprep.subr.bf16.mxu0 0
        %2114 = vmatpush1.bf16.msra.mxu0 0
        %2115 = vmatprep.subr.bf16.mxu0 0
        %2116 = vmatpush1.bf16.msra.mxu0 0
        %2117 = vmatprep.subr.bf16.mxu0 0
        %2118 = vmatpush1.bf16.msra.mxu0 0
        %2119 = vmatprep.subr.bf16.mxu0 0
        %2120 = vmatpush1.bf16.msra.mxu0 0
        %2121 = vmatprep.subr.bf16.mxu0 0
        %2122 = vmatpush1.bf16.msra.mxu0 0
        %2123 = vmatprep.subr.bf16.mxu0 0
        %2124 = vmatpush1.bf16.msra.mxu0 0
        %2125 = vmatprep.subr.bf16.mxu0 0
        %2126 = vmatpush1.bf16.msra.mxu0 0
        %2127 = vmatprep.subr.bf16.mxu0 0
        %2128 = vmatpush1.bf16.msra.mxu0 0
        %2129 = vmatprep.subr.bf16.mxu0 0
        %2130 = vmatpush1.bf16.msra.mxu0 0
        %2131 = vmatprep.subr.bf16.mxu0 0
        %2132 = vmatpush1.bf16.msra.mxu0 0
        %2133 = vmatprep.subr.bf16.mxu0 0
        %2134 = vmatpush1.bf16.msra.mxu0 0
        %2135 = vmatprep.subr.bf16.mxu0 0
        %2136 = vmatpush1.bf16.msra.mxu0 0
        %2137 = vmatprep.mubr.bf16.mxu0 0
        %2138 = vmatmul.mubr.bf16.gmra.mrb[0].mxu0 %v2103
        %v2139 = vpop.f32.mrb[0].mxu0
        %v2140 = vadd.f32 %v2076, %v2139
        %v2141 = vpop.f32.mrb[0].mxu0
        %v2142 = vadd.f32 %v2078, %v2141
        %v2143 = vpop.f32.mrb[0].mxu0
        %v2144 = vadd.f32 %v2080, %v2143
        %v2145 = vpop.f32.mrb[0].mxu0
        %v2146 = vadd.f32 %v2082, %v2145
        %2147 = vdwg.mxu0
        %v2148 = vmul.bf16 %v2008, %v577
        %v2149 = vmul.bf16 %v2009, %v581
        %v2150 = vmul.bf16 %v2010, %v579
        %s2151 = scalar_lea.vmem %s4, 16
        %v2152 = vld [vmem:[%s2151] sm:$0xf]
        %v2153 = vld [vmem:[%s2151 + $0x4] sm:$0xf]
        %v2156 = vunpack.c.l.b16 %v2152
        %v2157 = vunpack.c.l.b16 %v2153
        %v2158 = vpack.c.b16 %v2157, %v2156
        %2162 = vrot.lane.b32.xlu0 %v2148, 15
        %v2163 = vpop.permute.xlu0 %2162
        %2164 = vrot.lane.b32.xlu0 %v2149, 15
        %v2165 = vpop.permute.xlu0 %2164
        %2166 = vrot.lane.b32.xlu0 %v2150, 15
        %v2167 = vpop.permute.xlu0 %2166
        %v2168 = vsel %vm599, %v2163, %v2165
        %v2169 = vsel %vm599, %v2165, %v2167
        %v2173 = vsel %vm2037, %v2158, 0
        %2175 = vmatprep.subr.bf16.mxu0 %v2169
        %2176 = vmatpush1.bf16.msra.mxu0 %v2168
        %2177 = vmatprep.subr.bf16.mxu0 0
        %2178 = vmatpush1.bf16.msra.mxu0 0
        %2179 = vmatprep.subr.bf16.mxu0 0
        %2180 = vmatpush1.bf16.msra.mxu0 0
        %2181 = vmatprep.subr.bf16.mxu0 0
        %2182 = vmatpush1.bf16.msra.mxu0 0
        %2183 = vmatprep.subr.bf16.mxu0 0
        %2184 = vmatpush1.bf16.msra.mxu0 0
        %2185 = vmatprep.subr.bf16.mxu0 0
        %2186 = vmatpush1.bf16.msra.mxu0 0
        %2187 = vmatprep.subr.bf16.mxu0 0
        %2188 = vmatpush1.bf16.msra.mxu0 0
        %2189 = vmatprep.subr.bf16.mxu0 0
        %2190 = vmatpush1.bf16.msra.mxu0 0
        %2191 = vmatprep.subr.bf16.mxu0 0
        %2192 = vmatpush1.bf16.msra.mxu0 0
        %2193 = vmatprep.subr.bf16.mxu0 0
        %2194 = vmatpush1.bf16.msra.mxu0 0
        %2195 = vmatprep.subr.bf16.mxu0 0
        %2196 = vmatpush1.bf16.msra.mxu0 0
        %2197 = vmatprep.subr.bf16.mxu0 0
        %2198 = vmatpush1.bf16.msra.mxu0 0
        %2199 = vmatprep.subr.bf16.mxu0 0
        %2200 = vmatpush1.bf16.msra.mxu0 0
        %2201 = vmatprep.subr.bf16.mxu0 0
        %2202 = vmatpush1.bf16.msra.mxu0 0
        %2203 = vmatprep.subr.bf16.mxu0 0
        %2204 = vmatpush1.bf16.msra.mxu0 0
        %2205 = vmatprep.subr.bf16.mxu0 0
        %2206 = vmatpush1.bf16.msra.mxu0 0
        %2207 = vmatprep.mubr.bf16.mxu0 0
        %2208 = vmatmul.mubr.bf16.gmra.mrb[0].mxu0 %v2173
        %v2209 = vpop.f32.mrb[0].mxu0
        %v2210 = vadd.f32 0.0, %v2209
        %v2211 = vpop.f32.mrb[0].mxu0
        %v2212 = vadd.f32 0.0, %v2211
        %v2213 = vpop.f32.mrb[0].mxu0
        %v2214 = vadd.f32 0.0, %v2213
        %v2215 = vpop.f32.mrb[0].mxu0
        %v2216 = vadd.f32 0.0, %v2215
        %2217 = vdwg.mxu0
        %v2218 = vadd.f32 %v2140, %v2210
        %v2219 = vadd.f32 %v2142, %v2212
        %v2220 = vadd.f32 %v2144, %v2214
        %v2221 = vadd.f32 %v2146, %v2216
        %v2222 = vmul.bf16 %v2008, %v655
        %v2223 = vmul.bf16 %v2009, %v659
        %v2224 = vmul.bf16 %v2010, %v657
        %s2225 = scalar_lea.vmem %s4, 24
        %v2226 = vld [vmem:[%s2225] sm:$0xf]
        %v2227 = vld [vmem:[%s2225 + $0x4] sm:$0xf]
        %v2230 = vunpack.c.l.b16 %v2226
        %v2231 = vunpack.c.l.b16 %v2227
        %v2232 = vpack.c.b16 %v2231, %v2230
        %2236 = vrot.lane.b32.xlu0 %v2222, 1
        %v2237 = vpop.permute.xlu0 %2236
        %2238 = vrot.lane.b32.xlu0 %v2223, 1
        %v2239 = vpop.permute.xlu0 %2238
        %2240 = vrot.lane.b32.xlu0 %v2224, 1
        %v2241 = vpop.permute.xlu0 %2240
        %v2242 = vsel %vm677, %v2237, %v2239
        %v2243 = vsel %vm677, %v2239, %v2241
        %v2247 = vsel %vm2037, %v2232, 0
        %2249 = vmatprep.subr.bf16.mxu0 %v2243
        %2250 = vmatpush1.bf16.msra.mxu0 %v2242
        %2251 = vmatprep.subr.bf16.mxu0 0
        %2252 = vmatpush1.bf16.msra.mxu0 0
        %2253 = vmatprep.subr.bf16.mxu0 0
        %2254 = vmatpush1.bf16.msra.mxu0 0
        %2255 = vmatprep.subr.bf16.mxu0 0
        %2256 = vmatpush1.bf16.msra.mxu0 0
        %2257 = vmatprep.subr.bf16.mxu0 0
        %2258 = vmatpush1.bf16.msra.mxu0 0
        %2259 = vmatprep.subr.bf16.mxu0 0
        %2260 = vmatpush1.bf16.msra.mxu0 0
        %2261 = vmatprep.subr.bf16.mxu0 0
        %2262 = vmatpush1.bf16.msra.mxu0 0
        %2263 = vmatprep.subr.bf16.mxu0 0
        %2264 = vmatpush1.bf16.msra.mxu0 0
        %2265 = vmatprep.subr.bf16.mxu0 0
        %2266 = vmatpush1.bf16.msra.mxu0 0
        %2267 = vmatprep.subr.bf16.mxu0 0
        %2268 = vmatpush1.bf16.msra.mxu0 0
        %2269 = vmatprep.subr.bf16.mxu0 0
        %2270 = vmatpush1.bf16.msra.mxu0 0
        %2271 = vmatprep.subr.bf16.mxu0 0
        %2272 = vmatpush1.bf16.msra.mxu0 0
        %2273 = vmatprep.subr.bf16.mxu0 0
        %2274 = vmatpush1.bf16.msra.mxu0 0
        %2275 = vmatprep.subr.bf16.mxu0 0
        %2276 = vmatpush1.bf16.msra.mxu0 0
        %2277 = vmatprep.subr.bf16.mxu0 0
        %2278 = vmatpush1.bf16.msra.mxu0 0
        %2279 = vmatprep.subr.bf16.mxu0 0
        %2280 = vmatpush1.bf16.msra.mxu0 0
        %2281 = vmatprep.mubr.bf16.mxu0 0
        %2282 = vmatmul.mubr.bf16.gmra.mrb[0].mxu0 %v2247
        %v2283 = vpop.f32.mrb[0].mxu0
        %v2284 = vadd.f32 0.0, %v2283
        %v2285 = vpop.f32.mrb[0].mxu0
        %v2286 = vadd.f32 0.0, %v2285
        %v2287 = vpop.f32.mrb[0].mxu0
        %v2288 = vadd.f32 0.0, %v2287
        %v2289 = vpop.f32.mrb[0].mxu0
        %v2290 = vadd.f32 0.0, %v2289
        %2291 = vdwg.mxu0
        %v2292 = vadd.f32 %v2218, %v2284
        %v2293 = vadd.f32 %v2219, %v2286
        %v2294 = vadd.f32 %v2220, %v2288
        %v2295 = vadd.f32 %v2221, %v2290
        %s2296 = scalar_lea.vmem %s4, 32
        %v2297 = vld [vmem:[%s2296] sm:$0xf]
        %v2298 = vld [vmem:[%s2296 + $0x4] sm:$0xf]
        %v2301 = vunpack.c.l.b16 %v2297
        %v2302 = vunpack.c.l.b16 %v2298
        %v2303 = vpack.c.b16 %v2302, %v2301
        %v2305 = vsel %vm2037, %v2303, 0
        %2307 = vmatprep.subr.bf16.mxu0 %v2010
        %2308 = vmatpush1.bf16.msra.mxu0 %v2009
        %2309 = vmatprep.subr.bf16.mxu0 0
        %2310 = vmatpush1.bf16.msra.mxu0 0
        %2311 = vmatprep.subr.bf16.mxu0 0
        %2312 = vmatpush1.bf16.msra.mxu0 0
        %2313 = vmatprep.subr.bf16.mxu0 0
        %2314 = vmatpush1.bf16.msra.mxu0 0
        %2315 = vmatprep.subr.bf16.mxu0 0
        %2316 = vmatpush1.bf16.msra.mxu0 0
        %2317 = vmatprep.subr.bf16.mxu0 0
        %2318 = vmatpush1.bf16.msra.mxu0 0
        %2319 = vmatprep.subr.bf16.mxu0 0
        %2320 = vmatpush1.bf16.msra.mxu0 0
        %2321 = vmatprep.subr.bf16.mxu0 0
        %2322 = vmatpush1.bf16.msra.mxu0 0
        %2323 = vmatprep.subr.bf16.mxu0 0
        %2324 = vmatpush1.bf16.msra.mxu0 0
        %2325 = vmatprep.subr.bf16.mxu0 0
        %2326 = vmatpush1.bf16.msra.mxu0 0
        %2327 = vmatprep.subr.bf16.mxu0 0
        %2328 = vmatpush1.bf16.msra.mxu0 0
        %2329 = vmatprep.subr.bf16.mxu0 0
        %2330 = vmatpush1.bf16.msra.mxu0 0
        %2331 = vmatprep.subr.bf16.mxu0 0
        %2332 = vmatpush1.bf16.msra.mxu0 0
        %2333 = vmatprep.subr.bf16.mxu0 0
        %2334 = vmatpush1.bf16.msra.mxu0 0
        %2335 = vmatprep.subr.bf16.mxu0 0
        %2336 = vmatpush1.bf16.msra.mxu0 0
        %2337 = vmatprep.subr.bf16.mxu0 0
        %2338 = vmatpush1.bf16.msra.mxu0 0
        %2339 = vmatprep.mubr.bf16.mxu0 0
        %2340 = vmatmul.mubr.bf16.gmra.mrb[0].mxu0 %v2305
        %v2341 = vpop.f32.mrb[0].mxu0
        %v2342 = vadd.f32 0.0, %v2341
        %v2343 = vpop.f32.mrb[0].mxu0
        %v2344 = vadd.f32 0.0, %v2343
        %v2345 = vpop.f32.mrb[0].mxu0
        %v2346 = vadd.f32 0.0, %v2345
        %v2347 = vpop.f32.mrb[0].mxu0
        %v2348 = vadd.f32 0.0, %v2347
        %2349 = vdwg.mxu0
        %v2350 = vadd.f32 %v2292, %v2342
        %v2351 = vadd.f32 %v2293, %v2344
        %v2352 = vadd.f32 %v2294, %v2346
        %v2353 = vadd.f32 %v2295, %v2348
        %v2354 = vld [vmem:[#allocation2 + $0x8] sm:$0xff]
        %v2355 = vld [vmem:[#allocation2 + $0x10] sm:$0xff]
        %v2356 = vld [vmem:[#allocation2 + $0x18] sm:$0xff]
        %v2357 = vmul.bf16 %v2354, %v790
        %v2358 = vmul.bf16 %v2355, %v793
        %v2359 = vmul.bf16 %v2356, %v792
        %s2360 = scalar_lea.vmem %s4, 40
        %v2361 = vld [vmem:[%s2360] sm:$0xf]
        %v2362 = vld [vmem:[%s2360 + $0x4] sm:$0xf]
        %v2365 = vunpack.c.l.b16 %v2361
        %v2366 = vunpack.c.l.b16 %v2362
        %v2367 = vpack.c.b16 %v2366, %v2365
        %2371 = vrot.lane.b32.xlu0 %v2357, 127
        %v2372 = vpop.permute.xlu0 %2371
        %2373 = vrot.lane.b32.xlu0 %v2358, 127
        %v2374 = vpop.permute.xlu0 %2373
        %2375 = vrot.lane.b32.xlu0 %v2359, 127
        %v2376 = vpop.permute.xlu0 %2375
        %v2377 = vsel %vm658, %v2372, %v2374
        %v2378 = vsel %vm658, %v2374, %v2376
        %v2382 = vsel %vm2037, %v2367, 0
        %2384 = vmatprep.subr.bf16.mxu0 %v2378
        %2385 = vmatpush1.bf16.msra.mxu0 %v2377
        %2386 = vmatprep.subr.bf16.mxu0 0
        %2387 = vmatpush1.bf16.msra.mxu0 0
        %2388 = vmatprep.subr.bf16.mxu0 0
        %2389 = vmatpush1.bf16.msra.mxu0 0
        %2390 = vmatprep.subr.bf16.mxu0 0
        %2391 = vmatpush1.bf16.msra.mxu0 0
        %2392 = vmatprep.subr.bf16.mxu0 0
        %2393 = vmatpush1.bf16.msra.mxu0 0
        %2394 = vmatprep.subr.bf16.mxu0 0
        %2395 = vmatpush1.bf16.msra.mxu0 0
        %2396 = vmatprep.subr.bf16.mxu0 0
        %2397 = vmatpush1.bf16.msra.mxu0 0
        %2398 = vmatprep.subr.bf16.mxu0 0
        %2399 = vmatpush1.bf16.msra.mxu0 0
        %2400 = vmatprep.subr.bf16.mxu0 0
        %2401 = vmatpush1.bf16.msra.mxu0 0
        %2402 = vmatprep.subr.bf16.mxu0 0
        %2403 = vmatpush1.bf16.msra.mxu0 0
        %2404 = vmatprep.subr.bf16.mxu0 0
        %2405 = vmatpush1.bf16.msra.mxu0 0
        %2406 = vmatprep.subr.bf16.mxu0 0
        %2407 = vmatpush1.bf16.msra.mxu0 0
        %2408 = vmatprep.subr.bf16.mxu0 0
        %2409 = vmatpush1.bf16.msra.mxu0 0
        %2410 = vmatprep.subr.bf16.mxu0 0
        %2411 = vmatpush1.bf16.msra.mxu0 0
        %2412 = vmatprep.subr.bf16.mxu0 0
        %2413 = vmatpush1.bf16.msra.mxu0 0
        %2414 = vmatprep.subr.bf16.mxu0 0
        %2415 = vmatpush1.bf16.msra.mxu0 0
        %2416 = vmatprep.mubr.bf16.mxu0 0
        %2417 = vmatmul.mubr.bf16.gmra.mrb[0].mxu0 %v2382
        %v2418 = vpop.f32.mrb[0].mxu0
        %v2419 = vadd.f32 0.0, %v2418
        %v2420 = vpop.f32.mrb[0].mxu0
        %v2421 = vadd.f32 0.0, %v2420
        %v2422 = vpop.f32.mrb[0].mxu0
        %v2423 = vadd.f32 0.0, %v2422
        %v2424 = vpop.f32.mrb[0].mxu0
        %v2425 = vadd.f32 0.0, %v2424
        %2426 = vdwg.mxu0
        %v2427 = vadd.f32 %v2350, %v2419
        %v2428 = vadd.f32 %v2351, %v2421
        %v2429 = vadd.f32 %v2352, %v2423
        %v2430 = vadd.f32 %v2353, %v2425
        %v2431 = vmul.bf16 %v2354, %v866
        %v2432 = vmul.bf16 %v2355, %v869
        %v2433 = vmul.bf16 %v2356, %v868
        %s2434 = scalar_lea.vmem %s4, 48
        %v2435 = vld [vmem:[%s2434] sm:$0xf]
        %v2436 = vld [vmem:[%s2434 + $0x4] sm:$0xf]
        %v2439 = vunpack.c.l.b16 %v2435
        %v2440 = vunpack.c.l.b16 %v2436
        %v2441 = vpack.c.b16 %v2440, %v2439
        %2445 = vrot.lane.b32.xlu0 %v2431, 113
        %v2446 = vpop.permute.xlu0 %2445
        %2447 = vrot.lane.b32.xlu0 %v2432, 113
        %v2448 = vpop.permute.xlu0 %2447
        %2449 = vrot.lane.b32.xlu0 %v2433, 113
        %v2450 = vpop.permute.xlu0 %2449
        %v2451 = vsel %vm580, %v2446, %v2448
        %v2452 = vsel %vm580, %v2448, %v2450
        %v2456 = vsel %vm2037, %v2441, 0
        %2458 = vmatprep.subr.bf16.mxu0 %v2452
        %2459 = vmatpush1.bf16.msra.mxu0 %v2451
        %2460 = vmatprep.subr.bf16.mxu0 0
        %2461 = vmatpush1.bf16.msra.mxu0 0
        %2462 = vmatprep.subr.bf16.mxu0 0
        %2463 = vmatpush1.bf16.msra.mxu0 0
        %2464 = vmatprep.subr.bf16.mxu0 0
        %2465 = vmatpush1.bf16.msra.mxu0 0
        %2466 = vmatprep.subr.bf16.mxu0 0
        %2467 = vmatpush1.bf16.msra.mxu0 0
        %2468 = vmatprep.subr.bf16.mxu0 0
        %2469 = vmatpush1.bf16.msra.mxu0 0
        %2470 = vmatprep.subr.bf16.mxu0 0
        %2471 = vmatpush1.bf16.msra.mxu0 0
        %2472 = vmatprep.subr.bf16.mxu0 0
        %2473 = vmatpush1.bf16.msra.mxu0 0
        %2474 = vmatprep.subr.bf16.mxu0 0
        %2475 = vmatpush1.bf16.msra.mxu0 0
        %2476 = vmatprep.subr.bf16.mxu0 0
        %2477 = vmatpush1.bf16.msra.mxu0 0
        %2478 = vmatprep.subr.bf16.mxu0 0
        %2479 = vmatpush1.bf16.msra.mxu0 0
        %2480 = vmatprep.subr.bf16.mxu0 0
        %2481 = vmatpush1.bf16.msra.mxu0 0
        %2482 = vmatprep.subr.bf16.mxu0 0
        %2483 = vmatpush1.bf16.msra.mxu0 0
        %2484 = vmatprep.subr.bf16.mxu0 0
        %2485 = vmatpush1.bf16.msra.mxu0 0
        %2486 = vmatprep.subr.bf16.mxu0 0
        %2487 = vmatpush1.bf16.msra.mxu0 0
        %2488 = vmatprep.subr.bf16.mxu0 0
        %2489 = vmatpush1.bf16.msra.mxu0 0
        %2490 = vmatprep.mubr.bf16.mxu0 0
        %2491 = vmatmul.mubr.bf16.gmra.mrb[0].mxu0 %v2456
        %v2492 = vpop.f32.mrb[0].mxu0
        %v2493 = vadd.f32 0.0, %v2492
        %v2494 = vpop.f32.mrb[0].mxu0
        %v2495 = vadd.f32 0.0, %v2494
        %v2496 = vpop.f32.mrb[0].mxu0
        %v2497 = vadd.f32 0.0, %v2496
        %v2498 = vpop.f32.mrb[0].mxu0
        %v2499 = vadd.f32 0.0, %v2498
        %2500 = vdwg.mxu0
        %v2501 = vadd.f32 %v2427, %v2493
        %v2502 = vadd.f32 %v2428, %v2495
        %v2503 = vadd.f32 %v2429, %v2497
        %v2504 = vadd.f32 %v2430, %v2499
        %s2505 = scalar_lea.vmem %s4, 56
        %v2506 = vld [vmem:[%s2505] sm:$0xf]
        %v2507 = vld [vmem:[%s2505 + $0x4] sm:$0xf]
        %v2510 = vunpack.c.l.b16 %v2506
        %v2511 = vunpack.c.l.b16 %v2507
        %v2512 = vpack.c.b16 %v2511, %v2510
        %2516 = vrot.lane.b32.xlu0 %v2354, 112
        %v2517 = vpop.permute.xlu0 %2516
        %2518 = vrot.lane.b32.xlu0 %v2355, 112
        %v2519 = vpop.permute.xlu0 %2518
        %2520 = vrot.lane.b32.xlu0 %v2356, 112
        %v2521 = vpop.permute.xlu0 %2520
        %v2522 = vsel %vm952, %v2517, %v2519
        %v2523 = vsel %vm952, %v2519, %v2521
        %v2527 = vsel %vm2037, %v2512, 0
        %2529 = vmatprep.subr.bf16.mxu0 %v2523
        %2530 = vmatpush1.bf16.msra.mxu0 %v2522
        %2531 = vmatprep.subr.bf16.mxu0 0
        %2532 = vmatpush1.bf16.msra.mxu0 0
        %2533 = vmatprep.subr.bf16.mxu0 0
        %2534 = vmatpush1.bf16.msra.mxu0 0
        %2535 = vmatprep.subr.bf16.mxu0 0
        %2536 = vmatpush1.bf16.msra.mxu0 0
        %2537 = vmatprep.subr.bf16.mxu0 0
        %2538 = vmatpush1.bf16.msra.mxu0 0
        %2539 = vmatprep.subr.bf16.mxu0 0
        %2540 = vmatpush1.bf16.msra.mxu0 0
        %2541 = vmatprep.subr.bf16.mxu0 0
        %2542 = vmatpush1.bf16.msra.mxu0 0
        %2543 = vmatprep.subr.bf16.mxu0 0
        %2544 = vmatpush1.bf16.msra.mxu0 0
        %2545 = vmatprep.subr.bf16.mxu0 0
        %2546 = vmatpush1.bf16.msra.mxu0 0
        %2547 = vmatprep.subr.bf16.mxu0 0
        %2548 = vmatpush1.bf16.msra.mxu0 0
        %2549 = vmatprep.subr.bf16.mxu0 0
        %2550 = vmatpush1.bf16.msra.mxu0 0
        %2551 = vmatprep.subr.bf16.mxu0 0
        %2552 = vmatpush1.bf16.msra.mxu0 0
        %2553 = vmatprep.subr.bf16.mxu0 0
        %2554 = vmatpush1.bf16.msra.mxu0 0
        %2555 = vmatprep.subr.bf16.mxu0 0
        %2556 = vmatpush1.bf16.msra.mxu0 0
        %2557 = vmatprep.subr.bf16.mxu0 0
        %2558 = vmatpush1.bf16.msra.mxu0 0
        %2559 = vmatprep.subr.bf16.mxu0 0
        %2560 = vmatpush1.bf16.msra.mxu0 0
        %2561 = vmatprep.mubr.bf16.mxu0 0
        %2562 = vmatmul.mubr.bf16.gmra.mrb[0].mxu0 %v2527
        %v2563 = vpop.f32.mrb[0].mxu0
        %v2564 = vadd.f32 0.0, %v2563
        %v2565 = vpop.f32.mrb[0].mxu0
        %v2566 = vadd.f32 0.0, %v2565
        %v2567 = vpop.f32.mrb[0].mxu0
        %v2568 = vadd.f32 0.0, %v2567
        %v2569 = vpop.f32.mrb[0].mxu0
        %v2570 = vadd.f32 0.0, %v2569
        %2571 = vdwg.mxu0
        %v2572 = vadd.f32 %v2501, %v2564
        %v2573 = vadd.f32 %v2502, %v2566
        %v2574 = vadd.f32 %v2503, %v2568
        %v2575 = vadd.f32 %v2504, %v2570
        %v2576 = vmul.bf16 %v2354, %v1008
        %v2577 = vmul.bf16 %v2355, %v1011
        %v2578 = vmul.bf16 %v2356, %v1010
        %s2579 = scalar_lea.vmem %s4, 64
        %v2580 = vld [vmem:[%s2579] sm:$0xf]
        %v2581 = vld [vmem:[%s2579 + $0x4] sm:$0xf]
        %v2584 = vunpack.c.l.b16 %v2580
        %v2585 = vunpack.c.l.b16 %v2581
        %v2586 = vpack.c.b16 %v2585, %v2584
        %2590 = vrot.lane.b32.xlu0 %v2576, 111
        %v2591 = vpop.permute.xlu0 %2590
        %2592 = vrot.lane.b32.xlu0 %v2577, 111
        %v2593 = vpop.permute.xlu0 %2592
        %2594 = vrot.lane.b32.xlu0 %v2578, 111
        %v2595 = vpop.permute.xlu0 %2594
        %v2596 = vsel %vm437, %v2591, %v2593
        %v2597 = vsel %vm437, %v2593, %v2595
        %v2601 = vsel %vm2037, %v2586, 0
        %2603 = vmatprep.subr.bf16.mxu0 %v2597
        %2604 = vmatpush1.bf16.msra.mxu0 %v2596
        %2605 = vmatprep.subr.bf16.mxu0 0
        %2606 = vmatpush1.bf16.msra.mxu0 0
        %2607 = vmatprep.subr.bf16.mxu0 0
        %2608 = vmatpush1.bf16.msra.mxu0 0
        %2609 = vmatprep.subr.bf16.mxu0 0
        %2610 = vmatpush1.bf16.msra.mxu0 0
        %2611 = vmatprep.subr.bf16.mxu0 0
        %2612 = vmatpush1.bf16.msra.mxu0 0
        %2613 = vmatprep.subr.bf16.mxu0 0
        %2614 = vmatpush1.bf16.msra.mxu0 0
        %2615 = vmatprep.subr.bf16.mxu0 0
        %2616 = vmatpush1.bf16.msra.mxu0 0
        %2617 = vmatprep.subr.bf16.mxu0 0
        %2618 = vmatpush1.bf16.msra.mxu0 0
        %2619 = vmatprep.subr.bf16.mxu0 0
        %2620 = vmatpush1.bf16.msra.mxu0 0
        %2621 = vmatprep.subr.bf16.mxu0 0
        %2622 = vmatpush1.bf16.msra.mxu0 0
        %2623 = vmatprep.subr.bf16.mxu0 0
        %2624 = vmatpush1.bf16.msra.mxu0 0
        %2625 = vmatprep.subr.bf16.mxu0 0
        %2626 = vmatpush1.bf16.msra.mxu0 0
        %2627 = vmatprep.subr.bf16.mxu0 0
        %2628 = vmatpush1.bf16.msra.mxu0 0
        %2629 = vmatprep.subr.bf16.mxu0 0
        %2630 = vmatpush1.bf16.msra.mxu0 0
        %2631 = vmatprep.subr.bf16.mxu0 0
        %2632 = vmatpush1.bf16.msra.mxu0 0
        %2633 = vmatprep.subr.bf16.mxu0 0
        %2634 = vmatpush1.bf16.msra.mxu0 0
        %2635 = vmatprep.mubr.bf16.mxu0 0
        %2636 = vmatmul.mubr.bf16.gmra.mrb[0].mxu0 %v2601
        %v2637 = vpop.f32.mrb[0].mxu0
        %v2638 = vadd.f32 0.0, %v2637
        %v2639 = vpop.f32.mrb[0].mxu0
        %v2640 = vadd.f32 0.0, %v2639
        %v2641 = vpop.f32.mrb[0].mxu0
        %v2642 = vadd.f32 0.0, %v2641
        %v2643 = vpop.f32.mrb[0].mxu0
        %v2644 = vadd.f32 0.0, %v2643
        %2645 = vdwg.mxu0
        %v2646 = vadd.f32 %v2572, %v2638
        %v2647 = vadd.f32 %v2573, %v2640
        %v2648 = vadd.f32 %v2574, %v2642
        %v2649 = vadd.f32 %v2575, %v2644
        %v2650 = vadd.f32 %v2646, %v1987
        %v2651 = vadd.f32 %v2647, %v1988
        %v2652 = vadd.f32 %v2648, %v1989
        %v2653 = vadd.f32 %v2649, %v1990
        %v2654 = vpack.c.bf16 %v2652, %v2650
        %v2655 = vpack.c.bf16 %v2653, %v2651
        %2656 = vst [vmem:[#allocation2 + $0x8] sm:$0xff] %v2654
        %2657 = vst [vmem:[#allocation2 + $0x10] sm:$0xff] %v2655
        %v2658 = vld [vmem:[#allocation2] sm:$0xff]
        %v2659 = vld [vmem:[#allocation2 + $0x8] sm:$0xff]
        %v2660 = vld [vmem:[#allocation2 + $0x10] sm:$0xff]
        %v2661 = vmul.bf16 %v2658, %v434
        %v2662 = vmul.bf16 %v2659, %v438
        %v2663 = vmul.bf16 %v2660, %v436
        %v2664 = vld [vmem:[%s5] sm:$0xf]
        %v2665 = vld [vmem:[%s5 + $0x4] sm:$0xf]
        %s2666 = scalar_lea.vmem %s5, 8
        %v2667 = vld [vmem:[%s2666] sm:$0xf]
        %v2668 = vld [vmem:[%s2666 + $0x4] sm:$0xf]
        %v2671 = vunpack.c.l.b16 %v2667
        %v2672 = vunpack.c.l.b16 %v2668
        %v2673 = vpack.c.b16 %v2672, %v2671
        %2677 = vrot.lane.b32.xlu0 %v2658, 16
        %v2678 = vpop.permute.xlu0 %2677
        %2679 = vrot.lane.b32.xlu0 %v2659, 16
        %v2680 = vpop.permute.xlu0 %2679
        %2681 = vrot.lane.b32.xlu0 %v2660, 16
        %v2682 = vpop.permute.xlu0 %2681
        %v2683 = vsel %vm457, %v2678, %v2680
        %v2684 = vsel %vm457, %v2680, %v2682
        %v2688 = vsel %vm2037, %v2673, 0
        %2690 = vmatprep.subr.bf16.mxu0 %v2684
        %2691 = vmatpush1.bf16.msra.mxu0 %v2683
        %2692 = vmatprep.subr.bf16.mxu0 0
        %2693 = vmatpush1.bf16.msra.mxu0 0
        %2694 = vmatprep.subr.bf16.mxu0 0
        %2695 = vmatpush1.bf16.msra.mxu0 0
        %2696 = vmatprep.subr.bf16.mxu0 0
        %2697 = vmatpush1.bf16.msra.mxu0 0
        %2698 = vmatprep.subr.bf16.mxu0 0
        %2699 = vmatpush1.bf16.msra.mxu0 0
        %2700 = vmatprep.subr.bf16.mxu0 0
        %2701 = vmatpush1.bf16.msra.mxu0 0
        %2702 = vmatprep.subr.bf16.mxu0 0
        %2703 = vmatpush1.bf16.msra.mxu0 0
        %2704 = vmatprep.subr.bf16.mxu0 0
        %2705 = vmatpush1.bf16.msra.mxu0 0
        %2706 = vmatprep.subr.bf16.mxu0 0
        %2707 = vmatpush1.bf16.msra.mxu0 0
        %2708 = vmatprep.subr.bf16.mxu0 0
        %2709 = vmatpush1.bf16.msra.mxu0 0
        %2710 = vmatprep.subr.bf16.mxu0 0
        %2711 = vmatpush1.bf16.msra.mxu0 0
        %2712 = vmatprep.subr.bf16.mxu0 0
        %2713 = vmatpush1.bf16.msra.mxu0 0
        %2714 = vmatprep.subr.bf16.mxu0 0
        %2715 = vmatpush1.bf16.msra.mxu0 0
        %2716 = vmatprep.subr.bf16.mxu0 0
        %2717 = vmatpush1.bf16.msra.mxu0 0
        %2718 = vmatprep.subr.bf16.mxu0 0
        %2719 = vmatpush1.bf16.msra.mxu0 0
        %2720 = vmatprep.subr.bf16.mxu0 0
        %2721 = vmatpush1.bf16.msra.mxu0 0
        %2722 = vmatprep.mubr.bf16.mxu0 0
        %2723 = vmatmul.mubr.bf16.gmra.mrb[0].mxu0 %v2688
        %v2724 = vpop.f32.mrb[0].mxu0
        %v2725 = vadd.f32 0.0, %v2724
        %v2726 = vpop.f32.mrb[0].mxu0
        %v2727 = vadd.f32 0.0, %v2726
        %v2728 = vpop.f32.mrb[0].mxu0
        %v2729 = vadd.f32 0.0, %v2728
        %v2730 = vpop.f32.mrb[0].mxu0
        %v2731 = vadd.f32 0.0, %v2730
        %2732 = vdwg.mxu0
        %v2735 = vunpack.c.l.b16 %v2664
        %v2736 = vunpack.c.l.b16 %v2665
        %v2737 = vpack.c.b16 %v2736, %v2735
        %2741 = vrot.lane.b32.xlu0 %v2661, 17
        %v2742 = vpop.permute.xlu0 %2741
        %2743 = vrot.lane.b32.xlu0 %v2662, 17
        %v2744 = vpop.permute.xlu0 %2743
        %2745 = vrot.lane.b32.xlu0 %v2663, 17
        %v2746 = vpop.permute.xlu0 %2745
        %v2747 = vsel %vm521, %v2742, %v2744
        %v2748 = vsel %vm521, %v2744, %v2746
        %v2752 = vsel %vm2037, %v2737, 0
        %2754 = vmatprep.subr.bf16.mxu0 %v2748
        %2755 = vmatpush1.bf16.msra.mxu0 %v2747
        %2756 = vmatprep.subr.bf16.mxu0 0
        %2757 = vmatpush1.bf16.msra.mxu0 0
        %2758 = vmatprep.subr.bf16.mxu0 0
        %2759 = vmatpush1.bf16.msra.mxu0 0
        %2760 = vmatprep.subr.bf16.mxu0 0
        %2761 = vmatpush1.bf16.msra.mxu0 0
        %2762 = vmatprep.subr.bf16.mxu0 0
        %2763 = vmatpush1.bf16.msra.mxu0 0
        %2764 = vmatprep.subr.bf16.mxu0 0
        %2765 = vmatpush1.bf16.msra.mxu0 0
        %2766 = vmatprep.subr.bf16.mxu0 0
        %2767 = vmatpush1.bf16.msra.mxu0 0
        %2768 = vmatprep.subr.bf16.mxu0 0
        %2769 = vmatpush1.bf16.msra.mxu0 0
        %2770 = vmatprep.subr.bf16.mxu0 0
        %2771 = vmatpush1.bf16.msra.mxu0 0
        %2772 = vmatprep.subr.bf16.mxu0 0
        %2773 = vmatpush1.bf16.msra.mxu0 0
        %2774 = vmatprep.subr.bf16.mxu0 0
        %2775 = vmatpush1.bf16.msra.mxu0 0
        %2776 = vmatprep.subr.bf16.mxu0 0
        %2777 = vmatpush1.bf16.msra.mxu0 0
        %2778 = vmatprep.subr.bf16.mxu0 0
        %2779 = vmatpush1.bf16.msra.mxu0 0
        %2780 = vmatprep.subr.bf16.mxu0 0
        %2781 = vmatpush1.bf16.msra.mxu0 0
        %2782 = vmatprep.subr.bf16.mxu0 0
        %2783 = vmatpush1.bf16.msra.mxu0 0
        %2784 = vmatprep.subr.bf16.mxu0 0
        %2785 = vmatpush1.bf16.msra.mxu0 0
        %2786 = vmatprep.mubr.bf16.mxu0 0
        %2787 = vmatmul.mubr.bf16.gmra.mrb[0].mxu0 %v2752
        %v2788 = vpop.f32.mrb[0].mxu0
        %v2789 = vadd.f32 %v2725, %v2788
        %v2790 = vpop.f32.mrb[0].mxu0
        %v2791 = vadd.f32 %v2727, %v2790
        %v2792 = vpop.f32.mrb[0].mxu0
        %v2793 = vadd.f32 %v2729, %v2792
        %v2794 = vpop.f32.mrb[0].mxu0
        %v2795 = vadd.f32 %v2731, %v2794
        %2796 = vdwg.mxu0
        %v2797 = vmul.bf16 %v2658, %v577
        %v2798 = vmul.bf16 %v2659, %v581
        %v2799 = vmul.bf16 %v2660, %v579
        %s2800 = scalar_lea.vmem %s5, 16
        %v2801 = vld [vmem:[%s2800] sm:$0xf]
        %v2802 = vld [vmem:[%s2800 + $0x4] sm:$0xf]
        %v2805 = vunpack.c.l.b16 %v2801
        %v2806 = vunpack.c.l.b16 %v2802
        %v2807 = vpack.c.b16 %v2806, %v2805
        %2811 = vrot.lane.b32.xlu0 %v2797, 15
        %v2812 = vpop.permute.xlu0 %2811
        %2813 = vrot.lane.b32.xlu0 %v2798, 15
        %v2814 = vpop.permute.xlu0 %2813
        %2815 = vrot.lane.b32.xlu0 %v2799, 15
        %v2816 = vpop.permute.xlu0 %2815
        %v2817 = vsel %vm599, %v2812, %v2814
        %v2818 = vsel %vm599, %v2814, %v2816
        %v2822 = vsel %vm2037, %v2807, 0
        %2824 = vmatprep.subr.bf16.mxu0 %v2818
        %2825 = vmatpush1.bf16.msra.mxu0 %v2817
        %2826 = vmatprep.subr.bf16.mxu0 0
        %2827 = vmatpush1.bf16.msra.mxu0 0
        %2828 = vmatprep.subr.bf16.mxu0 0
        %2829 = vmatpush1.bf16.msra.mxu0 0
        %2830 = vmatprep.subr.bf16.mxu0 0
        %2831 = vmatpush1.bf16.msra.mxu0 0
        %2832 = vmatprep.subr.bf16.mxu0 0
        %2833 = vmatpush1.bf16.msra.mxu0 0
        %2834 = vmatprep.subr.bf16.mxu0 0
        %2835 = vmatpush1.bf16.msra.mxu0 0
        %2836 = vmatprep.subr.bf16.mxu0 0
        %2837 = vmatpush1.bf16.msra.mxu0 0
        %2838 = vmatprep.subr.bf16.mxu0 0
        %2839 = vmatpush1.bf16.msra.mxu0 0
        %2840 = vmatprep.subr.bf16.mxu0 0
        %2841 = vmatpush1.bf16.msra.mxu0 0
        %2842 = vmatprep.subr.bf16.mxu0 0
        %2843 = vmatpush1.bf16.msra.mxu0 0
        %2844 = vmatprep.subr.bf16.mxu0 0
        %2845 = vmatpush1.bf16.msra.mxu0 0
        %2846 = vmatprep.subr.bf16.mxu0 0
        %2847 = vmatpush1.bf16.msra.mxu0 0
        %2848 = vmatprep.subr.bf16.mxu0 0
        %2849 = vmatpush1.bf16.msra.mxu0 0
        %2850 = vmatprep.subr.bf16.mxu0 0
        %2851 = vmatpush1.bf16.msra.mxu0 0
        %2852 = vmatprep.subr.bf16.mxu0 0
        %2853 = vmatpush1.bf16.msra.mxu0 0
        %2854 = vmatprep.subr.bf16.mxu0 0
        %2855 = vmatpush1.bf16.msra.mxu0 0
        %2856 = vmatprep.mubr.bf16.mxu0 0
        %2857 = vmatmul.mubr.bf16.gmra.mrb[0].mxu0 %v2822
        %v2858 = vpop.f32.mrb[0].mxu0
        %v2859 = vadd.f32 0.0, %v2858
        %v2860 = vpop.f32.mrb[0].mxu0
        %v2861 = vadd.f32 0.0, %v2860
        %v2862 = vpop.f32.mrb[0].mxu0
        %v2863 = vadd.f32 0.0, %v2862
        %v2864 = vpop.f32.mrb[0].mxu0
        %v2865 = vadd.f32 0.0, %v2864
        %2866 = vdwg.mxu0
        %v2867 = vadd.f32 %v2789, %v2859
        %v2868 = vadd.f32 %v2791, %v2861
        %v2869 = vadd.f32 %v2793, %v2863
        %v2870 = vadd.f32 %v2795, %v2865
        %v2871 = vmul.bf16 %v2658, %v655
        %v2872 = vmul.bf16 %v2659, %v659
        %v2873 = vmul.bf16 %v2660, %v657
        %s2874 = scalar_lea.vmem %s5, 24
        %v2875 = vld [vmem:[%s2874] sm:$0xf]
        %v2876 = vld [vmem:[%s2874 + $0x4] sm:$0xf]
        %v2879 = vunpack.c.l.b16 %v2875
        %v2880 = vunpack.c.l.b16 %v2876
        %v2881 = vpack.c.b16 %v2880, %v2879
        %2885 = vrot.lane.b32.xlu0 %v2871, 1
        %v2886 = vpop.permute.xlu0 %2885
        %2887 = vrot.lane.b32.xlu0 %v2872, 1
        %v2888 = vpop.permute.xlu0 %2887
        %2889 = vrot.lane.b32.xlu0 %v2873, 1
        %v2890 = vpop.permute.xlu0 %2889
        %v2891 = vsel %vm677, %v2886, %v2888
        %v2892 = vsel %vm677, %v2888, %v2890
        %v2896 = vsel %vm2037, %v2881, 0
        %2898 = vmatprep.subr.bf16.mxu0 %v2892
        %2899 = vmatpush1.bf16.msra.mxu0 %v2891
        %2900 = vmatprep.subr.bf16.mxu0 0
        %2901 = vmatpush1.bf16.msra.mxu0 0
        %2902 = vmatprep.subr.bf16.mxu0 0
        %2903 = vmatpush1.bf16.msra.mxu0 0
        %2904 = vmatprep.subr.bf16.mxu0 0
        %2905 = vmatpush1.bf16.msra.mxu0 0
        %2906 = vmatprep.subr.bf16.mxu0 0
        %2907 = vmatpush1.bf16.msra.mxu0 0
        %2908 = vmatprep.subr.bf16.mxu0 0
        %2909 = vmatpush1.bf16.msra.mxu0 0
        %2910 = vmatprep.subr.bf16.mxu0 0
        %2911 = vmatpush1.bf16.msra.mxu0 0
        %2912 = vmatprep.subr.bf16.mxu0 0
        %2913 = vmatpush1.bf16.msra.mxu0 0
        %2914 = vmatprep.subr.bf16.mxu0 0
        %2915 = vmatpush1.bf16.msra.mxu0 0
        %2916 = vmatprep.subr.bf16.mxu0 0
        %2917 = vmatpush1.bf16.msra.mxu0 0
        %2918 = vmatprep.subr.bf16.mxu0 0
        %2919 = vmatpush1.bf16.msra.mxu0 0
        %2920 = vmatprep.subr.bf16.mxu0 0
        %2921 = vmatpush1.bf16.msra.mxu0 0
        %2922 = vmatprep.subr.bf16.mxu0 0
        %2923 = vmatpush1.bf16.msra.mxu0 0
        %2924 = vmatprep.subr.bf16.mxu0 0
        %2925 = vmatpush1.bf16.msra.mxu0 0
        %2926 = vmatprep.subr.bf16.mxu0 0
        %2927 = vmatpush1.bf16.msra.mxu0 0
        %2928 = vmatprep.subr.bf16.mxu0 0
        %2929 = vmatpush1.bf16.msra.mxu0 0
        %2930 = vmatprep.mubr.bf16.mxu0 0
        %2931 = vmatmul.mubr.bf16.gmra.mrb[0].mxu0 %v2896
        %v2932 = vpop.f32.mrb[0].mxu0
        %v2933 = vadd.f32 0.0, %v2932
        %v2934 = vpop.f32.mrb[0].mxu0
        %v2935 = vadd.f32 0.0, %v2934
        %v2936 = vpop.f32.mrb[0].mxu0
        %v2937 = vadd.f32 0.0, %v2936
        %v2938 = vpop.f32.mrb[0].mxu0
        %v2939 = vadd.f32 0.0, %v2938
        %2940 = vdwg.mxu0
        %v2941 = vadd.f32 %v2867, %v2933
        %v2942 = vadd.f32 %v2868, %v2935
        %v2943 = vadd.f32 %v2869, %v2937
        %v2944 = vadd.f32 %v2870, %v2939
        %s2945 = scalar_lea.vmem %s5, 32
        %v2946 = vld [vmem:[%s2945] sm:$0xf]
        %v2947 = vld [vmem:[%s2945 + $0x4] sm:$0xf]
        %v2950 = vunpack.c.l.b16 %v2946
        %v2951 = vunpack.c.l.b16 %v2947
        %v2952 = vpack.c.b16 %v2951, %v2950
        %v2954 = vsel %vm2037, %v2952, 0
        %2956 = vmatprep.subr.bf16.mxu0 %v2660
        %2957 = vmatpush1.bf16.msra.mxu0 %v2659
        %2958 = vmatprep.subr.bf16.mxu0 0
        %2959 = vmatpush1.bf16.msra.mxu0 0
        %2960 = vmatprep.subr.bf16.mxu0 0
        %2961 = vmatpush1.bf16.msra.mxu0 0
        %2962 = vmatprep.subr.bf16.mxu0 0
        %2963 = vmatpush1.bf16.msra.mxu0 0
        %2964 = vmatprep.subr.bf16.mxu0 0
        %2965 = vmatpush1.bf16.msra.mxu0 0
        %2966 = vmatprep.subr.bf16.mxu0 0
        %2967 = vmatpush1.bf16.msra.mxu0 0
        %2968 = vmatprep.subr.bf16.mxu0 0
        %2969 = vmatpush1.bf16.msra.mxu0 0
        %2970 = vmatprep.subr.bf16.mxu0 0
        %2971 = vmatpush1.bf16.msra.mxu0 0
        %2972 = vmatprep.subr.bf16.mxu0 0
        %2973 = vmatpush1.bf16.msra.mxu0 0
        %2974 = vmatprep.subr.bf16.mxu0 0
        %2975 = vmatpush1.bf16.msra.mxu0 0
        %2976 = vmatprep.subr.bf16.mxu0 0
        %2977 = vmatpush1.bf16.msra.mxu0 0
        %2978 = vmatprep.subr.bf16.mxu0 0
        %2979 = vmatpush1.bf16.msra.mxu0 0
        %2980 = vmatprep.subr.bf16.mxu0 0
        %2981 = vmatpush1.bf16.msra.mxu0 0
        %2982 = vmatprep.subr.bf16.mxu0 0
        %2983 = vmatpush1.bf16.msra.mxu0 0
        %2984 = vmatprep.subr.bf16.mxu0 0
        %2985 = vmatpush1.bf16.msra.mxu0 0
        %2986 = vmatprep.subr.bf16.mxu0 0
        %2987 = vmatpush1.bf16.msra.mxu0 0
        %2988 = vmatprep.mubr.bf16.mxu0 0
        %2989 = vmatmul.mubr.bf16.gmra.mrb[0].mxu0 %v2954
        %v2990 = vpop.f32.mrb[0].mxu0
        %v2991 = vadd.f32 0.0, %v2990
        %v2992 = vpop.f32.mrb[0].mxu0
        %v2993 = vadd.f32 0.0, %v2992
        %v2994 = vpop.f32.mrb[0].mxu0
        %v2995 = vadd.f32 0.0, %v2994
        %v2996 = vpop.f32.mrb[0].mxu0
        %v2997 = vadd.f32 0.0, %v2996
        %2998 = vdwg.mxu0
        %v2999 = vadd.f32 %v2941, %v2991
        %v3000 = vadd.f32 %v2942, %v2993
        %v3001 = vadd.f32 %v2943, %v2995
        %v3002 = vadd.f32 %v2944, %v2997
        %v3003 = vld [vmem:[#allocation2 + $0x8] sm:$0xff]
        %v3004 = vld [vmem:[#allocation2 + $0x10] sm:$0xff]
        %v3005 = vld [vmem:[#allocation2 + $0x18] sm:$0xff]
        %v3006 = vmul.bf16 %v3003, %v790
        %v3007 = vmul.bf16 %v3004, %v793
        %v3008 = vmul.bf16 %v3005, %v792
        %s3009 = scalar_lea.vmem %s5, 40
        %v3010 = vld [vmem:[%s3009] sm:$0xf]
        %v3011 = vld [vmem:[%s3009 + $0x4] sm:$0xf]
        %v3014 = vunpack.c.l.b16 %v3010
        %v3015 = vunpack.c.l.b16 %v3011
        %v3016 = vpack.c.b16 %v3015, %v3014
        %3020 = vrot.lane.b32.xlu0 %v3006, 127
        %v3021 = vpop.permute.xlu0 %3020
        %3022 = vrot.lane.b32.xlu0 %v3007, 127
        %v3023 = vpop.permute.xlu0 %3022
        %3024 = vrot.lane.b32.xlu0 %v3008, 127
        %v3025 = vpop.permute.xlu0 %3024
        %v3026 = vsel %vm658, %v3021, %v3023
        %v3027 = vsel %vm658, %v3023, %v3025
        %v3031 = vsel %vm2037, %v3016, 0
        %3033 = vmatprep.subr.bf16.mxu0 %v3027
        %3034 = vmatpush1.bf16.msra.mxu0 %v3026
        %3035 = vmatprep.subr.bf16.mxu0 0
        %3036 = vmatpush1.bf16.msra.mxu0 0
        %3037 = vmatprep.subr.bf16.mxu0 0
        %3038 = vmatpush1.bf16.msra.mxu0 0
        %3039 = vmatprep.subr.bf16.mxu0 0
        %3040 = vmatpush1.bf16.msra.mxu0 0
        %3041 = vmatprep.subr.bf16.mxu0 0
        %3042 = vmatpush1.bf16.msra.mxu0 0
        %3043 = vmatprep.subr.bf16.mxu0 0
        %3044 = vmatpush1.bf16.msra.mxu0 0
        %3045 = vmatprep.subr.bf16.mxu0 0
        %3046 = vmatpush1.bf16.msra.mxu0 0
        %3047 = vmatprep.subr.bf16.mxu0 0
        %3048 = vmatpush1.bf16.msra.mxu0 0
        %3049 = vmatprep.subr.bf16.mxu0 0
        %3050 = vmatpush1.bf16.msra.mxu0 0
        %3051 = vmatprep.subr.bf16.mxu0 0
        %3052 = vmatpush1.bf16.msra.mxu0 0
        %3053 = vmatprep.subr.bf16.mxu0 0
        %3054 = vmatpush1.bf16.msra.mxu0 0
        %3055 = vmatprep.subr.bf16.mxu0 0
        %3056 = vmatpush1.bf16.msra.mxu0 0
        %3057 = vmatprep.subr.bf16.mxu0 0
        %3058 = vmatpush1.bf16.msra.mxu0 0
        %3059 = vmatprep.subr.bf16.mxu0 0
        %3060 = vmatpush1.bf16.msra.mxu0 0
        %3061 = vmatprep.subr.bf16.mxu0 0
        %3062 = vmatpush1.bf16.msra.mxu0 0
        %3063 = vmatprep.subr.bf16.mxu0 0
        %3064 = vmatpush1.bf16.msra.mxu0 0
        %3065 = vmatprep.mubr.bf16.mxu0 0
        %3066 = vmatmul.mubr.bf16.gmra.mrb[0].mxu0 %v3031
        %v3067 = vpop.f32.mrb[0].mxu0
        %v3068 = vadd.f32 0.0, %v3067
        %v3069 = vpop.f32.mrb[0].mxu0
        %v3070 = vadd.f32 0.0, %v3069
        %v3071 = vpop.f32.mrb[0].mxu0
        %v3072 = vadd.f32 0.0, %v3071
        %v3073 = vpop.f32.mrb[0].mxu0
        %v3074 = vadd.f32 0.0, %v3073
        %3075 = vdwg.mxu0
        %v3076 = vadd.f32 %v2999, %v3068
        %v3077 = vadd.f32 %v3000, %v3070
        %v3078 = vadd.f32 %v3001, %v3072
        %v3079 = vadd.f32 %v3002, %v3074
        %v3080 = vmul.bf16 %v3003, %v866
        %v3081 = vmul.bf16 %v3004, %v869
        %v3082 = vmul.bf16 %v3005, %v868
        %s3083 = scalar_lea.vmem %s5, 48
        %v3084 = vld [vmem:[%s3083] sm:$0xf]
        %v3085 = vld [vmem:[%s3083 + $0x4] sm:$0xf]
        %v3088 = vunpack.c.l.b16 %v3084
        %v3089 = vunpack.c.l.b16 %v3085
        %v3090 = vpack.c.b16 %v3089, %v3088
        %3094 = vrot.lane.b32.xlu0 %v3080, 113
        %v3095 = vpop.permute.xlu0 %3094
        %3096 = vrot.lane.b32.xlu0 %v3081, 113
        %v3097 = vpop.permute.xlu0 %3096
        %3098 = vrot.lane.b32.xlu0 %v3082, 113
        %v3099 = vpop.permute.xlu0 %3098
        %v3100 = vsel %vm580, %v3095, %v3097
        %v3101 = vsel %vm580, %v3097, %v3099
        %v3105 = vsel %vm2037, %v3090, 0
        %3107 = vmatprep.subr.bf16.mxu0 %v3101
        %3108 = vmatpush1.bf16.msra.mxu0 %v3100
        %3109 = vmatprep.subr.bf16.mxu0 0
        %3110 = vmatpush1.bf16.msra.mxu0 0
        %3111 = vmatprep.subr.bf16.mxu0 0
        %3112 = vmatpush1.bf16.msra.mxu0 0
        %3113 = vmatprep.subr.bf16.mxu0 0
        %3114 = vmatpush1.bf16.msra.mxu0 0
        %3115 = vmatprep.subr.bf16.mxu0 0
        %3116 = vmatpush1.bf16.msra.mxu0 0
        %3117 = vmatprep.subr.bf16.mxu0 0
        %3118 = vmatpush1.bf16.msra.mxu0 0
        %3119 = vmatprep.subr.bf16.mxu0 0
        %3120 = vmatpush1.bf16.msra.mxu0 0
        %3121 = vmatprep.subr.bf16.mxu0 0
        %3122 = vmatpush1.bf16.msra.mxu0 0
        %3123 = vmatprep.subr.bf16.mxu0 0
        %3124 = vmatpush1.bf16.msra.mxu0 0
        %3125 = vmatprep.subr.bf16.mxu0 0
        %3126 = vmatpush1.bf16.msra.mxu0 0
        %3127 = vmatprep.subr.bf16.mxu0 0
        %3128 = vmatpush1.bf16.msra.mxu0 0
        %3129 = vmatprep.subr.bf16.mxu0 0
        %3130 = vmatpush1.bf16.msra.mxu0 0
        %3131 = vmatprep.subr.bf16.mxu0 0
        %3132 = vmatpush1.bf16.msra.mxu0 0
        %3133 = vmatprep.subr.bf16.mxu0 0
        %3134 = vmatpush1.bf16.msra.mxu0 0
        %3135 = vmatprep.subr.bf16.mxu0 0
        %3136 = vmatpush1.bf16.msra.mxu0 0
        %3137 = vmatprep.subr.bf16.mxu0 0
        %3138 = vmatpush1.bf16.msra.mxu0 0
        %3139 = vmatprep.mubr.bf16.mxu0 0
        %3140 = vmatmul.mubr.bf16.gmra.mrb[0].mxu0 %v3105
        %v3141 = vpop.f32.mrb[0].mxu0
        %v3142 = vadd.f32 0.0, %v3141
        %v3143 = vpop.f32.mrb[0].mxu0
        %v3144 = vadd.f32 0.0, %v3143
        %v3145 = vpop.f32.mrb[0].mxu0
        %v3146 = vadd.f32 0.0, %v3145
        %v3147 = vpop.f32.mrb[0].mxu0
        %v3148 = vadd.f32 0.0, %v3147
        %3149 = vdwg.mxu0
        %v3150 = vadd.f32 %v3076, %v3142
        %v3151 = vadd.f32 %v3077, %v3144
        %v3152 = vadd.f32 %v3078, %v3146
        %v3153 = vadd.f32 %v3079, %v3148
        %s3154 = scalar_lea.vmem %s5, 56
        %v3155 = vld [vmem:[%s3154] sm:$0xf]
        %v3156 = vld [vmem:[%s3154 + $0x4] sm:$0xf]
        %v3159 = vunpack.c.l.b16 %v3155
        %v3160 = vunpack.c.l.b16 %v3156
        %v3161 = vpack.c.b16 %v3160, %v3159
        %3165 = vrot.lane.b32.xlu0 %v3003, 112
        %v3166 = vpop.permute.xlu0 %3165
        %3167 = vrot.lane.b32.xlu0 %v3004, 112
        %v3168 = vpop.permute.xlu0 %3167
        %3169 = vrot.lane.b32.xlu0 %v3005, 112
        %v3170 = vpop.permute.xlu0 %3169
        %v3171 = vsel %vm952, %v3166, %v3168
        %v3172 = vsel %vm952, %v3168, %v3170
        %v3176 = vsel %vm2037, %v3161, 0
        %3178 = vmatprep.subr.bf16.mxu0 %v3172
        %3179 = vmatpush1.bf16.msra.mxu0 %v3171
        %3180 = vmatprep.subr.bf16.mxu0 0
        %3181 = vmatpush1.bf16.msra.mxu0 0
        %3182 = vmatprep.subr.bf16.mxu0 0
        %3183 = vmatpush1.bf16.msra.mxu0 0
        %3184 = vmatprep.subr.bf16.mxu0 0
        %3185 = vmatpush1.bf16.msra.mxu0 0
        %3186 = vmatprep.subr.bf16.mxu0 0
        %3187 = vmatpush1.bf16.msra.mxu0 0
        %3188 = vmatprep.subr.bf16.mxu0 0
        %3189 = vmatpush1.bf16.msra.mxu0 0
        %3190 = vmatprep.subr.bf16.mxu0 0
        %3191 = vmatpush1.bf16.msra.mxu0 0
        %3192 = vmatprep.subr.bf16.mxu0 0
        %3193 = vmatpush1.bf16.msra.mxu0 0
        %3194 = vmatprep.subr.bf16.mxu0 0
        %3195 = vmatpush1.bf16.msra.mxu0 0
        %3196 = vmatprep.subr.bf16.mxu0 0
        %3197 = vmatpush1.bf16.msra.mxu0 0
        %3198 = vmatprep.subr.bf16.mxu0 0
        %3199 = vmatpush1.bf16.msra.mxu0 0
        %3200 = vmatprep.subr.bf16.mxu0 0
        %3201 = vmatpush1.bf16.msra.mxu0 0
        %3202 = vmatprep.subr.bf16.mxu0 0
        %3203 = vmatpush1.bf16.msra.mxu0 0
        %3204 = vmatprep.subr.bf16.mxu0 0
        %3205 = vmatpush1.bf16.msra.mxu0 0
        %3206 = vmatprep.subr.bf16.mxu0 0
        %3207 = vmatpush1.bf16.msra.mxu0 0
        %3208 = vmatprep.subr.bf16.mxu0 0
        %3209 = vmatpush1.bf16.msra.mxu0 0
        %3210 = vmatprep.mubr.bf16.mxu0 0
        %3211 = vmatmul.mubr.bf16.gmra.mrb[0].mxu0 %v3176
        %v3212 = vpop.f32.mrb[0].mxu0
        %v3213 = vadd.f32 0.0, %v3212
        %v3214 = vpop.f32.mrb[0].mxu0
        %v3215 = vadd.f32 0.0, %v3214
        %v3216 = vpop.f32.mrb[0].mxu0
        %v3217 = vadd.f32 0.0, %v3216
        %v3218 = vpop.f32.mrb[0].mxu0
        %v3219 = vadd.f32 0.0, %v3218
        %3220 = vdwg.mxu0
        %v3221 = vadd.f32 %v3150, %v3213
        %v3222 = vadd.f32 %v3151, %v3215
        %v3223 = vadd.f32 %v3152, %v3217
        %v3224 = vadd.f32 %v3153, %v3219
        %v3225 = vmul.bf16 %v3003, %v1008
        %v3226 = vmul.bf16 %v3004, %v1011
        %v3227 = vmul.bf16 %v3005, %v1010
        %s3228 = scalar_lea.vmem %s5, 64
        %v3229 = vld [vmem:[%s3228] sm:$0xf]
        %v3230 = vld [vmem:[%s3228 + $0x4] sm:$0xf]
        %v3233 = vunpack.c.l.b16 %v3229
        %v3234 = vunpack.c.l.b16 %v3230
        %v3235 = vpack.c.b16 %v3234, %v3233
        %3239 = vrot.lane.b32.xlu0 %v3225, 111
        %v3240 = vpop.permute.xlu0 %3239
        %3241 = vrot.lane.b32.xlu0 %v3226, 111
        %v3242 = vpop.permute.xlu0 %3241
        %3243 = vrot.lane.b32.xlu0 %v3227, 111
        %v3244 = vpop.permute.xlu0 %3243
        %v3245 = vsel %vm437, %v3240, %v3242
        %v3246 = vsel %vm437, %v3242, %v3244
        %v3250 = vsel %vm2037, %v3235, 0
        %3252 = vmatprep.subr.bf16.mxu0 %v3246
        %3253 = vmatpush1.bf16.msra.mxu0 %v3245
        %3254 = vmatprep.subr.bf16.mxu0 0
        %3255 = vmatpush1.bf16.msra.mxu0 0
        %3256 = vmatprep.subr.bf16.mxu0 0
        %3257 = vmatpush1.bf16.msra.mxu0 0
        %3258 = vmatprep.subr.bf16.mxu0 0
        %3259 = vmatpush1.bf16.msra.mxu0 0
        %3260 = vmatprep.subr.bf16.mxu0 0
        %3261 = vmatpush1.bf16.msra.mxu0 0
        %3262 = vmatprep.subr.bf16.mxu0 0
        %3263 = vmatpush1.bf16.msra.mxu0 0
        %3264 = vmatprep.subr.bf16.mxu0 0
        %3265 = vmatpush1.bf16.msra.mxu0 0
        %3266 = vmatprep.subr.bf16.mxu0 0
        %3267 = vmatpush1.bf16.msra.mxu0 0
        %3268 = vmatprep.subr.bf16.mxu0 0
        %3269 = vmatpush1.bf16.msra.mxu0 0
        %3270 = vmatprep.subr.bf16.mxu0 0
        %3271 = vmatpush1.bf16.msra.mxu0 0
        %3272 = vmatprep.subr.bf16.mxu0 0
        %3273 = vmatpush1.bf16.msra.mxu0 0
        %3274 = vmatprep.subr.bf16.mxu0 0
        %3275 = vmatpush1.bf16.msra.mxu0 0
        %3276 = vmatprep.subr.bf16.mxu0 0
        %3277 = vmatpush1.bf16.msra.mxu0 0
        %3278 = vmatprep.subr.bf16.mxu0 0
        %3279 = vmatpush1.bf16.msra.mxu0 0
        %3280 = vmatprep.subr.bf16.mxu0 0
        %3281 = vmatpush1.bf16.msra.mxu0 0
        %3282 = vmatprep.subr.bf16.mxu0 0
        %3283 = vmatpush1.bf16.msra.mxu0 0
        %3284 = vmatprep.mubr.bf16.mxu0 0
        %3285 = vmatmul.mubr.bf16.gmra.mrb[0].mxu0 %v3250
        %v3286 = vpop.f32.mrb[0].mxu0
        %v3287 = vadd.f32 0.0, %v3286
        %v3288 = vpop.f32.mrb[0].mxu0
        %v3289 = vadd.f32 0.0, %v3288
        %v3290 = vpop.f32.mrb[0].mxu0
        %v3291 = vadd.f32 0.0, %v3290
        %v3292 = vpop.f32.mrb[0].mxu0
        %v3293 = vadd.f32 0.0, %v3292
        %3294 = vdwg.mxu0
        %v3295 = vadd.f32 %v3221, %v3287
        %v3296 = vadd.f32 %v3222, %v3289
        %v3297 = vadd.f32 %v3223, %v3291
        %v3298 = vadd.f32 %v3224, %v3293
        %v3299 = vld [vmem:[%s6] sm:$0xff]
        %v3300 = vld [vmem:[%s6 + $0x8] sm:$0xff]
        %3302 = vset.pattern.permute.xlu0 0
        %3303 = vperm.xlu0 %3302, %v3299
        %v3304 = vpop.permute.xlu0 %3303
        %3307 = vset.pattern.permute.xlu0 0
        %3308 = vperm.xlu0 %3307, %v3300
        %v3309 = vpop.permute.xlu0 %3308
        %v3311 = vadd.f32 %v3295, %v3304
        %v3312 = vadd.f32 %v3296, %v3304
        %v3313 = vadd.f32 %v3297, %v3309
        %v3314 = vadd.f32 %v3298, %v3309
        %v3315 = vpack.c.bf16 %v3313, %v3311
        %v3316 = vpack.c.bf16 %v3314, %v3312
        %3317 = vst [vmem:[#allocation2 + $0x8] sm:$0xff] %v3315
        %3318 = vst [vmem:[#allocation2 + $0x10] sm:$0xff] %v3316
        %v3319 = vld [vmem:[#allocation2] sm:$0xff]
        %v3320 = vld [vmem:[#allocation2 + $0x8] sm:$0xff]
        %v3321 = vld [vmem:[#allocation2 + $0x10] sm:$0xff]
        %v3322 = vmul.bf16 %v3319, %v434
        %v3323 = vmul.bf16 %v3320, %v438
        %v3324 = vmul.bf16 %v3321, %v436
        %v3325 = vld [vmem:[%s7] sm:$0x3]
        %s3326 = scalar_lea.vmem %s7, 2
        %v3327 = vld [vmem:[%s3326] sm:$0x3]
        %3331 = vrot.lane.b32.xlu0 %v3319, 16
        %v3332 = vpop.permute.xlu0 %3331
        %3333 = vrot.lane.b32.xlu0 %v3320, 16
        %v3334 = vpop.permute.xlu0 %3333
        %3335 = vrot.lane.b32.xlu0 %v3321, 16
        %v3336 = vpop.permute.xlu0 %3335
        %v3337 = vsel %vm457, %v3332, %v3334
        %v3338 = vsel %vm457, %v3334, %v3336
        %v3342 = vsel %vm2037, %v3327, 0
        %3344 = vmatprep.subr.bf16.mxu0 %v3338
        %3345 = vmatpush1.bf16.msra.mxu0 %v3337
        %3346 = vmatprep.subr.bf16.mxu0 0
        %3347 = vmatpush1.bf16.msra.mxu0 0
        %3348 = vmatprep.subr.bf16.mxu0 0
        %3349 = vmatpush1.bf16.msra.mxu0 0
        %3350 = vmatprep.subr.bf16.mxu0 0
        %3351 = vmatpush1.bf16.msra.mxu0 0
        %3352 = vmatprep.subr.bf16.mxu0 0
        %3353 = vmatpush1.bf16.msra.mxu0 0
        %3354 = vmatprep.subr.bf16.mxu0 0
        %3355 = vmatpush1.bf16.msra.mxu0 0
        %3356 = vmatprep.subr.bf16.mxu0 0
        %3357 = vmatpush1.bf16.msra.mxu0 0
        %3358 = vmatprep.subr.bf16.mxu0 0
        %3359 = vmatpush1.bf16.msra.mxu0 0
        %3360 = vmatprep.subr.bf16.mxu0 0
        %3361 = vmatpush1.bf16.msra.mxu0 0
        %3362 = vmatprep.subr.bf16.mxu0 0
        %3363 = vmatpush1.bf16.msra.mxu0 0
        %3364 = vmatprep.subr.bf16.mxu0 0
        %3365 = vmatpush1.bf16.msra.mxu0 0
        %3366 = vmatprep.subr.bf16.mxu0 0
        %3367 = vmatpush1.bf16.msra.mxu0 0
        %3368 = vmatprep.subr.bf16.mxu0 0
        %3369 = vmatpush1.bf16.msra.mxu0 0
        %3370 = vmatprep.subr.bf16.mxu0 0
        %3371 = vmatpush1.bf16.msra.mxu0 0
        %3372 = vmatprep.subr.bf16.mxu0 0
        %3373 = vmatpush1.bf16.msra.mxu0 0
        %3374 = vmatprep.subr.bf16.mxu0 0
        %3375 = vmatpush1.bf16.msra.mxu0 0
        %3376 = vmatprep.mubr.bf16.mxu0 0
        %3377 = vmatmul.mubr.bf16.gmra.mrb[0].mxu0 %v3342
        %v3378 = vpop.f32.mrb[0].mxu0
        %v3379 = vadd.f32 0.0, %v3378
        %v3380 = vpop.f32.mrb[0].mxu0
        %v3381 = vadd.f32 0.0, %v3380
        %v3382 = vpop.f32.mrb[0].mxu0
        %v3383 = vpop.f32.mrb[0].mxu0
        %3384 = vdwg.mxu0
        %3388 = vrot.lane.b32.xlu0 %v3322, 17
        %v3389 = vpop.permute.xlu0 %3388
        %3390 = vrot.lane.b32.xlu0 %v3323, 17
        %v3391 = vpop.permute.xlu0 %3390
        %3392 = vrot.lane.b32.xlu0 %v3324, 17
        %v3393 = vpop.permute.xlu0 %3392
        %v3394 = vsel %vm521, %v3389, %v3391
        %v3395 = vsel %vm521, %v3391, %v3393
        %v3399 = vsel %vm2037, %v3325, 0
        %3401 = vmatprep.subr.bf16.mxu0 %v3395
        %3402 = vmatpush1.bf16.msra.mxu0 %v3394
        %3403 = vmatprep.subr.bf16.mxu0 0
        %3404 = vmatpush1.bf16.msra.mxu0 0
        %3405 = vmatprep.subr.bf16.mxu0 0
        %3406 = vmatpush1.bf16.msra.mxu0 0
        %3407 = vmatprep.subr.bf16.mxu0 0
        %3408 = vmatpush1.bf16.msra.mxu0 0
        %3409 = vmatprep.subr.bf16.mxu0 0
        %3410 = vmatpush1.bf16.msra.mxu0 0
        %3411 = vmatprep.subr.bf16.mxu0 0
        %3412 = vmatpush1.bf16.msra.mxu0 0
        %3413 = vmatprep.subr.bf16.mxu0 0
        %3414 = vmatpush1.bf16.msra.mxu0 0
        %3415 = vmatprep.subr.bf16.mxu0 0
        %3416 = vmatpush1.bf16.msra.mxu0 0
        %3417 = vmatprep.subr.bf16.mxu0 0
        %3418 = vmatpush1.bf16.msra.mxu0 0
        %3419 = vmatprep.subr.bf16.mxu0 0
        %3420 = vmatpush1.bf16.msra.mxu0 0
        %3421 = vmatprep.subr.bf16.mxu0 0
        %3422 = vmatpush1.bf16.msra.mxu0 0
        %3423 = vmatprep.subr.bf16.mxu0 0
        %3424 = vmatpush1.bf16.msra.mxu0 0
        %3425 = vmatprep.subr.bf16.mxu0 0
        %3426 = vmatpush1.bf16.msra.mxu0 0
        %3427 = vmatprep.subr.bf16.mxu0 0
        %3428 = vmatpush1.bf16.msra.mxu0 0
        %3429 = vmatprep.subr.bf16.mxu0 0
        %3430 = vmatpush1.bf16.msra.mxu0 0
        %3431 = vmatprep.subr.bf16.mxu0 0
        %3432 = vmatpush1.bf16.msra.mxu0 0
        %3433 = vmatprep.mubr.bf16.mxu0 0
        %3434 = vmatmul.mubr.bf16.gmra.mrb[0].mxu0 %v3399
        %v3435 = vpop.f32.mrb[0].mxu0
        %v3436 = vadd.f32 %v3379, %v3435
        %v3437 = vpop.f32.mrb[0].mxu0
        %v3438 = vadd.f32 %v3381, %v3437
        %v3439 = vpop.f32.mrb[0].mxu0
        %v3440 = vpop.f32.mrb[0].mxu0
        %3441 = vdwg.mxu0
        %v3442 = vmul.bf16 %v3319, %v577
        %v3443 = vmul.bf16 %v3320, %v581
        %v3444 = vmul.bf16 %v3321, %v579
        %s3445 = scalar_lea.vmem %s7, 4
        %v3446 = vld [vmem:[%s3445] sm:$0x3]
        %3450 = vrot.lane.b32.xlu0 %v3442, 15
        %v3451 = vpop.permute.xlu0 %3450
        %3452 = vrot.lane.b32.xlu0 %v3443, 15
        %v3453 = vpop.permute.xlu0 %3452
        %3454 = vrot.lane.b32.xlu0 %v3444, 15
        %v3455 = vpop.permute.xlu0 %3454
        %v3456 = vsel %vm599, %v3451, %v3453
        %v3457 = vsel %vm599, %v3453, %v3455
        %v3461 = vsel %vm2037, %v3446, 0
        %3463 = vmatprep.subr.bf16.mxu0 %v3457
        %3464 = vmatpush1.bf16.msra.mxu0 %v3456
        %3465 = vmatprep.subr.bf16.mxu0 0
        %3466 = vmatpush1.bf16.msra.mxu0 0
        %3467 = vmatprep.subr.bf16.mxu0 0
        %3468 = vmatpush1.bf16.msra.mxu0 0
        %3469 = vmatprep.subr.bf16.mxu0 0
        %3470 = vmatpush1.bf16.msra.mxu0 0
        %3471 = vmatprep.subr.bf16.mxu0 0
        %3472 = vmatpush1.bf16.msra.mxu0 0
        %3473 = vmatprep.subr.bf16.mxu0 0
        %3474 = vmatpush1.bf16.msra.mxu0 0
        %3475 = vmatprep.subr.bf16.mxu0 0
        %3476 = vmatpush1.bf16.msra.mxu0 0
        %3477 = vmatprep.subr.bf16.mxu0 0
        %3478 = vmatpush1.bf16.msra.mxu0 0
        %3479 = vmatprep.subr.bf16.mxu0 0
        %3480 = vmatpush1.bf16.msra.mxu0 0
        %3481 = vmatprep.subr.bf16.mxu0 0
        %3482 = vmatpush1.bf16.msra.mxu0 0
        %3483 = vmatprep.subr.bf16.mxu0 0
        %3484 = vmatpush1.bf16.msra.mxu0 0
        %3485 = vmatprep.subr.bf16.mxu0 0
        %3486 = vmatpush1.bf16.msra.mxu0 0
        %3487 = vmatprep.subr.bf16.mxu0 0
        %3488 = vmatpush1.bf16.msra.mxu0 0
        %3489 = vmatprep.subr.bf16.mxu0 0
        %3490 = vmatpush1.bf16.msra.mxu0 0
        %3491 = vmatprep.subr.bf16.mxu0 0
        %3492 = vmatpush1.bf16.msra.mxu0 0
        %3493 = vmatprep.subr.bf16.mxu0 0
        %3494 = vmatpush1.bf16.msra.mxu0 0
        %3495 = vmatprep.mubr.bf16.mxu0 0
        %3496 = vmatmul.mubr.bf16.gmra.mrb[0].mxu0 %v3461
        %v3497 = vpop.f32.mrb[0].mxu0
        %v3498 = vadd.f32 0.0, %v3497
        %v3499 = vpop.f32.mrb[0].mxu0
        %v3500 = vadd.f32 0.0, %v3499
        %v3501 = vpop.f32.mrb[0].mxu0
        %v3502 = vpop.f32.mrb[0].mxu0
        %3503 = vdwg.mxu0
        %v3504 = vadd.f32 %v3436, %v3498
        %v3505 = vadd.f32 %v3438, %v3500
        %v3506 = vmul.bf16 %v3319, %v655
        %v3507 = vmul.bf16 %v3320, %v659
        %v3508 = vmul.bf16 %v3321, %v657
        %s3509 = scalar_lea.vmem %s7, 6
        %v3510 = vld [vmem:[%s3509] sm:$0x3]
        %3514 = vrot.lane.b32.xlu0 %v3506, 1
        %v3515 = vpop.permute.xlu0 %3514
        %3516 = vrot.lane.b32.xlu0 %v3507, 1
        %v3517 = vpop.permute.xlu0 %3516
        %3518 = vrot.lane.b32.xlu0 %v3508, 1
        %v3519 = vpop.permute.xlu0 %3518
        %v3520 = vsel %vm677, %v3515, %v3517
        %v3521 = vsel %vm677, %v3517, %v3519
        %v3525 = vsel %vm2037, %v3510, 0
        %3527 = vmatprep.subr.bf16.mxu0 %v3521
        %3528 = vmatpush1.bf16.msra.mxu0 %v3520
        %3529 = vmatprep.subr.bf16.mxu0 0
        %3530 = vmatpush1.bf16.msra.mxu0 0
        %3531 = vmatprep.subr.bf16.mxu0 0
        %3532 = vmatpush1.bf16.msra.mxu0 0
        %3533 = vmatprep.subr.bf16.mxu0 0
        %3534 = vmatpush1.bf16.msra.mxu0 0
        %3535 = vmatprep.subr.bf16.mxu0 0
        %3536 = vmatpush1.bf16.msra.mxu0 0
        %3537 = vmatprep.subr.bf16.mxu0 0
        %3538 = vmatpush1.bf16.msra.mxu0 0
        %3539 = vmatprep.subr.bf16.mxu0 0
        %3540 = vmatpush1.bf16.msra.mxu0 0
        %3541 = vmatprep.subr.bf16.mxu0 0
        %3542 = vmatpush1.bf16.msra.mxu0 0
        %3543 = vmatprep.subr.bf16.mxu0 0
        %3544 = vmatpush1.bf16.msra.mxu0 0
        %3545 = vmatprep.subr.bf16.mxu0 0
        %3546 = vmatpush1.bf16.msra.mxu0 0
        %3547 = vmatprep.subr.bf16.mxu0 0
        %3548 = vmatpush1.bf16.msra.mxu0 0
        %3549 = vmatprep.subr.bf16.mxu0 0
        %3550 = vmatpush1.bf16.msra.mxu0 0
        %3551 = vmatprep.subr.bf16.mxu0 0
        %3552 = vmatpush1.bf16.msra.mxu0 0
        %3553 = vmatprep.subr.bf16.mxu0 0
        %3554 = vmatpush1.bf16.msra.mxu0 0
        %3555 = vmatprep.subr.bf16.mxu0 0
        %3556 = vmatpush1.bf16.msra.mxu0 0
        %3557 = vmatprep.subr.bf16.mxu0 0
        %3558 = vmatpush1.bf16.msra.mxu0 0
        %3559 = vmatprep.mubr.bf16.mxu0 0
        %3560 = vmatmul.mubr.bf16.gmra.mrb[0].mxu0 %v3525
        %v3561 = vpop.f32.mrb[0].mxu0
        %v3562 = vadd.f32 0.0, %v3561
        %v3563 = vpop.f32.mrb[0].mxu0
        %v3564 = vadd.f32 0.0, %v3563
        %v3565 = vpop.f32.mrb[0].mxu0
        %v3566 = vpop.f32.mrb[0].mxu0
        %3567 = vdwg.mxu0
        %v3568 = vadd.f32 %v3504, %v3562
        %v3569 = vadd.f32 %v3505, %v3564
        %s3570 = scalar_lea.vmem %s7, 8
        %v3571 = vld [vmem:[%s3570] sm:$0x3]
        %v3573 = vsel %vm2037, %v3571, 0
        %3575 = vmatprep.subr.bf16.mxu0 %v3321
        %3576 = vmatpush1.bf16.msra.mxu0 %v3320
        %3577 = vmatprep.subr.bf16.mxu0 0
        %3578 = vmatpush1.bf16.msra.mxu0 0
        %3579 = vmatprep.subr.bf16.mxu0 0
        %3580 = vmatpush1.bf16.msra.mxu0 0
        %3581 = vmatprep.subr.bf16.mxu0 0
        %3582 = vmatpush1.bf16.msra.mxu0 0
        %3583 = vmatprep.subr.bf16.mxu0 0
        %3584 = vmatpush1.bf16.msra.mxu0 0
        %3585 = vmatprep.subr.bf16.mxu0 0
        %3586 = vmatpush1.bf16.msra.mxu0 0
        %3587 = vmatprep.subr.bf16.mxu0 0
        %3588 = vmatpush1.bf16.msra.mxu0 0
        %3589 = vmatprep.subr.bf16.mxu0 0
        %3590 = vmatpush1.bf16.msra.mxu0 0
        %3591 = vmatprep.subr.bf16.mxu0 0
        %3592 = vmatpush1.bf16.msra.mxu0 0
        %3593 = vmatprep.subr.bf16.mxu0 0
        %3594 = vmatpush1.bf16.msra.mxu0 0
        %3595 = vmatprep.subr.bf16.mxu0 0
        %3596 = vmatpush1.bf16.msra.mxu0 0
        %3597 = vmatprep.subr.bf16.mxu0 0
        %3598 = vmatpush1.bf16.msra.mxu0 0
        %3599 = vmatprep.subr.bf16.mxu0 0
        %3600 = vmatpush1.bf16.msra.mxu0 0
        %3601 = vmatprep.subr.bf16.mxu0 0
        %3602 = vmatpush1.bf16.msra.mxu0 0
        %3603 = vmatprep.subr.bf16.mxu0 0
        %3604 = vmatpush1.bf16.msra.mxu0 0
        %3605 = vmatprep.subr.bf16.mxu0 0
        %3606 = vmatpush1.bf16.msra.mxu0 0
        %3607 = vmatprep.mubr.bf16.mxu0 0
        %3608 = vmatmul.mubr.bf16.gmra.mrb[0].mxu0 %v3573
        %v3609 = vpop.f32.mrb[0].mxu0
        %v3610 = vadd.f32 0.0, %v3609
        %v3611 = vpop.f32.mrb[0].mxu0
        %v3612 = vadd.f32 0.0, %v3611
        %v3613 = vpop.f32.mrb[0].mxu0
        %v3614 = vpop.f32.mrb[0].mxu0
        %3615 = vdwg.mxu0
        %v3616 = vadd.f32 %v3568, %v3610
        %v3617 = vadd.f32 %v3569, %v3612
        %v3618 = vld [vmem:[#allocation2 + $0x8] sm:$0xff]
        %v3619 = vld [vmem:[#allocation2 + $0x10] sm:$0xff]
        %v3620 = vld [vmem:[#allocation2 + $0x18] sm:$0xff]
        %v3621 = vmul.bf16 %v3618, %v790
        %v3622 = vmul.bf16 %v3619, %v793
        %v3623 = vmul.bf16 %v3620, %v792
        %s3624 = scalar_lea.vmem %s7, 10
        %v3625 = vld [vmem:[%s3624] sm:$0x3]
        %3629 = vrot.lane.b32.xlu0 %v3621, 127
        %v3630 = vpop.permute.xlu0 %3629
        %3631 = vrot.lane.b32.xlu0 %v3622, 127
        %v3632 = vpop.permute.xlu0 %3631
        %3633 = vrot.lane.b32.xlu0 %v3623, 127
        %v3634 = vpop.permute.xlu0 %3633
        %v3635 = vsel %vm658, %v3630, %v3632
        %v3636 = vsel %vm658, %v3632, %v3634
        %v3640 = vsel %vm2037, %v3625, 0
        %3642 = vmatprep.subr.bf16.mxu0 %v3636
        %3643 = vmatpush1.bf16.msra.mxu0 %v3635
        %3644 = vmatprep.subr.bf16.mxu0 0
        %3645 = vmatpush1.bf16.msra.mxu0 0
        %3646 = vmatprep.subr.bf16.mxu0 0
        %3647 = vmatpush1.bf16.msra.mxu0 0
        %3648 = vmatprep.subr.bf16.mxu0 0
        %3649 = vmatpush1.bf16.msra.mxu0 0
        %3650 = vmatprep.subr.bf16.mxu0 0
        %3651 = vmatpush1.bf16.msra.mxu0 0
        %3652 = vmatprep.subr.bf16.mxu0 0
        %3653 = vmatpush1.bf16.msra.mxu0 0
        %3654 = vmatprep.subr.bf16.mxu0 0
        %3655 = vmatpush1.bf16.msra.mxu0 0
        %3656 = vmatprep.subr.bf16.mxu0 0
        %3657 = vmatpush1.bf16.msra.mxu0 0
        %3658 = vmatprep.subr.bf16.mxu0 0
        %3659 = vmatpush1.bf16.msra.mxu0 0
        %3660 = vmatprep.subr.bf16.mxu0 0
        %3661 = vmatpush1.bf16.msra.mxu0 0
        %3662 = vmatprep.subr.bf16.mxu0 0
        %3663 = vmatpush1.bf16.msra.mxu0 0
        %3664 = vmatprep.subr.bf16.mxu0 0
        %3665 = vmatpush1.bf16.msra.mxu0 0
        %3666 = vmatprep.subr.bf16.mxu0 0
        %3667 = vmatpush1.bf16.msra.mxu0 0
        %3668 = vmatprep.subr.bf16.mxu0 0
        %3669 = vmatpush1.bf16.msra.mxu0 0
        %3670 = vmatprep.subr.bf16.mxu0 0
        %3671 = vmatpush1.bf16.msra.mxu0 0
        %3672 = vmatprep.subr.bf16.mxu0 0
        %3673 = vmatpush1.bf16.msra.mxu0 0
        %3674 = vmatprep.mubr.bf16.mxu0 0
        %3675 = vmatmul.mubr.bf16.gmra.mrb[0].mxu0 %v3640
        %v3676 = vpop.f32.mrb[0].mxu0
        %v3677 = vadd.f32 0.0, %v3676
        %v3678 = vpop.f32.mrb[0].mxu0
        %v3679 = vadd.f32 0.0, %v3678
        %v3680 = vpop.f32.mrb[0].mxu0
        %v3681 = vpop.f32.mrb[0].mxu0
        %3682 = vdwg.mxu0
        %v3683 = vadd.f32 %v3616, %v3677
        %v3684 = vadd.f32 %v3617, %v3679
        %v3685 = vmul.bf16 %v3618, %v866
        %v3686 = vmul.bf16 %v3619, %v869
        %v3687 = vmul.bf16 %v3620, %v868
        %s3688 = scalar_lea.vmem %s7, 12
        %v3689 = vld [vmem:[%s3688] sm:$0x3]
        %3693 = vrot.lane.b32.xlu0 %v3685, 113
        %v3694 = vpop.permute.xlu0 %3693
        %3695 = vrot.lane.b32.xlu0 %v3686, 113
        %v3696 = vpop.permute.xlu0 %3695
        %3697 = vrot.lane.b32.xlu0 %v3687, 113
        %v3698 = vpop.permute.xlu0 %3697
        %v3699 = vsel %vm580, %v3694, %v3696
        %v3700 = vsel %vm580, %v3696, %v3698
        %v3704 = vsel %vm2037, %v3689, 0
        %3706 = vmatprep.subr.bf16.mxu0 %v3700
        %3707 = vmatpush1.bf16.msra.mxu0 %v3699
        %3708 = vmatprep.subr.bf16.mxu0 0
        %3709 = vmatpush1.bf16.msra.mxu0 0
        %3710 = vmatprep.subr.bf16.mxu0 0
        %3711 = vmatpush1.bf16.msra.mxu0 0
        %3712 = vmatprep.subr.bf16.mxu0 0
        %3713 = vmatpush1.bf16.msra.mxu0 0
        %3714 = vmatprep.subr.bf16.mxu0 0
        %3715 = vmatpush1.bf16.msra.mxu0 0
        %3716 = vmatprep.subr.bf16.mxu0 0
        %3717 = vmatpush1.bf16.msra.mxu0 0
        %3718 = vmatprep.subr.bf16.mxu0 0
        %3719 = vmatpush1.bf16.msra.mxu0 0
        %3720 = vmatprep.subr.bf16.mxu0 0
        %3721 = vmatpush1.bf16.msra.mxu0 0
        %3722 = vmatprep.subr.bf16.mxu0 0
        %3723 = vmatpush1.bf16.msra.mxu0 0
        %3724 = vmatprep.subr.bf16.mxu0 0
        %3725 = vmatpush1.bf16.msra.mxu0 0
        %3726 = vmatprep.subr.bf16.mxu0 0
        %3727 = vmatpush1.bf16.msra.mxu0 0
        %3728 = vmatprep.subr.bf16.mxu0 0
        %3729 = vmatpush1.bf16.msra.mxu0 0
        %3730 = vmatprep.subr.bf16.mxu0 0
        %3731 = vmatpush1.bf16.msra.mxu0 0
        %3732 = vmatprep.subr.bf16.mxu0 0
        %3733 = vmatpush1.bf16.msra.mxu0 0
        %3734 = vmatprep.subr.bf16.mxu0 0
        %3735 = vmatpush1.bf16.msra.mxu0 0
        %3736 = vmatprep.subr.bf16.mxu0 0
        %3737 = vmatpush1.bf16.msra.mxu0 0
        %3738 = vmatprep.mubr.bf16.mxu0 0
        %3739 = vmatmul.mubr.bf16.gmra.mrb[0].mxu0 %v3704
        %v3740 = vpop.f32.mrb[0].mxu0
        %v3741 = vadd.f32 0.0, %v3740
        %v3742 = vpop.f32.mrb[0].mxu0
        %v3743 = vadd.f32 0.0, %v3742
        %v3744 = vpop.f32.mrb[0].mxu0
        %v3745 = vpop.f32.mrb[0].mxu0
        %3746 = vdwg.mxu0
        %v3747 = vadd.f32 %v3683, %v3741
        %v3748 = vadd.f32 %v3684, %v3743
        %s3749 = scalar_lea.vmem %s7, 14
        %v3750 = vld [vmem:[%s3749] sm:$0x3]
        %3754 = vrot.lane.b32.xlu0 %v3618, 112
        %v3755 = vpop.permute.xlu0 %3754
        %3756 = vrot.lane.b32.xlu0 %v3619, 112
        %v3757 = vpop.permute.xlu0 %3756
        %3758 = vrot.lane.b32.xlu0 %v3620, 112
        %v3759 = vpop.permute.xlu0 %3758
        %v3760 = vsel %vm952, %v3755, %v3757
        %v3761 = vsel %vm952, %v3757, %v3759
        %v3765 = vsel %vm2037, %v3750, 0
        %3767 = vmatprep.subr.bf16.mxu0 %v3761
        %3768 = vmatpush1.bf16.msra.mxu0 %v3760
        %3769 = vmatprep.subr.bf16.mxu0 0
        %3770 = vmatpush1.bf16.msra.mxu0 0
        %3771 = vmatprep.subr.bf16.mxu0 0
        %3772 = vmatpush1.bf16.msra.mxu0 0
        %3773 = vmatprep.subr.bf16.mxu0 0
        %3774 = vmatpush1.bf16.msra.mxu0 0
        %3775 = vmatprep.subr.bf16.mxu0 0
        %3776 = vmatpush1.bf16.msra.mxu0 0
        %3777 = vmatprep.subr.bf16.mxu0 0
        %3778 = vmatpush1.bf16.msra.mxu0 0
        %3779 = vmatprep.subr.bf16.mxu0 0
        %3780 = vmatpush1.bf16.msra.mxu0 0
        %3781 = vmatprep.subr.bf16.mxu0 0
        %3782 = vmatpush1.bf16.msra.mxu0 0
        %3783 = vmatprep.subr.bf16.mxu0 0
        %3784 = vmatpush1.bf16.msra.mxu0 0
        %3785 = vmatprep.subr.bf16.mxu0 0
        %3786 = vmatpush1.bf16.msra.mxu0 0
        %3787 = vmatprep.subr.bf16.mxu0 0
        %3788 = vmatpush1.bf16.msra.mxu0 0
        %3789 = vmatprep.subr.bf16.mxu0 0
        %3790 = vmatpush1.bf16.msra.mxu0 0
        %3791 = vmatprep.subr.bf16.mxu0 0
        %3792 = vmatpush1.bf16.msra.mxu0 0
        %3793 = vmatprep.subr.bf16.mxu0 0
        %3794 = vmatpush1.bf16.msra.mxu0 0
        %3795 = vmatprep.subr.bf16.mxu0 0
        %3796 = vmatpush1.bf16.msra.mxu0 0
        %3797 = vmatprep.subr.bf16.mxu0 0
        %3798 = vmatpush1.bf16.msra.mxu0 0
        %3799 = vmatprep.mubr.bf16.mxu0 0
        %3800 = vmatmul.mubr.bf16.gmra.mrb[0].mxu0 %v3765
        %v3801 = vpop.f32.mrb[0].mxu0
        %v3802 = vadd.f32 0.0, %v3801
        %v3803 = vpop.f32.mrb[0].mxu0
        %v3804 = vadd.f32 0.0, %v3803
        %v3805 = vpop.f32.mrb[0].mxu0
        %v3806 = vpop.f32.mrb[0].mxu0
        %3807 = vdwg.mxu0
        %v3808 = vadd.f32 %v3747, %v3802
        %v3809 = vadd.f32 %v3748, %v3804
        %v3810 = vmul.bf16 %v3618, %v1008
        %v3811 = vmul.bf16 %v3619, %v1011
        %v3812 = vmul.bf16 %v3620, %v1010
        %s3813 = scalar_lea.vmem %s7, 16
        %v3814 = vld [vmem:[%s3813] sm:$0x3]
        %3818 = vrot.lane.b32.xlu0 %v3810, 111
        %v3819 = vpop.permute.xlu0 %3818
        %3820 = vrot.lane.b32.xlu0 %v3811, 111
        %v3821 = vpop.permute.xlu0 %3820
        %3822 = vrot.lane.b32.xlu0 %v3812, 111
        %v3823 = vpop.permute.xlu0 %3822
        %v3824 = vsel %vm437, %v3819, %v3821
        %v3825 = vsel %vm437, %v3821, %v3823
        %v3829 = vsel %vm2037, %v3814, 0
        %3831 = vmatprep.subr.bf16.mxu0 %v3825
        %3832 = vmatpush1.bf16.msra.mxu0 %v3824
        %3833 = vmatprep.subr.bf16.mxu0 0
        %3834 = vmatpush1.bf16.msra.mxu0 0
        %3835 = vmatprep.subr.bf16.mxu0 0
        %3836 = vmatpush1.bf16.msra.mxu0 0
        %3837 = vmatprep.subr.bf16.mxu0 0
        %3838 = vmatpush1.bf16.msra.mxu0 0
        %3839 = vmatprep.subr.bf16.mxu0 0
        %3840 = vmatpush1.bf16.msra.mxu0 0
        %3841 = vmatprep.subr.bf16.mxu0 0
        %3842 = vmatpush1.bf16.msra.mxu0 0
        %3843 = vmatprep.subr.bf16.mxu0 0
        %3844 = vmatpush1.bf16.msra.mxu0 0
        %3845 = vmatprep.subr.bf16.mxu0 0
        %3846 = vmatpush1.bf16.msra.mxu0 0
        %3847 = vmatprep.subr.bf16.mxu0 0
        %3848 = vmatpush1.bf16.msra.mxu0 0
        %3849 = vmatprep.subr.bf16.mxu0 0
        %3850 = vmatpush1.bf16.msra.mxu0 0
        %3851 = vmatprep.subr.bf16.mxu0 0
        %3852 = vmatpush1.bf16.msra.mxu0 0
        %3853 = vmatprep.subr.bf16.mxu0 0
        %3854 = vmatpush1.bf16.msra.mxu0 0
        %3855 = vmatprep.subr.bf16.mxu0 0
        %3856 = vmatpush1.bf16.msra.mxu0 0
        %3857 = vmatprep.subr.bf16.mxu0 0
        %3858 = vmatpush1.bf16.msra.mxu0 0
        %3859 = vmatprep.subr.bf16.mxu0 0
        %3860 = vmatpush1.bf16.msra.mxu0 0
        %3861 = vmatprep.subr.bf16.mxu0 0
        %3862 = vmatpush1.bf16.msra.mxu0 0
        %3863 = vmatprep.mubr.bf16.mxu0 0
        %3864 = vmatmul.mubr.bf16.gmra.mrb[0].mxu0 %v3829
        %v3865 = vpop.f32.mrb[0].mxu0
        %v3866 = vadd.f32 0.0, %v3865
        %v3867 = vpop.f32.mrb[0].mxu0
        %v3868 = vadd.f32 0.0, %v3867
        %v3869 = vpop.f32.mrb[0].mxu0
        %v3870 = vpop.f32.mrb[0].mxu0
        %3871 = vdwg.mxu0
        %v3872 = vadd.f32 %v3808, %v3866
        %v3873 = vadd.f32 %v3809, %v3868
        %v3874 = vld [vmem:[%s8] sm:$0xf]
        %3876 = vset.pattern.permute.xlu0 0
        %3877 = vperm.xlu0 %3876, %v3874
        %v3878 = vpop.permute.xlu0 %3877
        %v3880 = vadd.f32 %v3872, %v3878
        %v3881 = vadd.f32 %v3873, %v3878
        %v3884 = vcombine.low %v3880, %v3881
        %3886 = vst [vmem:[%s366] sm:$0xff] %v3884
        %s3887 = sand.u32 %s248, 1
        %s3888 = scalar_lea.sflag [#allocation4], %s3887
        %s3889 = sand.u32 %s248, 1
        %s3890 = smul.addr %s3889, 8
        %s3891 = scalar_lea.vmem [#allocation6], %s3890
        // Predicated region
        $region65: #{tpu_custom_call.1} parent=59 // pred_check
          %p3892 = pneg %p258
        $region66: #{tpu_custom_call.1} parent=59 // pred_check_branch
          %3894 = sbr.rel (%p3892) target = $region68
        $region67: #{tpu_custom_call.1} parent=59 // pred_region
          %s3896 = ssub.s32 128, 128
          %3897 = vsyncadd %s3888, %s3896
          %s3898 = smul.addr %s25, 2
          %s3899 = smul.addr %s3898, 64
          %s3900 = scalar_lea.hbm %s10, %s3899
          %s3902 = sshll.u32 %s3891, 4
          %s3903 = int_to_ptr.vmem [resolvable:$true] %s3902
          %3905 = dma.vmem_to_hbm [thread:$0]  %s3903, 128, %s3900, %s3888
        $region68: #{tpu_custom_call.1} parent=59 // pred_fallthru
          _
      $region60: #{tpu_custom_call.1} parent=5 // pred_fallthru
        _
      %p3906 = scmp.le.s32.totalorder 2, %s20
      // Predicated region
      $region69: #{tpu_custom_call.1} parent=5 // pred_check
        %p3907 = pneg %p3906
      $region70: #{tpu_custom_call.1} parent=5 // pred_check_branch
        %3909 = sbr.rel (%p3907) target = $region72
      $region71: #{tpu_custom_call.1} parent=5 // pred_region
        %s3910 = ssub.s32 %s20, 2
        // Predicated region
        $region73: #{tpu_custom_call.1} parent=71 // pred_check
          %p3911 = pneg %p264
        $region74: #{tpu_custom_call.1} parent=71 // pred_check_branch
          %3913 = sbr.rel (%p3911) target = $region76
        $region75: #{tpu_custom_call.1} parent=71 // pred_region
          %s3914 = sand.u32 %s249, 1
          %s3915 = scalar_lea.sflag [#allocation4], %s3914
          %s3916 = sand.u32 %s249, 1
          %s3917 = smul.addr %s3916, 8
          %s3918 = scalar_lea.vmem [#allocation6], %s3917
          %3919 = dma.done %s3915, 128
        $region76: #{tpu_custom_call.1} parent=71 // pred_fallthru
          _
      $region72: #{tpu_custom_call.1} parent=5 // pred_fallthru
        _
    $region6: #{tpu_custom_call.1} parent=1 // loop_footer
      %s24 = sadd.s32 1, %s20
    $region7: #{tpu_custom_call.1} parent=1 // loop_footer_branch
      %19 = sbr.rel target = $region3
    $region8: #{tpu_custom_call.1} parent=1 // loop_exit
      _
    %3920 = vsyncpa [#allocation4], 1
    %s3921 = scalar_lea.sflag [#allocation4], 1
    %3922 = vsyncpa %s3921, 1
    %3923 = vsyncpa [#allocation5], 1
    %s3924 = scalar_lea.sflag [#allocation5], 1
    %3925 = vsyncpa %s3924, 1

</llo_original>
